<compile_context>
chip_gen: v7x
topology: tpu7x:2x2x1
jax: 0.10.0
libtpu: 0.0.40
codegen_flags: <defaults>
</compile_context>

<pallas_src>
import jax
import jax.numpy as jnp
from jax import lax
from jax.experimental import pallas as pl
from jax.experimental.pallas import tpu as pltpu


# Geometry implied by the PyTorch module with 16x16 single-channel inputs.
H = W = 16            # input spatial size
OH1 = OW1 = 14        # after conv1 (3x3, valid)
OH2 = OW2 = 12        # after conv2 (3x3, valid)
C1, C2 = 8, 16        # conv output channels
NUM_CLASSES = 10
PAD_OUT = 128         # lane-dense padded logits width (exactly one MXU lane tile)

S = 16                # lane stride of the flattened spatial layout (lane = h*S + w)
XPAD = 384            # padded flattened-image width, 3 x 128 (lane aligned)
W1_LANES = 256        # conv1 activation lanes (covers all shifted conv2 windows)
W2_LANES = OH2 * S    # = 192, conv2 activation lanes (lane = oh*16 + ow)
OFFSETS = tuple(i * S + j for i in range(3) for j in range(3))   # 3x3 tap shifts
MAX_B_TILE = 128      # images per grid step (~14 MiB VMEM/step)


def _round_up(x, m):
    return (x + m - 1) // m * m


def _fused_forward_kernel(x_ref, w1_ref, b1_ref, w2_ref, b2_ref, w3_ref, b3_ref,
                          o_ref):
    """One tile of B images per grid step; all activations stay in VMEM/vregs."""
    f32 = jnp.float32
    b = x_ref.shape[0]

    # Input tile: (B, XPAD) bf16, lane = h*16 + w.  Cast once; VPU math in f32.
    x = x_ref[...].astype(f32)

    # ---- conv1: 1 -> 8 channels.  9 lane-shifted tap slices computed once per
    # tile, then 8x9 scalar-weight FMAs on (B, 256) blocks (weights in SMEM). ---
    p1 = [x[:, off:off + W1_LANES] for off in OFFSETS]
    h1 = []
    for c in range(C1):
        a = w1_ref[c, 0] * p1[0]
        for t in range(1, 9):
            a = a + w1_ref[c, t] * p1[t]
        h1.append(jnp.maximum(a + b1_ref[c], 0.0))            # (B, 256) f32

    # ---- conv2 tap slices: 72 lane-shifted (B, 192) blocks, computed once per
    # tile and reused by all 16 output channels.  Junk lanes (ow >= 12) remain
    # finite (zero input padding + ReLU) and are nulled by the w3 layout. -------
    s2 = [[h1[ci][:, off:off + W2_LANES] for ci in range(C1)] for off in OFFSETS]

    # ---- conv2 (8 -> 16) + ReLU + Linear, fused per output channel.  The NCHW
    # flatten / validity mask lives inside w3_ref, so logits are 16 accumulated
    # (B, 192) x (192, 128) MXU dots with bf16 operands and f32 accumulation. ---
    def per_channel(co, acc):
        h2 = w2_ref[co, 0] * s2[0][0]
        for ci in range(C1):
            for t in range(9):
                k = ci * 9 + t                                # index = ci*9 + i*3 + j
                if k == 0:
                    continue
                h2 = h2 + w2_ref[co, k] * s2[t][ci]
        h2 = jnp.maximum(h2 + b2_ref[co], 0.0).astype(jnp.bfloat16)   # (B, 192)
        return acc + jnp.dot(h2, w3_ref[co], preferred_element_type=f32)

    acc = lax.fori_loop(0, C2, per_channel, jnp.zeros((b, PAD_OUT), f32))
    o_ref[...] = acc + b3_ref[...]                            # dense (B, 128) store


@jax.jit
def image_classifier_forward(params, x_nchw):
    """x_nchw: (N, 1, 16, 16) f32  ->  logits (N, 10) f32."""
    n = x_nchw.shape[0]
    b_tile = min(MAX_B_TILE, _round_up(n, 8))
    n_pad = _round_up(n, b_tile)

    # Flatten each image to a lane-major row (lane = h*16 + w), cast to bf16 to
    # halve input DMA bytes, zero-pad lanes to 384 (= 3*128) and rows to a
    # multiple of the batch tile (padded rows give junk logits, sliced off).
    x_rows = x_nchw.reshape(n, H * W).astype(jnp.bfloat16)
    x_rows = jnp.pad(x_rows, ((0, n_pad - n), (0, XPAD - H * W)))

    out = pl.pallas_call(
        _fused_forward_kernel,
        out_shape=jax.ShapeDtypeStruct((n_pad, PAD_OUT), jnp.float32),
        grid=(n_pad // b_tile,),
        in_specs=[
            pl.BlockSpec((b_tile, XPAD), lambda i: (i, 0)),              # images
            pl.BlockSpec(memory_space=pltpu.MemorySpace.SMEM),           # w1 (8,9)  f32
            pl.BlockSpec(memory_space=pltpu.MemorySpace.SMEM),           # b1 (8,)   f32
            pl.BlockSpec(memory_space=pltpu.MemorySpace.SMEM),           # w2 (16,72) f32
            pl.BlockSpec(memory_space=pltpu.MemorySpace.SMEM),           # b2 (16,)  f32
            pl.BlockSpec((C2, W2_LANES, PAD_OUT), lambda i: (0, 0, 0)),  # w3 (bf16)
            pl.BlockSpec((1, PAD_OUT), lambda i: (0, 0)),                # b3 (f32)
        ],
        out_specs=pl.BlockSpec((b_tile, PAD_OUT), lambda i: (i, 0)),
        compiler_params=pltpu.CompilerParams(
            dimension_semantics=("parallel",),
            vmem_limit_bytes=32 * 1024 * 1024),
    )(x_rows, params["w1m"], params["b1"], params["w2m"], params["b2"],
      params["w3r"], params["b3p"])
    return out[:n, :NUM_CLASSES]


def init_params(key):
    k1, k2, k3, k4, k5, k6 = jax.random.split(key, 6)
    # PyTorch-layout parameters (OIHW conv weights, (in_features, out) linear weight).
    w1 = jax.random.normal(k1, (C1, 1, 3, 3), jnp.float32) * 0.1
    b1 = jax.random.normal(k2, (C1,), jnp.float32) * 0.01
    w2 = jax.random.normal(k3, (C2, C1, 3, 3), jnp.float32) * 0.05
    b2 = jax.random.normal(k4, (C2,), jnp.float32) * 0.01
    in_feat = C2 * OH2 * OW2                      # LazyLinear in_features = 2304
    w3 = jax.random.normal(k5, (in_feat, NUM_CLASSES), jnp.float32) * 0.02
    b3 = jax.random.normal(k6, (NUM_CLASSES,), jnp.float32) * 0.01

    # One-time re-layout for the fused kernel:
    #   * conv weights -> (Cout, Cin*9) scalar tables (SMEM), index = ci*9 + i*3 + j
    #   * Linear weight -> per-channel (192, 128) bf16 blocks in the kernel's
    #     h*16+w lane order, zero rows for invalid lanes (ow >= 12) and zero cols
    #     for classes >= 10.  This folds nn.Flatten() + validity masking in.
    w1m = w1.reshape(C1, 9)
    w2m = w2.reshape(C2, C1 * 9)
    w3r = w3.reshape(C2, OH2, OW2, NUM_CLASSES)
    w3r = jnp.pad(w3r, ((0, 0), (0, 0), (0, S - OW2), (0, PAD_OUT - NUM_CLASSES)))
    w3r = w3r.reshape(C2, OH2 * S, PAD_OUT).astype(jnp.bfloat16)
    b3p = jnp.zeros((1, PAD_OUT), jnp.float32).at[0, :NUM_CLASSES].set(b3)
    return dict(
        w1m=w1m, b1=b1, w2m=w2m, b2=b2, w3r=w3r, b3p=b3p,
        # raw PyTorch-layout copies, used only by the f32 reference check
        w1=w1, w2=w2, w3=w3, b3=b3,
    )


def reference_forward(params, x_nchw):
    """Pure-XLA f32 reference matching the PyTorch module semantics."""
    dn = ("NCHW", "OIHW", "NCHW")
    h1 = jax.lax.conv_general_dilated(x_nchw, params["w1"], (1, 1), "VALID",
                                      dimension_numbers=dn)
    h1 = jax.nn.relu(h1 + params["b1"][None, :, None, None])
    h2 = jax.lax.conv_general_dilated(h1, params["w2"], (1, 1), "VALID",
                                      dimension_numbers=dn)
    h2 = jax.nn.relu(h2 + params["b2"][None, :, None, None])
    flat = h2.reshape(h2.shape[0], -1)               # nn.Flatten() on NCHW
    return flat @ params["w3"] + params["b3"][None, :]


if __name__ == "__main__":
    key = jax.random.PRNGKey(0)
    k_in, k_par = jax.random.split(key)

    N = 2
    x = jax.random.normal(k_in, (N, 1, H, W), jnp.float32)
    params = init_params(k_par)

    logits = jax.block_until_ready(image_classifier_forward(params, x))

    assert logits.shape == (N, NUM_CLASSES), logits.shape
    assert logits.dtype == jnp.float32

    ref = jax.block_until_ready(reference_forward(params, x))
    max_err = float(jnp.max(jnp.abs(logits - ref)))
    # bf16 input / bf16 Linear operands vs f32 reference -> small deviation expected.
    assert max_err < 5e-2, f"mismatch vs f32 reference: {max_err}"
    print("KERNEL_OK")
</pallas_src>

<mosaic_0001>
module attributes {stable_mosaic.version = 11 : i64} {
  func.func @_fused_forward_kernel(%arg0: i32, %arg1: memref<8x384xbf16, #tpu.memory_space<vmem>>, %arg2: memref<8x9xf32, #tpu.memory_space<smem>>, %arg3: memref<8xf32, #tpu.memory_space<smem>>, %arg4: memref<16x72xf32, #tpu.memory_space<smem>>, %arg5: memref<16xf32, #tpu.memory_space<smem>>, %arg6: memref<16x192x128xbf16, #tpu.memory_space<vmem>>, %arg7: memref<1x128xf32, #tpu.memory_space<vmem>>, %arg8: memref<8x128xf32, #tpu.memory_space<vmem>>) attributes {dimension_semantics = [#tpu.dimension_semantics<parallel>], iteration_bounds = array<i64: 1>, scalar_prefetch = 0 : i64, scratch_operands = 0 : i64, tpu.core_type = #tpu.core_type<tc>, window_params = [{transform_indices = @transform_0, window_bounds = array<i64: 8, 384>}, {transform_indices = @transform_1, window_bounds = array<i64: 8, 9>}, {transform_indices = @transform_2, window_bounds = array<i64: 8>}, {transform_indices = @transform_3, window_bounds = array<i64: 16, 72>}, {transform_indices = @transform_4, window_bounds = array<i64: 16>}, {pipeline_mode = #tpu.pipeline_mode<synchronous>, transform_indices = @transform_5, window_bounds = array<i64: 16, 192, 128>}, {pipeline_mode = #tpu.pipeline_mode<synchronous>, transform_indices = @transform_6, window_bounds = array<i64: 1, 128>}, {transform_indices = @transform_7, window_bounds = array<i64: 8, 128>}]} {
    %c0 = arith.constant 0 : index
    %c0_0 = arith.constant 0 : index
    %0 = vector.load %arg1[%c0, %c0_0] : memref<8x384xbf16, #tpu.memory_space<vmem>>, vector<8x384xbf16>
    %1 = arith.extf %0 : vector<8x384xbf16> to vector<8x384xf32>
    %2 = vector.extract_strided_slice %1 {offsets = [0, 0], sizes = [8, 256], strides = [1, 1]} : vector<8x384xf32> to vector<8x256xf32>
    %3 = vector.extract_strided_slice %1 {offsets = [0, 1], sizes = [8, 256], strides = [1, 1]} : vector<8x384xf32> to vector<8x256xf32>
    %4 = vector.extract_strided_slice %1 {offsets = [0, 2], sizes = [8, 256], strides = [1, 1]} : vector<8x384xf32> to vector<8x256xf32>
    %5 = vector.extract_strided_slice %1 {offsets = [0, 16], sizes = [8, 256], strides = [1, 1]} : vector<8x384xf32> to vector<8x256xf32>
    %6 = vector.extract_strided_slice %1 {offsets = [0, 17], sizes = [8, 256], strides = [1, 1]} : vector<8x384xf32> to vector<8x256xf32>
    %7 = vector.extract_strided_slice %1 {offsets = [0, 18], sizes = [8, 256], strides = [1, 1]} : vector<8x384xf32> to vector<8x256xf32>
    %8 = vector.extract_strided_slice %1 {offsets = [0, 32], sizes = [8, 256], strides = [1, 1]} : vector<8x384xf32> to vector<8x256xf32>
    %9 = vector.extract_strided_slice %1 {offsets = [0, 33], sizes = [8, 256], strides = [1, 1]} : vector<8x384xf32> to vector<8x256xf32>
    %10 = vector.extract_strided_slice %1 {offsets = [0, 34], sizes = [8, 256], strides = [1, 1]} : vector<8x384xf32> to vector<8x256xf32>
    %c0_1 = arith.constant 0 : index
    %c0_2 = arith.constant 0 : index
    %11 = memref.load %arg2[%c0_1, %c0_2] : memref<8x9xf32, #tpu.memory_space<smem>>
    %12 = vector.broadcast %11 : f32 to vector<8x256xf32>
    %13 = arith.mulf %12, %2 : vector<8x256xf32>
    %c0_3 = arith.constant 0 : index
    %c1 = arith.constant 1 : index
    %14 = memref.load %arg2[%c0_3, %c1] : memref<8x9xf32, #tpu.memory_space<smem>>
    %15 = vector.broadcast %14 : f32 to vector<8x256xf32>
    %16 = arith.mulf %15, %3 : vector<8x256xf32>
    %17 = arith.addf %13, %16 : vector<8x256xf32>
    %c0_4 = arith.constant 0 : index
    %c2 = arith.constant 2 : index
    %18 = memref.load %arg2[%c0_4, %c2] : memref<8x9xf32, #tpu.memory_space<smem>>
    %19 = vector.broadcast %18 : f32 to vector<8x256xf32>
    %20 = arith.mulf %19, %4 : vector<8x256xf32>
    %21 = arith.addf %17, %20 : vector<8x256xf32>
    %c0_5 = arith.constant 0 : index
    %c3 = arith.constant 3 : index
    %22 = memref.load %arg2[%c0_5, %c3] : memref<8x9xf32, #tpu.memory_space<smem>>
    %23 = vector.broadcast %22 : f32 to vector<8x256xf32>
    %24 = arith.mulf %23, %5 : vector<8x256xf32>
    %25 = arith.addf %21, %24 : vector<8x256xf32>
    %c0_6 = arith.constant 0 : index
    %c4 = arith.constant 4 : index
    %26 = memref.load %arg2[%c0_6, %c4] : memref<8x9xf32, #tpu.memory_space<smem>>
    %27 = vector.broadcast %26 : f32 to vector<8x256xf32>
    %28 = arith.mulf %27, %6 : vector<8x256xf32>
    %29 = arith.addf %25, %28 : vector<8x256xf32>
    %c0_7 = arith.constant 0 : index
    %c5 = arith.constant 5 : index
    %30 = memref.load %arg2[%c0_7, %c5] : memref<8x9xf32, #tpu.memory_space<smem>>
    %31 = vector.broadcast %30 : f32 to vector<8x256xf32>
    %32 = arith.mulf %31, %7 : vector<8x256xf32>
    %33 = arith.addf %29, %32 : vector<8x256xf32>
    %c0_8 = arith.constant 0 : index
    %c6 = arith.constant 6 : index
    %34 = memref.load %arg2[%c0_8, %c6] : memref<8x9xf32, #tpu.memory_space<smem>>
    %35 = vector.broadcast %34 : f32 to vector<8x256xf32>
    %36 = arith.mulf %35, %8 : vector<8x256xf32>
    %37 = arith.addf %33, %36 : vector<8x256xf32>
    %c0_9 = arith.constant 0 : index
    %c7 = arith.constant 7 : index
    %38 = memref.load %arg2[%c0_9, %c7] : memref<8x9xf32, #tpu.memory_space<smem>>
    %39 = vector.broadcast %38 : f32 to vector<8x256xf32>
    %40 = arith.mulf %39, %9 : vector<8x256xf32>
    %41 = arith.addf %37, %40 : vector<8x256xf32>
    %c0_10 = arith.constant 0 : index
    %c8 = arith.constant 8 : index
    %42 = memref.load %arg2[%c0_10, %c8] : memref<8x9xf32, #tpu.memory_space<smem>>
    %43 = vector.broadcast %42 : f32 to vector<8x256xf32>
    %44 = arith.mulf %43, %10 : vector<8x256xf32>
    %45 = arith.addf %41, %44 : vector<8x256xf32>
    %c0_11 = arith.constant 0 : index
    %46 = memref.load %arg3[%c0_11] : memref<8xf32, #tpu.memory_space<smem>>
    %47 = vector.broadcast %46 : f32 to vector<8x256xf32>
    %48 = arith.addf %45, %47 : vector<8x256xf32>
    %cst = arith.constant 0.000000e+00 : f32
    %49 = vector.broadcast %cst : f32 to vector<8x256xf32>
    %50 = arith.maximumf %48, %49 : vector<8x256xf32>
    %c1_12 = arith.constant 1 : index
    %c0_13 = arith.constant 0 : index
    %51 = memref.load %arg2[%c1_12, %c0_13] : memref<8x9xf32, #tpu.memory_space<smem>>
    %52 = vector.broadcast %51 : f32 to vector<8x256xf32>
    %53 = arith.mulf %52, %2 : vector<8x256xf32>
    %c1_14 = arith.constant 1 : index
    %c1_15 = arith.constant 1 : index
    %54 = memref.load %arg2[%c1_14, %c1_15] : memref<8x9xf32, #tpu.memory_space<smem>>
    %55 = vector.broadcast %54 : f32 to vector<8x256xf32>
    %56 = arith.mulf %55, %3 : vector<8x256xf32>
    %57 = arith.addf %53, %56 : vector<8x256xf32>
    %c1_16 = arith.constant 1 : index
    %c2_17 = arith.constant 2 : index
    %58 = memref.load %arg2[%c1_16, %c2_17] : memref<8x9xf32, #tpu.memory_space<smem>>
    %59 = vector.broadcast %58 : f32 to vector<8x256xf32>
    %60 = arith.mulf %59, %4 : vector<8x256xf32>
    %61 = arith.addf %57, %60 : vector<8x256xf32>
    %c1_18 = arith.constant 1 : index
    %c3_19 = arith.constant 3 : index
    %62 = memref.load %arg2[%c1_18, %c3_19] : memref<8x9xf32, #tpu.memory_space<smem>>
    %63 = vector.broadcast %62 : f32 to vector<8x256xf32>
    %64 = arith.mulf %63, %5 : vector<8x256xf32>
    %65 = arith.addf %61, %64 : vector<8x256xf32>
    %c1_20 = arith.constant 1 : index
    %c4_21 = arith.constant 4 : index
    %66 = memref.load %arg2[%c1_20, %c4_21] : memref<8x9xf32, #tpu.memory_space<smem>>
    %67 = vector.broadcast %66 : f32 to vector<8x256xf32>
    %68 = arith.mulf %67, %6 : vector<8x256xf32>
    %69 = arith.addf %65, %68 : vector<8x256xf32>
    %c1_22 = arith.constant 1 : index
    %c5_23 = arith.constant 5 : index
    %70 = memref.load %arg2[%c1_22, %c5_23] : memref<8x9xf32, #tpu.memory_space<smem>>
    %71 = vector.broadcast %70 : f32 to vector<8x256xf32>
    %72 = arith.mulf %71, %7 : vector<8x256xf32>
    %73 = arith.addf %69, %72 : vector<8x256xf32>
    %c1_24 = arith.constant 1 : index
    %c6_25 = arith.constant 6 : index
    %74 = memref.load %arg2[%c1_24, %c6_25] : memref<8x9xf32, #tpu.memory_space<smem>>
    %75 = vector.broadcast %74 : f32 to vector<8x256xf32>
    %76 = arith.mulf %75, %8 : vector<8x256xf32>
    %77 = arith.addf %73, %76 : vector<8x256xf32>
    %c1_26 = arith.constant 1 : index
    %c7_27 = arith.constant 7 : index
    %78 = memref.load %arg2[%c1_26, %c7_27] : memref<8x9xf32, #tpu.memory_space<smem>>
    %79 = vector.broadcast %78 : f32 to vector<8x256xf32>
    %80 = arith.mulf %79, %9 : vector<8x256xf32>
    %81 = arith.addf %77, %80 : vector<8x256xf32>
    %c1_28 = arith.constant 1 : index
    %c8_29 = arith.constant 8 : index
    %82 = memref.load %arg2[%c1_28, %c8_29] : memref<8x9xf32, #tpu.memory_space<smem>>
    %83 = vector.broadcast %82 : f32 to vector<8x256xf32>
    %84 = arith.mulf %83, %10 : vector<8x256xf32>
    %85 = arith.addf %81, %84 : vector<8x256xf32>
    %c1_30 = arith.constant 1 : index
    %86 = memref.load %arg3[%c1_30] : memref<8xf32, #tpu.memory_space<smem>>
    %87 = vector.broadcast %86 : f32 to vector<8x256xf32>
    %88 = arith.addf %85, %87 : vector<8x256xf32>
    %cst_31 = arith.constant 0.000000e+00 : f32
    %89 = vector.broadcast %cst_31 : f32 to vector<8x256xf32>
    %90 = arith.maximumf %88, %89 : vector<8x256xf32>
    %c2_32 = arith.constant 2 : index
    %c0_33 = arith.constant 0 : index
    %91 = memref.load %arg2[%c2_32, %c0_33] : memref<8x9xf32, #tpu.memory_space<smem>>
    %92 = vector.broadcast %91 : f32 to vector<8x256xf32>
    %93 = arith.mulf %92, %2 : vector<8x256xf32>
    %c2_34 = arith.constant 2 : index
    %c1_35 = arith.constant 1 : index
    %94 = memref.load %arg2[%c2_34, %c1_35] : memref<8x9xf32, #tpu.memory_space<smem>>
    %95 = vector.broadcast %94 : f32 to vector<8x256xf32>
    %96 = arith.mulf %95, %3 : vector<8x256xf32>
    %97 = arith.addf %93, %96 : vector<8x256xf32>
    %c2_36 = arith.constant 2 : index
    %c2_37 = arith.constant 2 : index
    %98 = memref.load %arg2[%c2_36, %c2_37] : memref<8x9xf32, #tpu.memory_space<smem>>
    %99 = vector.broadcast %98 : f32 to vector<8x256xf32>
    %100 = arith.mulf %99, %4 : vector<8x256xf32>
    %101 = arith.addf %97, %100 : vector<8x256xf32>
    %c2_38 = arith.constant 2 : index
    %c3_39 = arith.constant 3 : index
    %102 = memref.load %arg2[%c2_38, %c3_39] : memref<8x9xf32, #tpu.memory_space<smem>>
    %103 = vector.broadcast %102 : f32 to vector<8x256xf32>
    %104 = arith.mulf %103, %5 : vector<8x256xf32>
    %105 = arith.addf %101, %104 : vector<8x256xf32>
    %c2_40 = arith.constant 2 : index
    %c4_41 = arith.constant 4 : index
    %106 = memref.load %arg2[%c2_40, %c4_41] : memref<8x9xf32, #tpu.memory_space<smem>>
    %107 = vector.broadcast %106 : f32 to vector<8x256xf32>
    %108 = arith.mulf %107, %6 : vector<8x256xf32>
    %109 = arith.addf %105, %108 : vector<8x256xf32>
    %c2_42 = arith.constant 2 : index
    %c5_43 = arith.constant 5 : index
    %110 = memref.load %arg2[%c2_42, %c5_43] : memref<8x9xf32, #tpu.memory_space<smem>>
    %111 = vector.broadcast %110 : f32 to vector<8x256xf32>
    %112 = arith.mulf %111, %7 : vector<8x256xf32>
    %113 = arith.addf %109, %112 : vector<8x256xf32>
    %c2_44 = arith.constant 2 : index
    %c6_45 = arith.constant 6 : index
    %114 = memref.load %arg2[%c2_44, %c6_45] : memref<8x9xf32, #tpu.memory_space<smem>>
    %115 = vector.broadcast %114 : f32 to vector<8x256xf32>
    %116 = arith.mulf %115, %8 : vector<8x256xf32>
    %117 = arith.addf %113, %116 : vector<8x256xf32>
    %c2_46 = arith.constant 2 : index
    %c7_47 = arith.constant 7 : index
    %118 = memref.load %arg2[%c2_46, %c7_47] : memref<8x9xf32, #tpu.memory_space<smem>>
    %119 = vector.broadcast %118 : f32 to vector<8x256xf32>
    %120 = arith.mulf %119, %9 : vector<8x256xf32>
    %121 = arith.addf %117, %120 : vector<8x256xf32>
    %c2_48 = arith.constant 2 : index
    %c8_49 = arith.constant 8 : index
    %122 = memref.load %arg2[%c2_48, %c8_49] : memref<8x9xf32, #tpu.memory_space<smem>>
    %123 = vector.broadcast %122 : f32 to vector<8x256xf32>
    %124 = arith.mulf %123, %10 : vector<8x256xf32>
    %125 = arith.addf %121, %124 : vector<8x256xf32>
    %c2_50 = arith.constant 2 : index
    %126 = memref.load %arg3[%c2_50] : memref<8xf32, #tpu.memory_space<smem>>
    %127 = vector.broadcast %126 : f32 to vector<8x256xf32>
    %128 = arith.addf %125, %127 : vector<8x256xf32>
    %cst_51 = arith.constant 0.000000e+00 : f32
    %129 = vector.broadcast %cst_51 : f32 to vector<8x256xf32>
    %130 = arith.maximumf %128, %129 : vector<8x256xf32>
    %c3_52 = arith.constant 3 : index
    %c0_53 = arith.constant 0 : index
    %131 = memref.load %arg2[%c3_52, %c0_53] : memref<8x9xf32, #tpu.memory_space<smem>>
    %132 = vector.broadcast %131 : f32 to vector<8x256xf32>
    %133 = arith.mulf %132, %2 : vector<8x256xf32>
    %c3_54 = arith.constant 3 : index
    %c1_55 = arith.constant 1 : index
    %134 = memref.load %arg2[%c3_54, %c1_55] : memref<8x9xf32, #tpu.memory_space<smem>>
    %135 = vector.broadcast %134 : f32 to vector<8x256xf32>
    %136 = arith.mulf %135, %3 : vector<8x256xf32>
    %137 = arith.addf %133, %136 : vector<8x256xf32>
    %c3_56 = arith.constant 3 : index
    %c2_57 = arith.constant 2 : index
    %138 = memref.load %arg2[%c3_56, %c2_57] : memref<8x9xf32, #tpu.memory_space<smem>>
    %139 = vector.broadcast %138 : f32 to vector<8x256xf32>
    %140 = arith.mulf %139, %4 : vector<8x256xf32>
    %141 = arith.addf %137, %140 : vector<8x256xf32>
    %c3_58 = arith.constant 3 : index
    %c3_59 = arith.constant 3 : index
    %142 = memref.load %arg2[%c3_58, %c3_59] : memref<8x9xf32, #tpu.memory_space<smem>>
    %143 = vector.broadcast %142 : f32 to vector<8x256xf32>
    %144 = arith.mulf %143, %5 : vector<8x256xf32>
    %145 = arith.addf %141, %144 : vector<8x256xf32>
    %c3_60 = arith.constant 3 : index
    %c4_61 = arith.constant 4 : index
    %146 = memref.load %arg2[%c3_60, %c4_61] : memref<8x9xf32, #tpu.memory_space<smem>>
    %147 = vector.broadcast %146 : f32 to vector<8x256xf32>
    %148 = arith.mulf %147, %6 : vector<8x256xf32>
    %149 = arith.addf %145, %148 : vector<8x256xf32>
    %c3_62 = arith.constant 3 : index
    %c5_63 = arith.constant 5 : index
    %150 = memref.load %arg2[%c3_62, %c5_63] : memref<8x9xf32, #tpu.memory_space<smem>>
    %151 = vector.broadcast %150 : f32 to vector<8x256xf32>
    %152 = arith.mulf %151, %7 : vector<8x256xf32>
    %153 = arith.addf %149, %152 : vector<8x256xf32>
    %c3_64 = arith.constant 3 : index
    %c6_65 = arith.constant 6 : index
    %154 = memref.load %arg2[%c3_64, %c6_65] : memref<8x9xf32, #tpu.memory_space<smem>>
    %155 = vector.broadcast %154 : f32 to vector<8x256xf32>
    %156 = arith.mulf %155, %8 : vector<8x256xf32>
    %157 = arith.addf %153, %156 : vector<8x256xf32>
    %c3_66 = arith.constant 3 : index
    %c7_67 = arith.constant 7 : index
    %158 = memref.load %arg2[%c3_66, %c7_67] : memref<8x9xf32, #tpu.memory_space<smem>>
    %159 = vector.broadcast %158 : f32 to vector<8x256xf32>
    %160 = arith.mulf %159, %9 : vector<8x256xf32>
    %161 = arith.addf %157, %160 : vector<8x256xf32>
    %c3_68 = arith.constant 3 : index
    %c8_69 = arith.constant 8 : index
    %162 = memref.load %arg2[%c3_68, %c8_69] : memref<8x9xf32, #tpu.memory_space<smem>>
    %163 = vector.broadcast %162 : f32 to vector<8x256xf32>
    %164 = arith.mulf %163, %10 : vector<8x256xf32>
    %165 = arith.addf %161, %164 : vector<8x256xf32>
    %c3_70 = arith.constant 3 : index
    %166 = memref.load %arg3[%c3_70] : memref<8xf32, #tpu.memory_space<smem>>
    %167 = vector.broadcast %166 : f32 to vector<8x256xf32>
    %168 = arith.addf %165, %167 : vector<8x256xf32>
    %cst_71 = arith.constant 0.000000e+00 : f32
    %169 = vector.broadcast %cst_71 : f32 to vector<8x256xf32>
    %170 = arith.maximumf %168, %169 : vector<8x256xf32>
    %c4_72 = arith.constant 4 : index
    %c0_73 = arith.constant 0 : index
    %171 = memref.load %arg2[%c4_72, %c0_73] : memref<8x9xf32, #tpu.memory_space<smem>>
    %172 = vector.broadcast %171 : f32 to vector<8x256xf32>
    %173 = arith.mulf %172, %2 : vector<8x256xf32>
    %c4_74 = arith.constant 4 : index
    %c1_75 = arith.constant 1 : index
    %174 = memref.load %arg2[%c4_74, %c1_75] : memref<8x9xf32, #tpu.memory_space<smem>>
    %175 = vector.broadcast %174 : f32 to vector<8x256xf32>
    %176 = arith.mulf %175, %3 : vector<8x256xf32>
    %177 = arith.addf %173, %176 : vector<8x256xf32>
    %c4_76 = arith.constant 4 : index
    %c2_77 = arith.constant 2 : index
    %178 = memref.load %arg2[%c4_76, %c2_77] : memref<8x9xf32, #tpu.memory_space<smem>>
    %179 = vector.broadcast %178 : f32 to vector<8x256xf32>
    %180 = arith.mulf %179, %4 : vector<8x256xf32>
    %181 = arith.addf %177, %180 : vector<8x256xf32>
    %c4_78 = arith.constant 4 : index
    %c3_79 = arith.constant 3 : index
    %182 = memref.load %arg2[%c4_78, %c3_79] : memref<8x9xf32, #tpu.memory_space<smem>>
    %183 = vector.broadcast %182 : f32 to vector<8x256xf32>
    %184 = arith.mulf %183, %5 : vector<8x256xf32>
    %185 = arith.addf %181, %184 : vector<8x256xf32>
    %c4_80 = arith.constant 4 : index
    %c4_81 = arith.constant 4 : index
    %186 = memref.load %arg2[%c4_80, %c4_81] : memref<8x9xf32, #tpu.memory_space<smem>>
    %187 = vector.broadcast %186 : f32 to vector<8x256xf32>
    %188 = arith.mulf %187, %6 : vector<8x256xf32>
    %189 = arith.addf %185, %188 : vector<8x256xf32>
    %c4_82 = arith.constant 4 : index
    %c5_83 = arith.constant 5 : index
    %190 = memref.load %arg2[%c4_82, %c5_83] : memref<8x9xf32, #tpu.memory_space<smem>>
    %191 = vector.broadcast %190 : f32 to vector<8x256xf32>
    %192 = arith.mulf %191, %7 : vector<8x256xf32>
    %193 = arith.addf %189, %192 : vector<8x256xf32>
    %c4_84 = arith.constant 4 : index
    %c6_85 = arith.constant 6 : index
    %194 = memref.load %arg2[%c4_84, %c6_85] : memref<8x9xf32, #tpu.memory_space<smem>>
    %195 = vector.broadcast %194 : f32 to vector<8x256xf32>
    %196 = arith.mulf %195, %8 : vector<8x256xf32>
    %197 = arith.addf %193, %196 : vector<8x256xf32>
    %c4_86 = arith.constant 4 : index
    %c7_87 = arith.constant 7 : index
    %198 = memref.load %arg2[%c4_86, %c7_87] : memref<8x9xf32, #tpu.memory_space<smem>>
    %199 = vector.broadcast %198 : f32 to vector<8x256xf32>
    %200 = arith.mulf %199, %9 : vector<8x256xf32>
    %201 = arith.addf %197, %200 : vector<8x256xf32>
    %c4_88 = arith.constant 4 : index
    %c8_89 = arith.constant 8 : index
    %202 = memref.load %arg2[%c4_88, %c8_89] : memref<8x9xf32, #tpu.memory_space<smem>>
    %203 = vector.broadcast %202 : f32 to vector<8x256xf32>
    %204 = arith.mulf %203, %10 : vector<8x256xf32>
    %205 = arith.addf %201, %204 : vector<8x256xf32>
    %c4_90 = arith.constant 4 : index
    %206 = memref.load %arg3[%c4_90] : memref<8xf32, #tpu.memory_space<smem>>
    %207 = vector.broadcast %206 : f32 to vector<8x256xf32>
    %208 = arith.addf %205, %207 : vector<8x256xf32>
    %cst_91 = arith.constant 0.000000e+00 : f32
    %209 = vector.broadcast %cst_91 : f32 to vector<8x256xf32>
    %210 = arith.maximumf %208, %209 : vector<8x256xf32>
    %c5_92 = arith.constant 5 : index
    %c0_93 = arith.constant 0 : index
    %211 = memref.load %arg2[%c5_92, %c0_93] : memref<8x9xf32, #tpu.memory_space<smem>>
    %212 = vector.broadcast %211 : f32 to vector<8x256xf32>
    %213 = arith.mulf %212, %2 : vector<8x256xf32>
    %c5_94 = arith.constant 5 : index
    %c1_95 = arith.constant 1 : index
    %214 = memref.load %arg2[%c5_94, %c1_95] : memref<8x9xf32, #tpu.memory_space<smem>>
    %215 = vector.broadcast %214 : f32 to vector<8x256xf32>
    %216 = arith.mulf %215, %3 : vector<8x256xf32>
    %217 = arith.addf %213, %216 : vector<8x256xf32>
    %c5_96 = arith.constant 5 : index
    %c2_97 = arith.constant 2 : index
    %218 = memref.load %arg2[%c5_96, %c2_97] : memref<8x9xf32, #tpu.memory_space<smem>>
    %219 = vector.broadcast %218 : f32 to vector<8x256xf32>
    %220 = arith.mulf %219, %4 : vector<8x256xf32>
    %221 = arith.addf %217, %220 : vector<8x256xf32>
    %c5_98 = arith.constant 5 : index
    %c3_99 = arith.constant 3 : index
    %222 = memref.load %arg2[%c5_98, %c3_99] : memref<8x9xf32, #tpu.memory_space<smem>>
    %223 = vector.broadcast %222 : f32 to vector<8x256xf32>
    %224 = arith.mulf %223, %5 : vector<8x256xf32>
    %225 = arith.addf %221, %224 : vector<8x256xf32>
    %c5_100 = arith.constant 5 : index
    %c4_101 = arith.constant 4 : index
    %226 = memref.load %arg2[%c5_100, %c4_101] : memref<8x9xf32, #tpu.memory_space<smem>>
    %227 = vector.broadcast %226 : f32 to vector<8x256xf32>
    %228 = arith.mulf %227, %6 : vector<8x256xf32>
    %229 = arith.addf %225, %228 : vector<8x256xf32>
    %c5_102 = arith.constant 5 : index
    %c5_103 = arith.constant 5 : index
    %230 = memref.load %arg2[%c5_102, %c5_103] : memref<8x9xf32, #tpu.memory_space<smem>>
    %231 = vector.broadcast %230 : f32 to vector<8x256xf32>
    %232 = arith.mulf %231, %7 : vector<8x256xf32>
    %233 = arith.addf %229, %232 : vector<8x256xf32>
    %c5_104 = arith.constant 5 : index
    %c6_105 = arith.constant 6 : index
    %234 = memref.load %arg2[%c5_104, %c6_105] : memref<8x9xf32, #tpu.memory_space<smem>>
    %235 = vector.broadcast %234 : f32 to vector<8x256xf32>
    %236 = arith.mulf %235, %8 : vector<8x256xf32>
    %237 = arith.addf %233, %236 : vector<8x256xf32>
    %c5_106 = arith.constant 5 : index
    %c7_107 = arith.constant 7 : index
    %238 = memref.load %arg2[%c5_106, %c7_107] : memref<8x9xf32, #tpu.memory_space<smem>>
    %239 = vector.broadcast %238 : f32 to vector<8x256xf32>
    %240 = arith.mulf %239, %9 : vector<8x256xf32>
    %241 = arith.addf %237, %240 : vector<8x256xf32>
    %c5_108 = arith.constant 5 : index
    %c8_109 = arith.constant 8 : index
    %242 = memref.load %arg2[%c5_108, %c8_109] : memref<8x9xf32, #tpu.memory_space<smem>>
    %243 = vector.broadcast %242 : f32 to vector<8x256xf32>
    %244 = arith.mulf %243, %10 : vector<8x256xf32>
    %245 = arith.addf %241, %244 : vector<8x256xf32>
    %c5_110 = arith.constant 5 : index
    %246 = memref.load %arg3[%c5_110] : memref<8xf32, #tpu.memory_space<smem>>
    %247 = vector.broadcast %246 : f32 to vector<8x256xf32>
    %248 = arith.addf %245, %247 : vector<8x256xf32>
    %cst_111 = arith.constant 0.000000e+00 : f32
    %249 = vector.broadcast %cst_111 : f32 to vector<8x256xf32>
    %250 = arith.maximumf %248, %249 : vector<8x256xf32>
    %c6_112 = arith.constant 6 : index
    %c0_113 = arith.constant 0 : index
    %251 = memref.load %arg2[%c6_112, %c0_113] : memref<8x9xf32, #tpu.memory_space<smem>>
    %252 = vector.broadcast %251 : f32 to vector<8x256xf32>
    %253 = arith.mulf %252, %2 : vector<8x256xf32>
    %c6_114 = arith.constant 6 : index
    %c1_115 = arith.constant 1 : index
    %254 = memref.load %arg2[%c6_114, %c1_115] : memref<8x9xf32, #tpu.memory_space<smem>>
    %255 = vector.broadcast %254 : f32 to vector<8x256xf32>
    %256 = arith.mulf %255, %3 : vector<8x256xf32>
    %257 = arith.addf %253, %256 : vector<8x256xf32>
    %c6_116 = arith.constant 6 : index
    %c2_117 = arith.constant 2 : index
    %258 = memref.load %arg2[%c6_116, %c2_117] : memref<8x9xf32, #tpu.memory_space<smem>>
    %259 = vector.broadcast %258 : f32 to vector<8x256xf32>
    %260 = arith.mulf %259, %4 : vector<8x256xf32>
    %261 = arith.addf %257, %260 : vector<8x256xf32>
    %c6_118 = arith.constant 6 : index
    %c3_119 = arith.constant 3 : index
    %262 = memref.load %arg2[%c6_118, %c3_119] : memref<8x9xf32, #tpu.memory_space<smem>>
    %263 = vector.broadcast %262 : f32 to vector<8x256xf32>
    %264 = arith.mulf %263, %5 : vector<8x256xf32>
    %265 = arith.addf %261, %264 : vector<8x256xf32>
    %c6_120 = arith.constant 6 : index
    %c4_121 = arith.constant 4 : index
    %266 = memref.load %arg2[%c6_120, %c4_121] : memref<8x9xf32, #tpu.memory_space<smem>>
    %267 = vector.broadcast %266 : f32 to vector<8x256xf32>
    %268 = arith.mulf %267, %6 : vector<8x256xf32>
    %269 = arith.addf %265, %268 : vector<8x256xf32>
    %c6_122 = arith.constant 6 : index
    %c5_123 = arith.constant 5 : index
    %270 = memref.load %arg2[%c6_122, %c5_123] : memref<8x9xf32, #tpu.memory_space<smem>>
    %271 = vector.broadcast %270 : f32 to vector<8x256xf32>
    %272 = arith.mulf %271, %7 : vector<8x256xf32>
    %273 = arith.addf %269, %272 : vector<8x256xf32>
    %c6_124 = arith.constant 6 : index
    %c6_125 = arith.constant 6 : index
    %274 = memref.load %arg2[%c6_124, %c6_125] : memref<8x9xf32, #tpu.memory_space<smem>>
    %275 = vector.broadcast %274 : f32 to vector<8x256xf32>
    %276 = arith.mulf %275, %8 : vector<8x256xf32>
    %277 = arith.addf %273, %276 : vector<8x256xf32>
    %c6_126 = arith.constant 6 : index
    %c7_127 = arith.constant 7 : index
    %278 = memref.load %arg2[%c6_126, %c7_127] : memref<8x9xf32, #tpu.memory_space<smem>>
    %279 = vector.broadcast %278 : f32 to vector<8x256xf32>
    %280 = arith.mulf %279, %9 : vector<8x256xf32>
    %281 = arith.addf %277, %280 : vector<8x256xf32>
    %c6_128 = arith.constant 6 : index
    %c8_129 = arith.constant 8 : index
    %282 = memref.load %arg2[%c6_128, %c8_129] : memref<8x9xf32, #tpu.memory_space<smem>>
    %283 = vector.broadcast %282 : f32 to vector<8x256xf32>
    %284 = arith.mulf %283, %10 : vector<8x256xf32>
    %285 = arith.addf %281, %284 : vector<8x256xf32>
    %c6_130 = arith.constant 6 : index
    %286 = memref.load %arg3[%c6_130] : memref<8xf32, #tpu.memory_space<smem>>
    %287 = vector.broadcast %286 : f32 to vector<8x256xf32>
    %288 = arith.addf %285, %287 : vector<8x256xf32>
    %cst_131 = arith.constant 0.000000e+00 : f32
    %289 = vector.broadcast %cst_131 : f32 to vector<8x256xf32>
    %290 = arith.maximumf %288, %289 : vector<8x256xf32>
    %c7_132 = arith.constant 7 : index
    %c0_133 = arith.constant 0 : index
    %291 = memref.load %arg2[%c7_132, %c0_133] : memref<8x9xf32, #tpu.memory_space<smem>>
    %292 = vector.broadcast %291 : f32 to vector<8x256xf32>
    %293 = arith.mulf %292, %2 : vector<8x256xf32>
    %c7_134 = arith.constant 7 : index
    %c1_135 = arith.constant 1 : index
    %294 = memref.load %arg2[%c7_134, %c1_135] : memref<8x9xf32, #tpu.memory_space<smem>>
    %295 = vector.broadcast %294 : f32 to vector<8x256xf32>
    %296 = arith.mulf %295, %3 : vector<8x256xf32>
    %297 = arith.addf %293, %296 : vector<8x256xf32>
    %c7_136 = arith.constant 7 : index
    %c2_137 = arith.constant 2 : index
    %298 = memref.load %arg2[%c7_136, %c2_137] : memref<8x9xf32, #tpu.memory_space<smem>>
    %299 = vector.broadcast %298 : f32 to vector<8x256xf32>
    %300 = arith.mulf %299, %4 : vector<8x256xf32>
    %301 = arith.addf %297, %300 : vector<8x256xf32>
    %c7_138 = arith.constant 7 : index
    %c3_139 = arith.constant 3 : index
    %302 = memref.load %arg2[%c7_138, %c3_139] : memref<8x9xf32, #tpu.memory_space<smem>>
    %303 = vector.broadcast %302 : f32 to vector<8x256xf32>
    %304 = arith.mulf %303, %5 : vector<8x256xf32>
    %305 = arith.addf %301, %304 : vector<8x256xf32>
    %c7_140 = arith.constant 7 : index
    %c4_141 = arith.constant 4 : index
    %306 = memref.load %arg2[%c7_140, %c4_141] : memref<8x9xf32, #tpu.memory_space<smem>>
    %307 = vector.broadcast %306 : f32 to vector<8x256xf32>
    %308 = arith.mulf %307, %6 : vector<8x256xf32>
    %309 = arith.addf %305, %308 : vector<8x256xf32>
    %c7_142 = arith.constant 7 : index
    %c5_143 = arith.constant 5 : index
    %310 = memref.load %arg2[%c7_142, %c5_143] : memref<8x9xf32, #tpu.memory_space<smem>>
    %311 = vector.broadcast %310 : f32 to vector<8x256xf32>
    %312 = arith.mulf %311, %7 : vector<8x256xf32>
    %313 = arith.addf %309, %312 : vector<8x256xf32>
    %c7_144 = arith.constant 7 : index
    %c6_145 = arith.constant 6 : index
    %314 = memref.load %arg2[%c7_144, %c6_145] : memref<8x9xf32, #tpu.memory_space<smem>>
    %315 = vector.broadcast %314 : f32 to vector<8x256xf32>
    %316 = arith.mulf %315, %8 : vector<8x256xf32>
    %317 = arith.addf %313, %316 : vector<8x256xf32>
    %c7_146 = arith.constant 7 : index
    %c7_147 = arith.constant 7 : index
    %318 = memref.load %arg2[%c7_146, %c7_147] : memref<8x9xf32, #tpu.memory_space<smem>>
    %319 = vector.broadcast %318 : f32 to vector<8x256xf32>
    %320 = arith.mulf %319, %9 : vector<8x256xf32>
    %321 = arith.addf %317, %320 : vector<8x256xf32>
    %c7_148 = arith.constant 7 : index
    %c8_149 = arith.constant 8 : index
    %322 = memref.load %arg2[%c7_148, %c8_149] : memref<8x9xf32, #tpu.memory_space<smem>>
    %323 = vector.broadcast %322 : f32 to vector<8x256xf32>
    %324 = arith.mulf %323, %10 : vector<8x256xf32>
    %325 = arith.addf %321, %324 : vector<8x256xf32>
    %c7_150 = arith.constant 7 : index
    %326 = memref.load %arg3[%c7_150] : memref<8xf32, #tpu.memory_space<smem>>
    %327 = vector.broadcast %326 : f32 to vector<8x256xf32>
    %328 = arith.addf %325, %327 : vector<8x256xf32>
    %cst_151 = arith.constant 0.000000e+00 : f32
    %329 = vector.broadcast %cst_151 : f32 to vector<8x256xf32>
    %330 = arith.maximumf %328, %329 : vector<8x256xf32>
    %331 = vector.extract_strided_slice %50 {offsets = [0, 0], sizes = [8, 192], strides = [1, 1]} : vector<8x256xf32> to vector<8x192xf32>
    %332 = vector.extract_strided_slice %90 {offsets = [0, 0], sizes = [8, 192], strides = [1, 1]} : vector<8x256xf32> to vector<8x192xf32>
    %333 = vector.extract_strided_slice %130 {offsets = [0, 0], sizes = [8, 192], strides = [1, 1]} : vector<8x256xf32> to vector<8x192xf32>
    %334 = vector.extract_strided_slice %170 {offsets = [0, 0], sizes = [8, 192], strides = [1, 1]} : vector<8x256xf32> to vector<8x192xf32>
    %335 = vector.extract_strided_slice %210 {offsets = [0, 0], sizes = [8, 192], strides = [1, 1]} : vector<8x256xf32> to vector<8x192xf32>
    %336 = vector.extract_strided_slice %250 {offsets = [0, 0], sizes = [8, 192], strides = [1, 1]} : vector<8x256xf32> to vector<8x192xf32>
    %337 = vector.extract_strided_slice %290 {offsets = [0, 0], sizes = [8, 192], strides = [1, 1]} : vector<8x256xf32> to vector<8x192xf32>
    %338 = vector.extract_strided_slice %330 {offsets = [0, 0], sizes = [8, 192], strides = [1, 1]} : vector<8x256xf32> to vector<8x192xf32>
    %339 = vector.extract_strided_slice %50 {offsets = [0, 1], sizes = [8, 192], strides = [1, 1]} : vector<8x256xf32> to vector<8x192xf32>
    %340 = vector.extract_strided_slice %90 {offsets = [0, 1], sizes = [8, 192], strides = [1, 1]} : vector<8x256xf32> to vector<8x192xf32>
    %341 = vector.extract_strided_slice %130 {offsets = [0, 1], sizes = [8, 192], strides = [1, 1]} : vector<8x256xf32> to vector<8x192xf32>
    %342 = vector.extract_strided_slice %170 {offsets = [0, 1], sizes = [8, 192], strides = [1, 1]} : vector<8x256xf32> to vector<8x192xf32>
    %343 = vector.extract_strided_slice %210 {offsets = [0, 1], sizes = [8, 192], strides = [1, 1]} : vector<8x256xf32> to vector<8x192xf32>
    %344 = vector.extract_strided_slice %250 {offsets = [0, 1], sizes = [8, 192], strides = [1, 1]} : vector<8x256xf32> to vector<8x192xf32>
    %345 = vector.extract_strided_slice %290 {offsets = [0, 1], sizes = [8, 192], strides = [1, 1]} : vector<8x256xf32> to vector<8x192xf32>
    %346 = vector.extract_strided_slice %330 {offsets = [0, 1], sizes = [8, 192], strides = [1, 1]} : vector<8x256xf32> to vector<8x192xf32>
    %347 = vector.extract_strided_slice %50 {offsets = [0, 2], sizes = [8, 192], strides = [1, 1]} : vector<8x256xf32> to vector<8x192xf32>
    %348 = vector.extract_strided_slice %90 {offsets = [0, 2], sizes = [8, 192], strides = [1, 1]} : vector<8x256xf32> to vector<8x192xf32>
    %349 = vector.extract_strided_slice %130 {offsets = [0, 2], sizes = [8, 192], strides = [1, 1]} : vector<8x256xf32> to vector<8x192xf32>
    %350 = vector.extract_strided_slice %170 {offsets = [0, 2], sizes = [8, 192], strides = [1, 1]} : vector<8x256xf32> to vector<8x192xf32>
    %351 = vector.extract_strided_slice %210 {offsets = [0, 2], sizes = [8, 192], strides = [1, 1]} : vector<8x256xf32> to vector<8x192xf32>
    %352 = vector.extract_strided_slice %250 {offsets = [0, 2], sizes = [8, 192], strides = [1, 1]} : vector<8x256xf32> to vector<8x192xf32>
    %353 = vector.extract_strided_slice %290 {offsets = [0, 2], sizes = [8, 192], strides = [1, 1]} : vector<8x256xf32> to vector<8x192xf32>
    %354 = vector.extract_strided_slice %330 {offsets = [0, 2], sizes = [8, 192], strides = [1, 1]} : vector<8x256xf32> to vector<8x192xf32>
    %355 = vector.extract_strided_slice %50 {offsets = [0, 16], sizes = [8, 192], strides = [1, 1]} : vector<8x256xf32> to vector<8x192xf32>
    %356 = vector.extract_strided_slice %90 {offsets = [0, 16], sizes = [8, 192], strides = [1, 1]} : vector<8x256xf32> to vector<8x192xf32>
    %357 = vector.extract_strided_slice %130 {offsets = [0, 16], sizes = [8, 192], strides = [1, 1]} : vector<8x256xf32> to vector<8x192xf32>
    %358 = vector.extract_strided_slice %170 {offsets = [0, 16], sizes = [8, 192], strides = [1, 1]} : vector<8x256xf32> to vector<8x192xf32>
    %359 = vector.extract_strided_slice %210 {offsets = [0, 16], sizes = [8, 192], strides = [1, 1]} : vector<8x256xf32> to vector<8x192xf32>
    %360 = vector.extract_strided_slice %250 {offsets = [0, 16], sizes = [8, 192], strides = [1, 1]} : vector<8x256xf32> to vector<8x192xf32>
    %361 = vector.extract_strided_slice %290 {offsets = [0, 16], sizes = [8, 192], strides = [1, 1]} : vector<8x256xf32> to vector<8x192xf32>
    %362 = vector.extract_strided_slice %330 {offsets = [0, 16], sizes = [8, 192], strides = [1, 1]} : vector<8x256xf32> to vector<8x192xf32>
    %363 = vector.extract_strided_slice %50 {offsets = [0, 17], sizes = [8, 192], strides = [1, 1]} : vector<8x256xf32> to vector<8x192xf32>
    %364 = vector.extract_strided_slice %90 {offsets = [0, 17], sizes = [8, 192], strides = [1, 1]} : vector<8x256xf32> to vector<8x192xf32>
    %365 = vector.extract_strided_slice %130 {offsets = [0, 17], sizes = [8, 192], strides = [1, 1]} : vector<8x256xf32> to vector<8x192xf32>
    %366 = vector.extract_strided_slice %170 {offsets = [0, 17], sizes = [8, 192], strides = [1, 1]} : vector<8x256xf32> to vector<8x192xf32>
    %367 = vector.extract_strided_slice %210 {offsets = [0, 17], sizes = [8, 192], strides = [1, 1]} : vector<8x256xf32> to vector<8x192xf32>
    %368 = vector.extract_strided_slice %250 {offsets = [0, 17], sizes = [8, 192], strides = [1, 1]} : vector<8x256xf32> to vector<8x192xf32>
    %369 = vector.extract_strided_slice %290 {offsets = [0, 17], sizes = [8, 192], strides = [1, 1]} : vector<8x256xf32> to vector<8x192xf32>
    %370 = vector.extract_strided_slice %330 {offsets = [0, 17], sizes = [8, 192], strides = [1, 1]} : vector<8x256xf32> to vector<8x192xf32>
    %371 = vector.extract_strided_slice %50 {offsets = [0, 18], sizes = [8, 192], strides = [1, 1]} : vector<8x256xf32> to vector<8x192xf32>
    %372 = vector.extract_strided_slice %90 {offsets = [0, 18], sizes = [8, 192], strides = [1, 1]} : vector<8x256xf32> to vector<8x192xf32>
    %373 = vector.extract_strided_slice %130 {offsets = [0, 18], sizes = [8, 192], strides = [1, 1]} : vector<8x256xf32> to vector<8x192xf32>
    %374 = vector.extract_strided_slice %170 {offsets = [0, 18], sizes = [8, 192], strides = [1, 1]} : vector<8x256xf32> to vector<8x192xf32>
    %375 = vector.extract_strided_slice %210 {offsets = [0, 18], sizes = [8, 192], strides = [1, 1]} : vector<8x256xf32> to vector<8x192xf32>
    %376 = vector.extract_strided_slice %250 {offsets = [0, 18], sizes = [8, 192], strides = [1, 1]} : vector<8x256xf32> to vector<8x192xf32>
    %377 = vector.extract_strided_slice %290 {offsets = [0, 18], sizes = [8, 192], strides = [1, 1]} : vector<8x256xf32> to vector<8x192xf32>
    %378 = vector.extract_strided_slice %330 {offsets = [0, 18], sizes = [8, 192], strides = [1, 1]} : vector<8x256xf32> to vector<8x192xf32>
    %379 = vector.extract_strided_slice %50 {offsets = [0, 32], sizes = [8, 192], strides = [1, 1]} : vector<8x256xf32> to vector<8x192xf32>
    %380 = vector.extract_strided_slice %90 {offsets = [0, 32], sizes = [8, 192], strides = [1, 1]} : vector<8x256xf32> to vector<8x192xf32>
    %381 = vector.extract_strided_slice %130 {offsets = [0, 32], sizes = [8, 192], strides = [1, 1]} : vector<8x256xf32> to vector<8x192xf32>
    %382 = vector.extract_strided_slice %170 {offsets = [0, 32], sizes = [8, 192], strides = [1, 1]} : vector<8x256xf32> to vector<8x192xf32>
    %383 = vector.extract_strided_slice %210 {offsets = [0, 32], sizes = [8, 192], strides = [1, 1]} : vector<8x256xf32> to vector<8x192xf32>
    %384 = vector.extract_strided_slice %250 {offsets = [0, 32], sizes = [8, 192], strides = [1, 1]} : vector<8x256xf32> to vector<8x192xf32>
    %385 = vector.extract_strided_slice %290 {offsets = [0, 32], sizes = [8, 192], strides = [1, 1]} : vector<8x256xf32> to vector<8x192xf32>
    %386 = vector.extract_strided_slice %330 {offsets = [0, 32], sizes = [8, 192], strides = [1, 1]} : vector<8x256xf32> to vector<8x192xf32>
    %387 = vector.extract_strided_slice %50 {offsets = [0, 33], sizes = [8, 192], strides = [1, 1]} : vector<8x256xf32> to vector<8x192xf32>
    %388 = vector.extract_strided_slice %90 {offsets = [0, 33], sizes = [8, 192], strides = [1, 1]} : vector<8x256xf32> to vector<8x192xf32>
    %389 = vector.extract_strided_slice %130 {offsets = [0, 33], sizes = [8, 192], strides = [1, 1]} : vector<8x256xf32> to vector<8x192xf32>
    %390 = vector.extract_strided_slice %170 {offsets = [0, 33], sizes = [8, 192], strides = [1, 1]} : vector<8x256xf32> to vector<8x192xf32>
    %391 = vector.extract_strided_slice %210 {offsets = [0, 33], sizes = [8, 192], strides = [1, 1]} : vector<8x256xf32> to vector<8x192xf32>
    %392 = vector.extract_strided_slice %250 {offsets = [0, 33], sizes = [8, 192], strides = [1, 1]} : vector<8x256xf32> to vector<8x192xf32>
    %393 = vector.extract_strided_slice %290 {offsets = [0, 33], sizes = [8, 192], strides = [1, 1]} : vector<8x256xf32> to vector<8x192xf32>
    %394 = vector.extract_strided_slice %330 {offsets = [0, 33], sizes = [8, 192], strides = [1, 1]} : vector<8x256xf32> to vector<8x192xf32>
    %395 = vector.extract_strided_slice %50 {offsets = [0, 34], sizes = [8, 192], strides = [1, 1]} : vector<8x256xf32> to vector<8x192xf32>
    %396 = vector.extract_strided_slice %90 {offsets = [0, 34], sizes = [8, 192], strides = [1, 1]} : vector<8x256xf32> to vector<8x192xf32>
    %397 = vector.extract_strided_slice %130 {offsets = [0, 34], sizes = [8, 192], strides = [1, 1]} : vector<8x256xf32> to vector<8x192xf32>
    %398 = vector.extract_strided_slice %170 {offsets = [0, 34], sizes = [8, 192], strides = [1, 1]} : vector<8x256xf32> to vector<8x192xf32>
    %399 = vector.extract_strided_slice %210 {offsets = [0, 34], sizes = [8, 192], strides = [1, 1]} : vector<8x256xf32> to vector<8x192xf32>
    %400 = vector.extract_strided_slice %250 {offsets = [0, 34], sizes = [8, 192], strides = [1, 1]} : vector<8x256xf32> to vector<8x192xf32>
    %401 = vector.extract_strided_slice %290 {offsets = [0, 34], sizes = [8, 192], strides = [1, 1]} : vector<8x256xf32> to vector<8x192xf32>
    %402 = vector.extract_strided_slice %330 {offsets = [0, 34], sizes = [8, 192], strides = [1, 1]} : vector<8x256xf32> to vector<8x192xf32>
    %cst_152 = arith.constant 0.000000e+00 : f32
    %403 = vector.broadcast %cst_152 : f32 to vector<8x128xf32>
    %c0_i32 = arith.constant 0 : i32
    %c16_i32 = arith.constant 16 : i32
    %404 = arith.addi %c0_i32, %c16_i32 : i32
    %c1_i32 = arith.constant 1 : i32
    %405 = scf.for %arg9 = %c0_i32 to %404 step %c1_i32 iter_args(%arg10 = %403) -> (vector<8x128xf32>)  : i32 {
      %410 = arith.index_cast %arg9 : i32 to index
      %c0_158 = arith.constant 0 : index
      %411 = memref.load %arg4[%410, %c0_158] : memref<16x72xf32, #tpu.memory_space<smem>>
      %412 = vector.broadcast %411 : f32 to vector<8x192xf32>
      %413 = arith.mulf %412, %331 : vector<8x192xf32>
      %414 = arith.index_cast %arg9 : i32 to index
      %c1_159 = arith.constant 1 : index
      %415 = memref.load %arg4[%414, %c1_159] : memref<16x72xf32, #tpu.memory_space<smem>>
      %416 = vector.broadcast %415 : f32 to vector<8x192xf32>
      %417 = arith.mulf %416, %339 : vector<8x192xf32>
      %418 = arith.addf %413, %417 : vector<8x192xf32>
      %419 = arith.index_cast %arg9 : i32 to index
      %c2_160 = arith.constant 2 : index
      %420 = memref.load %arg4[%419, %c2_160] : memref<16x72xf32, #tpu.memory_space<smem>>
      %421 = vector.broadcast %420 : f32 to vector<8x192xf32>
      %422 = arith.mulf %421, %347 : vector<8x192xf32>
      %423 = arith.addf %418, %422 : vector<8x192xf32>
      %424 = arith.index_cast %arg9 : i32 to index
      %c3_161 = arith.constant 3 : index
      %425 = memref.load %arg4[%424, %c3_161] : memref<16x72xf32, #tpu.memory_space<smem>>
      %426 = vector.broadcast %425 : f32 to vector<8x192xf32>
      %427 = arith.mulf %426, %355 : vector<8x192xf32>
      %428 = arith.addf %423, %427 : vector<8x192xf32>
      %429 = arith.index_cast %arg9 : i32 to index
      %c4_162 = arith.constant 4 : index
      %430 = memref.load %arg4[%429, %c4_162] : memref<16x72xf32, #tpu.memory_space<smem>>
      %431 = vector.broadcast %430 : f32 to vector<8x192xf32>
      %432 = arith.mulf %431, %363 : vector<8x192xf32>
      %433 = arith.addf %428, %432 : vector<8x192xf32>
      %434 = arith.index_cast %arg9 : i32 to index
      %c5_163 = arith.constant 5 : index
      %435 = memref.load %arg4[%434, %c5_163] : memref<16x72xf32, #tpu.memory_space<smem>>
      %436 = vector.broadcast %435 : f32 to vector<8x192xf32>
      %437 = arith.mulf %436, %371 : vector<8x192xf32>
      %438 = arith.addf %433, %437 : vector<8x192xf32>
      %439 = arith.index_cast %arg9 : i32 to index
      %c6_164 = arith.constant 6 : index
      %440 = memref.load %arg4[%439, %c6_164] : memref<16x72xf32, #tpu.memory_space<smem>>
      %441 = vector.broadcast %440 : f32 to vector<8x192xf32>
      %442 = arith.mulf %441, %379 : vector<8x192xf32>
      %443 = arith.addf %438, %442 : vector<8x192xf32>
      %444 = arith.index_cast %arg9 : i32 to index
      %c7_165 = arith.constant 7 : index
      %445 = memref.load %arg4[%444, %c7_165] : memref<16x72xf32, #tpu.memory_space<smem>>
      %446 = vector.broadcast %445 : f32 to vector<8x192xf32>
      %447 = arith.mulf %446, %387 : vector<8x192xf32>
      %448 = arith.addf %443, %447 : vector<8x192xf32>
      %449 = arith.index_cast %arg9 : i32 to index
      %c8_166 = arith.constant 8 : index
      %450 = memref.load %arg4[%449, %c8_166] : memref<16x72xf32, #tpu.memory_space<smem>>
      %451 = vector.broadcast %450 : f32 to vector<8x192xf32>
      %452 = arith.mulf %451, %395 : vector<8x192xf32>
      %453 = arith.addf %448, %452 : vector<8x192xf32>
      %454 = arith.index_cast %arg9 : i32 to index
      %c9 = arith.constant 9 : index
      %455 = memref.load %arg4[%454, %c9] : memref<16x72xf32, #tpu.memory_space<smem>>
      %456 = vector.broadcast %455 : f32 to vector<8x192xf32>
      %457 = arith.mulf %456, %332 : vector<8x192xf32>
      %458 = arith.addf %453, %457 : vector<8x192xf32>
      %459 = arith.index_cast %arg9 : i32 to index
      %c10 = arith.constant 10 : index
      %460 = memref.load %arg4[%459, %c10] : memref<16x72xf32, #tpu.memory_space<smem>>
      %461 = vector.broadcast %460 : f32 to vector<8x192xf32>
      %462 = arith.mulf %461, %340 : vector<8x192xf32>
      %463 = arith.addf %458, %462 : vector<8x192xf32>
      %464 = arith.index_cast %arg9 : i32 to index
      %c11 = arith.constant 11 : index
      %465 = memref.load %arg4[%464, %c11] : memref<16x72xf32, #tpu.memory_space<smem>>
      %466 = vector.broadcast %465 : f32 to vector<8x192xf32>
      %467 = arith.mulf %466, %348 : vector<8x192xf32>
      %468 = arith.addf %463, %467 : vector<8x192xf32>
      %469 = arith.index_cast %arg9 : i32 to index
      %c12 = arith.constant 12 : index
      %470 = memref.load %arg4[%469, %c12] : memref<16x72xf32, #tpu.memory_space<smem>>
      %471 = vector.broadcast %470 : f32 to vector<8x192xf32>
      %472 = arith.mulf %471, %356 : vector<8x192xf32>
      %473 = arith.addf %468, %472 : vector<8x192xf32>
      %474 = arith.index_cast %arg9 : i32 to index
      %c13 = arith.constant 13 : index
      %475 = memref.load %arg4[%474, %c13] : memref<16x72xf32, #tpu.memory_space<smem>>
      %476 = vector.broadcast %475 : f32 to vector<8x192xf32>
      %477 = arith.mulf %476, %364 : vector<8x192xf32>
      %478 = arith.addf %473, %477 : vector<8x192xf32>
      %479 = arith.index_cast %arg9 : i32 to index
      %c14 = arith.constant 14 : index
      %480 = memref.load %arg4[%479, %c14] : memref<16x72xf32, #tpu.memory_space<smem>>
      %481 = vector.broadcast %480 : f32 to vector<8x192xf32>
      %482 = arith.mulf %481, %372 : vector<8x192xf32>
      %483 = arith.addf %478, %482 : vector<8x192xf32>
      %484 = arith.index_cast %arg9 : i32 to index
      %c15 = arith.constant 15 : index
      %485 = memref.load %arg4[%484, %c15] : memref<16x72xf32, #tpu.memory_space<smem>>
      %486 = vector.broadcast %485 : f32 to vector<8x192xf32>
      %487 = arith.mulf %486, %380 : vector<8x192xf32>
      %488 = arith.addf %483, %487 : vector<8x192xf32>
      %489 = arith.index_cast %arg9 : i32 to index
      %c16 = arith.constant 16 : index
      %490 = memref.load %arg4[%489, %c16] : memref<16x72xf32, #tpu.memory_space<smem>>
      %491 = vector.broadcast %490 : f32 to vector<8x192xf32>
      %492 = arith.mulf %491, %388 : vector<8x192xf32>
      %493 = arith.addf %488, %492 : vector<8x192xf32>
      %494 = arith.index_cast %arg9 : i32 to index
      %c17 = arith.constant 17 : index
      %495 = memref.load %arg4[%494, %c17] : memref<16x72xf32, #tpu.memory_space<smem>>
      %496 = vector.broadcast %495 : f32 to vector<8x192xf32>
      %497 = arith.mulf %496, %396 : vector<8x192xf32>
      %498 = arith.addf %493, %497 : vector<8x192xf32>
      %499 = arith.index_cast %arg9 : i32 to index
      %c18 = arith.constant 18 : index
      %500 = memref.load %arg4[%499, %c18] : memref<16x72xf32, #tpu.memory_space<smem>>
      %501 = vector.broadcast %500 : f32 to vector<8x192xf32>
      %502 = arith.mulf %501, %333 : vector<8x192xf32>
      %503 = arith.addf %498, %502 : vector<8x192xf32>
      %504 = arith.index_cast %arg9 : i32 to index
      %c19 = arith.constant 19 : index
      %505 = memref.load %arg4[%504, %c19] : memref<16x72xf32, #tpu.memory_space<smem>>
      %506 = vector.broadcast %505 : f32 to vector<8x192xf32>
      %507 = arith.mulf %506, %341 : vector<8x192xf32>
      %508 = arith.addf %503, %507 : vector<8x192xf32>
      %509 = arith.index_cast %arg9 : i32 to index
      %c20 = arith.constant 20 : index
      %510 = memref.load %arg4[%509, %c20] : memref<16x72xf32, #tpu.memory_space<smem>>
      %511 = vector.broadcast %510 : f32 to vector<8x192xf32>
      %512 = arith.mulf %511, %349 : vector<8x192xf32>
      %513 = arith.addf %508, %512 : vector<8x192xf32>
      %514 = arith.index_cast %arg9 : i32 to index
      %c21 = arith.constant 21 : index
      %515 = memref.load %arg4[%514, %c21] : memref<16x72xf32, #tpu.memory_space<smem>>
      %516 = vector.broadcast %515 : f32 to vector<8x192xf32>
      %517 = arith.mulf %516, %357 : vector<8x192xf32>
      %518 = arith.addf %513, %517 : vector<8x192xf32>
      %519 = arith.index_cast %arg9 : i32 to index
      %c22 = arith.constant 22 : index
      %520 = memref.load %arg4[%519, %c22] : memref<16x72xf32, #tpu.memory_space<smem>>
      %521 = vector.broadcast %520 : f32 to vector<8x192xf32>
      %522 = arith.mulf %521, %365 : vector<8x192xf32>
      %523 = arith.addf %518, %522 : vector<8x192xf32>
      %524 = arith.index_cast %arg9 : i32 to index
      %c23 = arith.constant 23 : index
      %525 = memref.load %arg4[%524, %c23] : memref<16x72xf32, #tpu.memory_space<smem>>
      %526 = vector.broadcast %525 : f32 to vector<8x192xf32>
      %527 = arith.mulf %526, %373 : vector<8x192xf32>
      %528 = arith.addf %523, %527 : vector<8x192xf32>
      %529 = arith.index_cast %arg9 : i32 to index
      %c24 = arith.constant 24 : index
      %530 = memref.load %arg4[%529, %c24] : memref<16x72xf32, #tpu.memory_space<smem>>
      %531 = vector.broadcast %530 : f32 to vector<8x192xf32>
      %532 = arith.mulf %531, %381 : vector<8x192xf32>
      %533 = arith.addf %528, %532 : vector<8x192xf32>
      %534 = arith.index_cast %arg9 : i32 to index
      %c25 = arith.constant 25 : index
      %535 = memref.load %arg4[%534, %c25] : memref<16x72xf32, #tpu.memory_space<smem>>
      %536 = vector.broadcast %535 : f32 to vector<8x192xf32>
      %537 = arith.mulf %536, %389 : vector<8x192xf32>
      %538 = arith.addf %533, %537 : vector<8x192xf32>
      %539 = arith.index_cast %arg9 : i32 to index
      %c26 = arith.constant 26 : index
      %540 = memref.load %arg4[%539, %c26] : memref<16x72xf32, #tpu.memory_space<smem>>
      %541 = vector.broadcast %540 : f32 to vector<8x192xf32>
      %542 = arith.mulf %541, %397 : vector<8x192xf32>
      %543 = arith.addf %538, %542 : vector<8x192xf32>
      %544 = arith.index_cast %arg9 : i32 to index
      %c27 = arith.constant 27 : index
      %545 = memref.load %arg4[%544, %c27] : memref<16x72xf32, #tpu.memory_space<smem>>
      %546 = vector.broadcast %545 : f32 to vector<8x192xf32>
      %547 = arith.mulf %546, %334 : vector<8x192xf32>
      %548 = arith.addf %543, %547 : vector<8x192xf32>
      %549 = arith.index_cast %arg9 : i32 to index
      %c28 = arith.constant 28 : index
      %550 = memref.load %arg4[%549, %c28] : memref<16x72xf32, #tpu.memory_space<smem>>
      %551 = vector.broadcast %550 : f32 to vector<8x192xf32>
      %552 = arith.mulf %551, %342 : vector<8x192xf32>
      %553 = arith.addf %548, %552 : vector<8x192xf32>
      %554 = arith.index_cast %arg9 : i32 to index
      %c29 = arith.constant 29 : index
      %555 = memref.load %arg4[%554, %c29] : memref<16x72xf32, #tpu.memory_space<smem>>
      %556 = vector.broadcast %555 : f32 to vector<8x192xf32>
      %557 = arith.mulf %556, %350 : vector<8x192xf32>
      %558 = arith.addf %553, %557 : vector<8x192xf32>
      %559 = arith.index_cast %arg9 : i32 to index
      %c30 = arith.constant 30 : index
      %560 = memref.load %arg4[%559, %c30] : memref<16x72xf32, #tpu.memory_space<smem>>
      %561 = vector.broadcast %560 : f32 to vector<8x192xf32>
      %562 = arith.mulf %561, %358 : vector<8x192xf32>
      %563 = arith.addf %558, %562 : vector<8x192xf32>
      %564 = arith.index_cast %arg9 : i32 to index
      %c31 = arith.constant 31 : index
      %565 = memref.load %arg4[%564, %c31] : memref<16x72xf32, #tpu.memory_space<smem>>
      %566 = vector.broadcast %565 : f32 to vector<8x192xf32>
      %567 = arith.mulf %566, %366 : vector<8x192xf32>
      %568 = arith.addf %563, %567 : vector<8x192xf32>
      %569 = arith.index_cast %arg9 : i32 to index
      %c32 = arith.constant 32 : index
      %570 = memref.load %arg4[%569, %c32] : memref<16x72xf32, #tpu.memory_space<smem>>
      %571 = vector.broadcast %570 : f32 to vector<8x192xf32>
      %572 = arith.mulf %571, %374 : vector<8x192xf32>
      %573 = arith.addf %568, %572 : vector<8x192xf32>
      %574 = arith.index_cast %arg9 : i32 to index
      %c33 = arith.constant 33 : index
      %575 = memref.load %arg4[%574, %c33] : memref<16x72xf32, #tpu.memory_space<smem>>
      %576 = vector.broadcast %575 : f32 to vector<8x192xf32>
      %577 = arith.mulf %576, %382 : vector<8x192xf32>
      %578 = arith.addf %573, %577 : vector<8x192xf32>
      %579 = arith.index_cast %arg9 : i32 to index
      %c34 = arith.constant 34 : index
      %580 = memref.load %arg4[%579, %c34] : memref<16x72xf32, #tpu.memory_space<smem>>
      %581 = vector.broadcast %580 : f32 to vector<8x192xf32>
      %582 = arith.mulf %581, %390 : vector<8x192xf32>
      %583 = arith.addf %578, %582 : vector<8x192xf32>
      %584 = arith.index_cast %arg9 : i32 to index
      %c35 = arith.constant 35 : index
      %585 = memref.load %arg4[%584, %c35] : memref<16x72xf32, #tpu.memory_space<smem>>
      %586 = vector.broadcast %585 : f32 to vector<8x192xf32>
      %587 = arith.mulf %586, %398 : vector<8x192xf32>
      %588 = arith.addf %583, %587 : vector<8x192xf32>
      %589 = arith.index_cast %arg9 : i32 to index
      %c36 = arith.constant 36 : index
      %590 = memref.load %arg4[%589, %c36] : memref<16x72xf32, #tpu.memory_space<smem>>
      %591 = vector.broadcast %590 : f32 to vector<8x192xf32>
      %592 = arith.mulf %591, %335 : vector<8x192xf32>
      %593 = arith.addf %588, %592 : vector<8x192xf32>
      %594 = arith.index_cast %arg9 : i32 to index
      %c37 = arith.constant 37 : index
      %595 = memref.load %arg4[%594, %c37] : memref<16x72xf32, #tpu.memory_space<smem>>
      %596 = vector.broadcast %595 : f32 to vector<8x192xf32>
      %597 = arith.mulf %596, %343 : vector<8x192xf32>
      %598 = arith.addf %593, %597 : vector<8x192xf32>
      %599 = arith.index_cast %arg9 : i32 to index
      %c38 = arith.constant 38 : index
      %600 = memref.load %arg4[%599, %c38] : memref<16x72xf32, #tpu.memory_space<smem>>
      %601 = vector.broadcast %600 : f32 to vector<8x192xf32>
      %602 = arith.mulf %601, %351 : vector<8x192xf32>
      %603 = arith.addf %598, %602 : vector<8x192xf32>
      %604 = arith.index_cast %arg9 : i32 to index
      %c39 = arith.constant 39 : index
      %605 = memref.load %arg4[%604, %c39] : memref<16x72xf32, #tpu.memory_space<smem>>
      %606 = vector.broadcast %605 : f32 to vector<8x192xf32>
      %607 = arith.mulf %606, %359 : vector<8x192xf32>
      %608 = arith.addf %603, %607 : vector<8x192xf32>
      %609 = arith.index_cast %arg9 : i32 to index
      %c40 = arith.constant 40 : index
      %610 = memref.load %arg4[%609, %c40] : memref<16x72xf32, #tpu.memory_space<smem>>
      %611 = vector.broadcast %610 : f32 to vector<8x192xf32>
      %612 = arith.mulf %611, %367 : vector<8x192xf32>
      %613 = arith.addf %608, %612 : vector<8x192xf32>
      %614 = arith.index_cast %arg9 : i32 to index
      %c41 = arith.constant 41 : index
      %615 = memref.load %arg4[%614, %c41] : memref<16x72xf32, #tpu.memory_space<smem>>
      %616 = vector.broadcast %615 : f32 to vector<8x192xf32>
      %617 = arith.mulf %616, %375 : vector<8x192xf32>
      %618 = arith.addf %613, %617 : vector<8x192xf32>
      %619 = arith.index_cast %arg9 : i32 to index
      %c42 = arith.constant 42 : index
      %620 = memref.load %arg4[%619, %c42] : memref<16x72xf32, #tpu.memory_space<smem>>
      %621 = vector.broadcast %620 : f32 to vector<8x192xf32>
      %622 = arith.mulf %621, %383 : vector<8x192xf32>
      %623 = arith.addf %618, %622 : vector<8x192xf32>
      %624 = arith.index_cast %arg9 : i32 to index
      %c43 = arith.constant 43 : index
      %625 = memref.load %arg4[%624, %c43] : memref<16x72xf32, #tpu.memory_space<smem>>
      %626 = vector.broadcast %625 : f32 to vector<8x192xf32>
      %627 = arith.mulf %626, %391 : vector<8x192xf32>
      %628 = arith.addf %623, %627 : vector<8x192xf32>
      %629 = arith.index_cast %arg9 : i32 to index
      %c44 = arith.constant 44 : index
      %630 = memref.load %arg4[%629, %c44] : memref<16x72xf32, #tpu.memory_space<smem>>
      %631 = vector.broadcast %630 : f32 to vector<8x192xf32>
      %632 = arith.mulf %631, %399 : vector<8x192xf32>
      %633 = arith.addf %628, %632 : vector<8x192xf32>
      %634 = arith.index_cast %arg9 : i32 to index
      %c45 = arith.constant 45 : index
      %635 = memref.load %arg4[%634, %c45] : memref<16x72xf32, #tpu.memory_space<smem>>
      %636 = vector.broadcast %635 : f32 to vector<8x192xf32>
      %637 = arith.mulf %636, %336 : vector<8x192xf32>
      %638 = arith.addf %633, %637 : vector<8x192xf32>
      %639 = arith.index_cast %arg9 : i32 to index
      %c46 = arith.constant 46 : index
      %640 = memref.load %arg4[%639, %c46] : memref<16x72xf32, #tpu.memory_space<smem>>
      %641 = vector.broadcast %640 : f32 to vector<8x192xf32>
      %642 = arith.mulf %641, %344 : vector<8x192xf32>
      %643 = arith.addf %638, %642 : vector<8x192xf32>
      %644 = arith.index_cast %arg9 : i32 to index
      %c47 = arith.constant 47 : index
      %645 = memref.load %arg4[%644, %c47] : memref<16x72xf32, #tpu.memory_space<smem>>
      %646 = vector.broadcast %645 : f32 to vector<8x192xf32>
      %647 = arith.mulf %646, %352 : vector<8x192xf32>
      %648 = arith.addf %643, %647 : vector<8x192xf32>
      %649 = arith.index_cast %arg9 : i32 to index
      %c48 = arith.constant 48 : index
      %650 = memref.load %arg4[%649, %c48] : memref<16x72xf32, #tpu.memory_space<smem>>
      %651 = vector.broadcast %650 : f32 to vector<8x192xf32>
      %652 = arith.mulf %651, %360 : vector<8x192xf32>
      %653 = arith.addf %648, %652 : vector<8x192xf32>
      %654 = arith.index_cast %arg9 : i32 to index
      %c49 = arith.constant 49 : index
      %655 = memref.load %arg4[%654, %c49] : memref<16x72xf32, #tpu.memory_space<smem>>
      %656 = vector.broadcast %655 : f32 to vector<8x192xf32>
      %657 = arith.mulf %656, %368 : vector<8x192xf32>
      %658 = arith.addf %653, %657 : vector<8x192xf32>
      %659 = arith.index_cast %arg9 : i32 to index
      %c50 = arith.constant 50 : index
      %660 = memref.load %arg4[%659, %c50] : memref<16x72xf32, #tpu.memory_space<smem>>
      %661 = vector.broadcast %660 : f32 to vector<8x192xf32>
      %662 = arith.mulf %661, %376 : vector<8x192xf32>
      %663 = arith.addf %658, %662 : vector<8x192xf32>
      %664 = arith.index_cast %arg9 : i32 to index
      %c51 = arith.constant 51 : index
      %665 = memref.load %arg4[%664, %c51] : memref<16x72xf32, #tpu.memory_space<smem>>
      %666 = vector.broadcast %665 : f32 to vector<8x192xf32>
      %667 = arith.mulf %666, %384 : vector<8x192xf32>
      %668 = arith.addf %663, %667 : vector<8x192xf32>
      %669 = arith.index_cast %arg9 : i32 to index
      %c52 = arith.constant 52 : index
      %670 = memref.load %arg4[%669, %c52] : memref<16x72xf32, #tpu.memory_space<smem>>
      %671 = vector.broadcast %670 : f32 to vector<8x192xf32>
      %672 = arith.mulf %671, %392 : vector<8x192xf32>
      %673 = arith.addf %668, %672 : vector<8x192xf32>
      %674 = arith.index_cast %arg9 : i32 to index
      %c53 = arith.constant 53 : index
      %675 = memref.load %arg4[%674, %c53] : memref<16x72xf32, #tpu.memory_space<smem>>
      %676 = vector.broadcast %675 : f32 to vector<8x192xf32>
      %677 = arith.mulf %676, %400 : vector<8x192xf32>
      %678 = arith.addf %673, %677 : vector<8x192xf32>
      %679 = arith.index_cast %arg9 : i32 to index
      %c54 = arith.constant 54 : index
      %680 = memref.load %arg4[%679, %c54] : memref<16x72xf32, #tpu.memory_space<smem>>
      %681 = vector.broadcast %680 : f32 to vector<8x192xf32>
      %682 = arith.mulf %681, %337 : vector<8x192xf32>
      %683 = arith.addf %678, %682 : vector<8x192xf32>
      %684 = arith.index_cast %arg9 : i32 to index
      %c55 = arith.constant 55 : index
      %685 = memref.load %arg4[%684, %c55] : memref<16x72xf32, #tpu.memory_space<smem>>
      %686 = vector.broadcast %685 : f32 to vector<8x192xf32>
      %687 = arith.mulf %686, %345 : vector<8x192xf32>
      %688 = arith.addf %683, %687 : vector<8x192xf32>
      %689 = arith.index_cast %arg9 : i32 to index
      %c56 = arith.constant 56 : index
      %690 = memref.load %arg4[%689, %c56] : memref<16x72xf32, #tpu.memory_space<smem>>
      %691 = vector.broadcast %690 : f32 to vector<8x192xf32>
      %692 = arith.mulf %691, %353 : vector<8x192xf32>
      %693 = arith.addf %688, %692 : vector<8x192xf32>
      %694 = arith.index_cast %arg9 : i32 to index
      %c57 = arith.constant 57 : index
      %695 = memref.load %arg4[%694, %c57] : memref<16x72xf32, #tpu.memory_space<smem>>
      %696 = vector.broadcast %695 : f32 to vector<8x192xf32>
      %697 = arith.mulf %696, %361 : vector<8x192xf32>
      %698 = arith.addf %693, %697 : vector<8x192xf32>
      %699 = arith.index_cast %arg9 : i32 to index
      %c58 = arith.constant 58 : index
      %700 = memref.load %arg4[%699, %c58] : memref<16x72xf32, #tpu.memory_space<smem>>
      %701 = vector.broadcast %700 : f32 to vector<8x192xf32>
      %702 = arith.mulf %701, %369 : vector<8x192xf32>
      %703 = arith.addf %698, %702 : vector<8x192xf32>
      %704 = arith.index_cast %arg9 : i32 to index
      %c59 = arith.constant 59 : index
      %705 = memref.load %arg4[%704, %c59] : memref<16x72xf32, #tpu.memory_space<smem>>
      %706 = vector.broadcast %705 : f32 to vector<8x192xf32>
      %707 = arith.mulf %706, %377 : vector<8x192xf32>
      %708 = arith.addf %703, %707 : vector<8x192xf32>
      %709 = arith.index_cast %arg9 : i32 to index
      %c60 = arith.constant 60 : index
      %710 = memref.load %arg4[%709, %c60] : memref<16x72xf32, #tpu.memory_space<smem>>
      %711 = vector.broadcast %710 : f32 to vector<8x192xf32>
      %712 = arith.mulf %711, %385 : vector<8x192xf32>
      %713 = arith.addf %708, %712 : vector<8x192xf32>
      %714 = arith.index_cast %arg9 : i32 to index
      %c61 = arith.constant 61 : index
      %715 = memref.load %arg4[%714, %c61] : memref<16x72xf32, #tpu.memory_space<smem>>
      %716 = vector.broadcast %715 : f32 to vector<8x192xf32>
      %717 = arith.mulf %716, %393 : vector<8x192xf32>
      %718 = arith.addf %713, %717 : vector<8x192xf32>
      %719 = arith.index_cast %arg9 : i32 to index
      %c62 = arith.constant 62 : index
      %720 = memref.load %arg4[%719, %c62] : memref<16x72xf32, #tpu.memory_space<smem>>
      %721 = vector.broadcast %720 : f32 to vector<8x192xf32>
      %722 = arith.mulf %721, %401 : vector<8x192xf32>
      %723 = arith.addf %718, %722 : vector<8x192xf32>
      %724 = arith.index_cast %arg9 : i32 to index
      %c63 = arith.constant 63 : index
      %725 = memref.load %arg4[%724, %c63] : memref<16x72xf32, #tpu.memory_space<smem>>
      %726 = vector.broadcast %725 : f32 to vector<8x192xf32>
      %727 = arith.mulf %726, %338 : vector<8x192xf32>
      %728 = arith.addf %723, %727 : vector<8x192xf32>
      %729 = arith.index_cast %arg9 : i32 to index
      %c64 = arith.constant 64 : index
      %730 = memref.load %arg4[%729, %c64] : memref<16x72xf32, #tpu.memory_space<smem>>
      %731 = vector.broadcast %730 : f32 to vector<8x192xf32>
      %732 = arith.mulf %731, %346 : vector<8x192xf32>
      %733 = arith.addf %728, %732 : vector<8x192xf32>
      %734 = arith.index_cast %arg9 : i32 to index
      %c65 = arith.constant 65 : index
      %735 = memref.load %arg4[%734, %c65] : memref<16x72xf32, #tpu.memory_space<smem>>
      %736 = vector.broadcast %735 : f32 to vector<8x192xf32>
      %737 = arith.mulf %736, %354 : vector<8x192xf32>
      %738 = arith.addf %733, %737 : vector<8x192xf32>
      %739 = arith.index_cast %arg9 : i32 to index
      %c66 = arith.constant 66 : index
      %740 = memref.load %arg4[%739, %c66] : memref<16x72xf32, #tpu.memory_space<smem>>
      %741 = vector.broadcast %740 : f32 to vector<8x192xf32>
      %742 = arith.mulf %741, %362 : vector<8x192xf32>
      %743 = arith.addf %738, %742 : vector<8x192xf32>
      %744 = arith.index_cast %arg9 : i32 to index
      %c67 = arith.constant 67 : index
      %745 = memref.load %arg4[%744, %c67] : memref<16x72xf32, #tpu.memory_space<smem>>
      %746 = vector.broadcast %745 : f32 to vector<8x192xf32>
      %747 = arith.mulf %746, %370 : vector<8x192xf32>
      %748 = arith.addf %743, %747 : vector<8x192xf32>
      %749 = arith.index_cast %arg9 : i32 to index
      %c68 = arith.constant 68 : index
      %750 = memref.load %arg4[%749, %c68] : memref<16x72xf32, #tpu.memory_space<smem>>
      %751 = vector.broadcast %750 : f32 to vector<8x192xf32>
      %752 = arith.mulf %751, %378 : vector<8x192xf32>
      %753 = arith.addf %748, %752 : vector<8x192xf32>
      %754 = arith.index_cast %arg9 : i32 to index
      %c69 = arith.constant 69 : index
      %755 = memref.load %arg4[%754, %c69] : memref<16x72xf32, #tpu.memory_space<smem>>
      %756 = vector.broadcast %755 : f32 to vector<8x192xf32>
      %757 = arith.mulf %756, %386 : vector<8x192xf32>
      %758 = arith.addf %753, %757 : vector<8x192xf32>
      %759 = arith.index_cast %arg9 : i32 to index
      %c70 = arith.constant 70 : index
      %760 = memref.load %arg4[%759, %c70] : memref<16x72xf32, #tpu.memory_space<smem>>
      %761 = vector.broadcast %760 : f32 to vector<8x192xf32>
      %762 = arith.mulf %761, %394 : vector<8x192xf32>
      %763 = arith.addf %758, %762 : vector<8x192xf32>
      %764 = arith.index_cast %arg9 : i32 to index
      %c71 = arith.constant 71 : index
      %765 = memref.load %arg4[%764, %c71] : memref<16x72xf32, #tpu.memory_space<smem>>
      %766 = vector.broadcast %765 : f32 to vector<8x192xf32>
      %767 = arith.mulf %766, %402 : vector<8x192xf32>
      %768 = arith.addf %763, %767 : vector<8x192xf32>
      %769 = arith.index_cast %arg9 : i32 to index
      %770 = memref.load %arg5[%769] : memref<16xf32, #tpu.memory_space<smem>>
      %771 = vector.broadcast %770 : f32 to vector<8x192xf32>
      %772 = arith.addf %768, %771 : vector<8x192xf32>
      %cst_167 = arith.constant 0.000000e+00 : f32
      %773 = vector.broadcast %cst_167 : f32 to vector<8x192xf32>
      %774 = arith.maximumf %772, %773 : vector<8x192xf32>
      %775 = arith.truncf %774 : vector<8x192xf32> to vector<8x192xbf16>
      %776 = arith.index_cast %arg9 : i32 to index
      %c0_168 = arith.constant 0 : index
      %c0_169 = arith.constant 0 : index
      %777 = vector.load %arg6[%776, %c0_168, %c0_169] : memref<16x192x128xbf16, #tpu.memory_space<vmem>>, vector<1x192x128xbf16>
      %778 = vector.shape_cast %777 : vector<1x192x128xbf16> to vector<192x128xbf16>
      %cst_170 = arith.constant dense<0.000000e+00> : vector<8x128xf32>
      %779 = tpu.matmul %775, %778, %cst_170 {dimension_numbers = #tpu.dot_dimension_numbers<[1], [0], [0], [1], [0, 0, 1, 1], [], []>} : vector<8x192xbf16>, vector<192x128xbf16>, vector<8x128xf32> -> vector<8x128xf32>
      %780 = arith.addf %arg10, %779 : vector<8x128xf32>
      scf.yield %780 : vector<8x128xf32>
    }
    %c16_i32_153 = arith.constant 16 : i32
    %c0_154 = arith.constant 0 : index
    %c0_155 = arith.constant 0 : index
    %406 = vector.load %arg7[%c0_154, %c0_155] : memref<1x128xf32, #tpu.memory_space<vmem>>, vector<1x128xf32>
    %407 = vector.broadcast %406 : vector<1x128xf32> to vector<8x128xf32>
    %408 = arith.addf %405, %407 : vector<8x128xf32>
    %c0_156 = arith.constant 0 : index
    %c0_157 = arith.constant 0 : index
    %409 = vector.load %arg8[%c0_156, %c0_157] : memref<8x128xf32, #tpu.memory_space<vmem>>, vector<8x128xf32>
    tpu.vector_store %arg8[%c0_156, %c0_157], %408 {strides = array<i32>} : memref<8x128xf32, #tpu.memory_space<vmem>>, vector<8x128xf32>,
    return
  }
  func.func @transform_0(%arg0: i32) -> (i32, i32) {
    %c0_i32 = arith.constant 0 : i32
    %c0_i32_0 = arith.constant 0 : i32
    return %arg0, %c0_i32 : i32, i32
  }
  func.func @transform_1(%arg0: i32) -> (i32, i32) {
    %c0_i32 = arith.constant 0 : i32
    %c0_i32_0 = arith.constant 0 : i32
    %c0_i32_1 = arith.constant 0 : i32
    return %c0_i32, %c0_i32_0 : i32, i32
  }
  func.func @transform_2(%arg0: i32) -> i32 {
    %c0_i32 = arith.constant 0 : i32
    %c0_i32_0 = arith.constant 0 : i32
    return %c0_i32 : i32
  }
  func.func @transform_3(%arg0: i32) -> (i32, i32) {
    %c0_i32 = arith.constant 0 : i32
    %c0_i32_0 = arith.constant 0 : i32
    %c0_i32_1 = arith.constant 0 : i32
    return %c0_i32, %c0_i32_0 : i32, i32
  }
  func.func @transform_4(%arg0: i32) -> i32 {
    %c0_i32 = arith.constant 0 : i32
    %c0_i32_0 = arith.constant 0 : i32
    return %c0_i32 : i32
  }
  func.func @transform_5(%arg0: i32) -> (i32, i32, i32) {
    %c0_i32 = arith.constant 0 : i32
    %c0_i32_0 = arith.constant 0 : i32
    %c0_i32_1 = arith.constant 0 : i32
    %c0_i32_2 = arith.constant 0 : i32
    return %c0_i32, %c0_i32_0, %c0_i32_1 : i32, i32, i32
  }
  func.func @transform_6(%arg0: i32) -> (i32, i32) {
    %c0_i32 = arith.constant 0 : i32
    %c0_i32_0 = arith.constant 0 : i32
    %c0_i32_1 = arith.constant 0 : i32
    return %c0_i32, %c0_i32_0 : i32, i32
  }
  func.func @transform_7(%arg0: i32) -> (i32, i32) {
    %c0_i32 = arith.constant 0 : i32
    %c0_i32_0 = arith.constant 0 : i32
    return %arg0, %c0_i32 : i32, i32
  }
}

</mosaic_0001>

<llo_original>
// kernel: image_classifier_forward.1
$region0: #{image_classifier_forward.1}
  #allocation0 [shape = 'u32[]', space=smem, size = 0x4, offset = 0x4, fixed_abs, tag = 'smem constant byte address 0x4 - core index']
  #allocation1 [shape = 'u32[144,128]{1,0:T(1,128)}', space=vmem, size = 0x12000, scoped, tag = 'internal scratch']
  %s0 = inlined_call_operand.vmem [shape: bf16[8,384], index: 0, kind: input, shape index: {}]
  %s1 = inlined_call_operand.vmem [shape: f32[8,9], index: 1, kind: input, shape index: {}]
  %s2 = inlined_call_operand.vmem [shape: f32[8], index: 2, kind: input, shape index: {}]
  %s3 = inlined_call_operand.vmem [shape: f32[16,72], index: 3, kind: input, shape index: {}]
  %s4 = inlined_call_operand.vmem [shape: f32[16], index: 4, kind: input, shape index: {}]
  %s5 = inlined_call_operand.hbm [shape: bf16[16,192,128], index: 5, kind: input, shape index: {}]
  %s6 = inlined_call_operand.vmem [shape: f32[1,128], index: 6, kind: input, shape index: {}]
  %s7 = inlined_call_operand.vmem [shape: f32[8,128], index: 7, kind: output, shape index: {}]
  %s8 = sld [smem:[#allocation0]]
  $region65: #{image_classifier_forward.1} parent=0
    _
  %s10 = ssub.s32 1, %s8
  %s11 = scalar_select 0, %s10, %s8
  $region1: #{image_classifier_forward.1} parent=0
    #allocation2 [shape = 'u8[4096]{0}', space=smem, size = 0x1000, scoped, tag = 'input window, operand 1, single buffered']
    #allocation3 [shape = 's32[1]{0}', space=sflag, size = 0x4, scoped, tag = 'scoped memory for image_classifier_forward.1']
    #allocation4 [shape = 's32[1]{0}', space=sflag, size = 0x4, scoped, tag = 'scoped memory for image_classifier_forward.1']
    #allocation5 [shape = 'u8[512]{0}', space=smem, size = 0x200, scoped, tag = 'input window, operand 2, single buffered']
    #allocation6 [shape = 's32[1]{0}', space=sflag, size = 0x4, scoped, tag = 'scoped memory for image_classifier_forward.1']
    #allocation7 [shape = 'u8[8192]{0}', space=smem, size = 0x2000, scoped, tag = 'input window, operand 3, single buffered']
    #allocation8 [shape = 'u8[512]{0}', space=smem, size = 0x200, scoped, tag = 'input window, operand 4, single buffered']
    #allocation9 [shape = 's32[1]{0}', space=sflag, size = 0x4, scoped, tag = 'scoped memory for image_classifier_forward.1']
    #allocation10 [shape = 'u8[786432]{0}', space=vmem, size = 0xc0000, scoped, tag = 'input window, operand 5, single buffered']
    %12 = vsyncpa [#allocation4], 0
    %13 = vsyncpa [#allocation6], 0
    %14 = vsyncpa [#allocation9], 0
    %15 = vsyncpa [#allocation3], 0
    // Predicated region
    $region2: #{image_classifier_forward.1} parent=1 // pred_check
      _
    $region3: #{image_classifier_forward.1} parent=1 // pred_check_branch
      %17 = sbr.rel (0) target = $region5
    $region4: #{image_classifier_forward.1} parent=1 // pred_region
      _
    $region5: #{image_classifier_forward.1} parent=1 // pred_fallthru
      _
    // Predicated region
    $region6: #{image_classifier_forward.1} parent=1 // pred_check
      _
    $region7: #{image_classifier_forward.1} parent=1 // pred_check_branch
      %19 = sbr.rel (0) target = $region9
    $region8: #{image_classifier_forward.1} parent=1 // pred_region
      %s21 = ssub.s32 128, 128
      %22 = vsyncadd [#allocation4], %s21
      %s24 = sshll.u32 %s1, 4
      %s25 = int_to_ptr.vmem [resolvable:$true] %s24
      %27 = dma.vmem_to_smem %s25, 128, [#allocation2], [#allocation4]
    $region9: #{image_classifier_forward.1} parent=1 // pred_fallthru
      _
    // Predicated region
    $region10: #{image_classifier_forward.1} parent=1 // pred_check
      _
    $region11: #{image_classifier_forward.1} parent=1 // pred_check_branch
      %29 = sbr.rel (0) target = $region13
    $region12: #{image_classifier_forward.1} parent=1 // pred_region
      %s31 = ssub.s32 16, 16
      %32 = vsyncadd [#allocation6], %s31
      %s34 = sshll.u32 %s2, 4
      %s35 = int_to_ptr.vmem [resolvable:$true] %s34
      %37 = dma.vmem_to_smem %s35, 16, [#allocation5], [#allocation6]
    $region13: #{image_classifier_forward.1} parent=1 // pred_fallthru
      _
    // Predicated region
    $region14: #{image_classifier_forward.1} parent=1 // pred_check
      _
    $region15: #{image_classifier_forward.1} parent=1 // pred_check_branch
      %39 = sbr.rel (0) target = $region17
    $region16: #{image_classifier_forward.1} parent=1 // pred_region
      %s41 = ssub.s32 256, 256
      %42 = vsyncadd [#allocation6], %s41
      %s43 = sshll.u32 %s3, 4
      %s44 = int_to_ptr.vmem [resolvable:$true] %s43
      %49 = dma.vmem_to_smem %s44, 256, [#allocation7], [#allocation6], 128, 128, 8
    $region17: #{image_classifier_forward.1} parent=1 // pred_fallthru
      _
    // Predicated region
    $region18: #{image_classifier_forward.1} parent=1 // pred_check
      _
    $region19: #{image_classifier_forward.1} parent=1 // pred_check_branch
      %51 = sbr.rel (0) target = $region21
    $region20: #{image_classifier_forward.1} parent=1 // pred_region
      %s53 = ssub.s32 16, 16
      %54 = vsyncadd [#allocation9], %s53
      %s56 = sshll.u32 %s4, 4
      %s57 = int_to_ptr.vmem [resolvable:$true] %s56
      %59 = dma.vmem_to_smem %s57, 16, [#allocation8], [#allocation9]
    $region21: #{image_classifier_forward.1} parent=1 // pred_fallthru
      _
    // Predicated region
    $region22: #{image_classifier_forward.1} parent=1 // pred_check
      _
    $region23: #{image_classifier_forward.1} parent=1 // pred_check_branch
      %61 = sbr.rel (0) target = $region25
    $region24: #{image_classifier_forward.1} parent=1 // pred_region
      %s63 = ssub.s32 24576, 24576
      %64 = vsyncadd [#allocation3], %s63
      %s65 = sshll.u32 [#allocation10], 4
      %s66 = int_to_ptr.vmem [resolvable:$true] %s65
      %71 = dma.hbm_to_vmem [thread:$0]  %s5, 24576, %s66, [#allocation3], 64, 64, 4
    $region25: #{image_classifier_forward.1} parent=1 // pred_fallthru
      _
    // Predicated region
    $region26: #{image_classifier_forward.1} parent=1 // pred_check
      _
    $region27: #{image_classifier_forward.1} parent=1 // pred_check_branch
      %73 = sbr.rel (0) target = $region29
    $region28: #{image_classifier_forward.1} parent=1 // pred_region
      _
    $region29: #{image_classifier_forward.1} parent=1 // pred_fallthru
      _
    // Predicated region
    $region30: #{image_classifier_forward.1} parent=1 // pred_check
      _
    $region31: #{image_classifier_forward.1} parent=1 // pred_check_branch
      %75 = sbr.rel (0) target = $region33
    $region32: #{image_classifier_forward.1} parent=1 // pred_region
      %76 = dma.done [#allocation4], 128
    $region33: #{image_classifier_forward.1} parent=1 // pred_fallthru
      _
    // Predicated region
    $region34: #{image_classifier_forward.1} parent=1 // pred_check
      _
    $region35: #{image_classifier_forward.1} parent=1 // pred_check_branch
      %78 = sbr.rel (0) target = $region37
    $region36: #{image_classifier_forward.1} parent=1 // pred_region
      %79 = dma.done [#allocation6], 16
    $region37: #{image_classifier_forward.1} parent=1 // pred_fallthru
      _
    // Predicated region
    $region38: #{image_classifier_forward.1} parent=1 // pred_check
      _
    $region39: #{image_classifier_forward.1} parent=1 // pred_check_branch
      %81 = sbr.rel (0) target = $region41
    $region40: #{image_classifier_forward.1} parent=1 // pred_region
      %82 = dma.done [#allocation6], 256
    $region41: #{image_classifier_forward.1} parent=1 // pred_fallthru
      _
    // Predicated region
    $region42: #{image_classifier_forward.1} parent=1 // pred_check
      _
    $region43: #{image_classifier_forward.1} parent=1 // pred_check_branch
      %84 = sbr.rel (0) target = $region45
    $region44: #{image_classifier_forward.1} parent=1 // pred_region
      %85 = dma.done [#allocation9], 16
    $region45: #{image_classifier_forward.1} parent=1 // pred_fallthru
      _
    // Predicated region
    $region46: #{image_classifier_forward.1} parent=1 // pred_check
      _
    $region47: #{image_classifier_forward.1} parent=1 // pred_check_branch
      %87 = sbr.rel (0) target = $region49
    $region48: #{image_classifier_forward.1} parent=1 // pred_region
      %88 = dma.done [#allocation3], 24576
    $region49: #{image_classifier_forward.1} parent=1 // pred_fallthru
      _
    %89 = sfence
    %v91 = vld [vmem:[%s0] sm:$0xff]
    %v92 = vld [vmem:[%s0 + $0x8] sm:$0xf]
    %v93 = vunpack.c.l.bf16 %v91
    %v94 = vunpack.c.h.bf16 %v91
    %v95 = vunpack.c.l.bf16 %v92
    %s96 = sld [smem:[#allocation2]]
    %v97 = vstv %s96
    %v98 = vmul.f32 %v97, %v93
    %v99 = vmul.f32 %v97, %v94
    %s100 = sld [smem:[#allocation2 + $0x1]]
    %v101 = vstv %s100
    %v102 = vmul.f32 %v101, %v93
    %v103 = vmul.f32 %v101, %v94
    %v104 = vmul.f32 %v101, %v95
    %108 = vrot.lane.b32.xlu0 %v102, 127
    %v109 = vpop.permute.xlu0 %108
    %110 = vrot.lane.b32.xlu0 %v103, 127
    %v111 = vpop.permute.xlu0 %110
    %112 = vrot.lane.b32.xlu0 %v104, 127
    %v113 = vpop.permute.xlu0 %112
    %vm114 = vcmask 1039360
    %v115 = vsel %vm114, %v109, %v111
    %v116 = vsel %vm114, %v111, %v113
    %v119 = vadd.f32 %v98, %v115
    %v120 = vadd.f32 %v99, %v116
    %s121 = sld [smem:[#allocation2 + $0x2]]
    %v122 = vstv %s121
    %v123 = vmul.f32 %v122, %v93
    %v124 = vmul.f32 %v122, %v94
    %v125 = vmul.f32 %v122, %v95
    %129 = vrot.lane.b32.xlu0 %v123, 126
    %v130 = vpop.permute.xlu0 %129
    %131 = vrot.lane.b32.xlu0 %v124, 126
    %v132 = vpop.permute.xlu0 %131
    %133 = vrot.lane.b32.xlu0 %v125, 126
    %v134 = vpop.permute.xlu0 %133
    %vm135 = vcmask 1031168
    %v136 = vsel %vm135, %v130, %v132
    %v137 = vsel %vm135, %v132, %v134
    %v140 = vadd.f32 %v119, %v136
    %v141 = vadd.f32 %v120, %v137
    %s142 = sld [smem:[#allocation2 + $0x3]]
    %v143 = vstv %s142
    %v144 = vmul.f32 %v143, %v93
    %v145 = vmul.f32 %v143, %v94
    %v146 = vmul.f32 %v143, %v95
    %150 = vrot.lane.b32.xlu0 %v144, 112
    %v151 = vpop.permute.xlu0 %150
    %152 = vrot.lane.b32.xlu0 %v145, 112
    %v153 = vpop.permute.xlu0 %152
    %154 = vrot.lane.b32.xlu0 %v146, 112
    %v155 = vpop.permute.xlu0 %154
    %vm156 = vcmask 916480
    %v157 = vsel %vm156, %v151, %v153
    %v158 = vsel %vm156, %v153, %v155
    %v161 = vadd.f32 %v140, %v157
    %v162 = vadd.f32 %v141, %v158
    %s163 = sld [smem:[#allocation2 + $0x4]]
    %v164 = vstv %s163
    %v165 = vmul.f32 %v164, %v93
    %v166 = vmul.f32 %v164, %v94
    %v167 = vmul.f32 %v164, %v95
    %171 = vrot.lane.b32.xlu0 %v165, 111
    %v172 = vpop.permute.xlu0 %171
    %173 = vrot.lane.b32.xlu0 %v166, 111
    %v174 = vpop.permute.xlu0 %173
    %175 = vrot.lane.b32.xlu0 %v167, 111
    %v176 = vpop.permute.xlu0 %175
    %vm177 = vcmask 908288
    %v178 = vsel %vm177, %v172, %v174
    %v179 = vsel %vm177, %v174, %v176
    %v182 = vadd.f32 %v161, %v178
    %v183 = vadd.f32 %v162, %v179
    %s184 = sld [smem:[#allocation2 + $0x5]]
    %v185 = vstv %s184
    %v186 = vmul.f32 %v185, %v93
    %v187 = vmul.f32 %v185, %v94
    %v188 = vmul.f32 %v185, %v95
    %192 = vrot.lane.b32.xlu0 %v186, 110
    %v193 = vpop.permute.xlu0 %192
    %194 = vrot.lane.b32.xlu0 %v187, 110
    %v195 = vpop.permute.xlu0 %194
    %196 = vrot.lane.b32.xlu0 %v188, 110
    %v197 = vpop.permute.xlu0 %196
    %vm198 = vcmask 900096
    %v199 = vsel %vm198, %v193, %v195
    %v200 = vsel %vm198, %v195, %v197
    %v203 = vadd.f32 %v182, %v199
    %v204 = vadd.f32 %v183, %v200
    %s205 = sld [smem:[#allocation2 + $0x6]]
    %v206 = vstv %s205
    %v207 = vmul.f32 %v206, %v93
    %v208 = vmul.f32 %v206, %v94
    %v209 = vmul.f32 %v206, %v95
    %213 = vrot.lane.b32.xlu0 %v207, 96
    %v214 = vpop.permute.xlu0 %213
    %215 = vrot.lane.b32.xlu0 %v208, 96
    %v216 = vpop.permute.xlu0 %215
    %217 = vrot.lane.b32.xlu0 %v209, 96
    %v218 = vpop.permute.xlu0 %217
    %vm219 = vcmask 785408
    %v220 = vsel %vm219, %v214, %v216
    %v221 = vsel %vm219, %v216, %v218
    %v224 = vadd.f32 %v203, %v220
    %v225 = vadd.f32 %v204, %v221
    %s226 = sld [smem:[#allocation2 + $0x7]]
    %v227 = vstv %s226
    %v228 = vmul.f32 %v227, %v93
    %v229 = vmul.f32 %v227, %v94
    %v230 = vmul.f32 %v227, %v95
    %234 = vrot.lane.b32.xlu0 %v228, 95
    %v235 = vpop.permute.xlu0 %234
    %236 = vrot.lane.b32.xlu0 %v229, 95
    %v237 = vpop.permute.xlu0 %236
    %238 = vrot.lane.b32.xlu0 %v230, 95
    %v239 = vpop.permute.xlu0 %238
    %vm240 = vcmask 777216
    %v241 = vsel %vm240, %v235, %v237
    %v242 = vsel %vm240, %v237, %v239
    %v245 = vadd.f32 %v224, %v241
    %v246 = vadd.f32 %v225, %v242
    %s247 = sld [smem:[#allocation2 + $0x8]]
    %v248 = vstv %s247
    %v249 = vmul.f32 %v248, %v93
    %v250 = vmul.f32 %v248, %v94
    %v251 = vmul.f32 %v248, %v95
    %255 = vrot.lane.b32.xlu0 %v249, 94
    %v256 = vpop.permute.xlu0 %255
    %257 = vrot.lane.b32.xlu0 %v250, 94
    %v258 = vpop.permute.xlu0 %257
    %259 = vrot.lane.b32.xlu0 %v251, 94
    %v260 = vpop.permute.xlu0 %259
    %vm261 = vcmask 769024
    %v262 = vsel %vm261, %v256, %v258
    %v263 = vsel %vm261, %v258, %v260
    %v266 = vadd.f32 %v245, %v262
    %v267 = vadd.f32 %v246, %v263
    %s268 = sld [smem:[#allocation5]]
    %v269 = vstv %s268
    %v270 = vadd.f32 %v266, %v269
    %v271 = vadd.f32 %v267, %v269
    %v272 = vmax.f32 %v270, 0.0
    %v273 = vmax.f32 %v271, 0.0
    %s274 = sld [smem:[#allocation2 + $0x80]]
    %v275 = vstv %s274
    %v276 = vmul.f32 %v275, %v93
    %v277 = vmul.f32 %v275, %v94
    %s278 = sld [smem:[#allocation2 + $0x81]]
    %v279 = vstv %s278
    %v280 = vmul.f32 %v279, %v93
    %v281 = vmul.f32 %v279, %v94
    %v282 = vmul.f32 %v279, %v95
    %286 = vrot.lane.b32.xlu0 %v280, 127
    %v287 = vpop.permute.xlu0 %286
    %288 = vrot.lane.b32.xlu0 %v281, 127
    %v289 = vpop.permute.xlu0 %288
    %290 = vrot.lane.b32.xlu0 %v282, 127
    %v291 = vpop.permute.xlu0 %290
    %v292 = vsel %vm114, %v287, %v289
    %v293 = vsel %vm114, %v289, %v291
    %v296 = vadd.f32 %v276, %v292
    %v297 = vadd.f32 %v277, %v293
    %s298 = sld [smem:[#allocation2 + $0x82]]
    %v299 = vstv %s298
    %v300 = vmul.f32 %v299, %v93
    %v301 = vmul.f32 %v299, %v94
    %v302 = vmul.f32 %v299, %v95
    %306 = vrot.lane.b32.xlu0 %v300, 126
    %v307 = vpop.permute.xlu0 %306
    %308 = vrot.lane.b32.xlu0 %v301, 126
    %v309 = vpop.permute.xlu0 %308
    %310 = vrot.lane.b32.xlu0 %v302, 126
    %v311 = vpop.permute.xlu0 %310
    %v312 = vsel %vm135, %v307, %v309
    %v313 = vsel %vm135, %v309, %v311
    %v316 = vadd.f32 %v296, %v312
    %v317 = vadd.f32 %v297, %v313
    %s318 = sld [smem:[#allocation2 + $0x83]]
    %v319 = vstv %s318
    %v320 = vmul.f32 %v319, %v93
    %v321 = vmul.f32 %v319, %v94
    %v322 = vmul.f32 %v319, %v95
    %326 = vrot.lane.b32.xlu0 %v320, 112
    %v327 = vpop.permute.xlu0 %326
    %328 = vrot.lane.b32.xlu0 %v321, 112
    %v329 = vpop.permute.xlu0 %328
    %330 = vrot.lane.b32.xlu0 %v322, 112
    %v331 = vpop.permute.xlu0 %330
    %v332 = vsel %vm156, %v327, %v329
    %v333 = vsel %vm156, %v329, %v331
    %v336 = vadd.f32 %v316, %v332
    %v337 = vadd.f32 %v317, %v333
    %s338 = sld [smem:[#allocation2 + $0x84]]
    %v339 = vstv %s338
    %v340 = vmul.f32 %v339, %v93
    %v341 = vmul.f32 %v339, %v94
    %v342 = vmul.f32 %v339, %v95
    %346 = vrot.lane.b32.xlu0 %v340, 111
    %v347 = vpop.permute.xlu0 %346
    %348 = vrot.lane.b32.xlu0 %v341, 111
    %v349 = vpop.permute.xlu0 %348
    %350 = vrot.lane.b32.xlu0 %v342, 111
    %v351 = vpop.permute.xlu0 %350
    %v352 = vsel %vm177, %v347, %v349
    %v353 = vsel %vm177, %v349, %v351
    %v356 = vadd.f32 %v336, %v352
    %v357 = vadd.f32 %v337, %v353
    %s358 = sld [smem:[#allocation2 + $0x85]]
    %v359 = vstv %s358
    %v360 = vmul.f32 %v359, %v93
    %v361 = vmul.f32 %v359, %v94
    %v362 = vmul.f32 %v359, %v95
    %366 = vrot.lane.b32.xlu0 %v360, 110
    %v367 = vpop.permute.xlu0 %366
    %368 = vrot.lane.b32.xlu0 %v361, 110
    %v369 = vpop.permute.xlu0 %368
    %370 = vrot.lane.b32.xlu0 %v362, 110
    %v371 = vpop.permute.xlu0 %370
    %v372 = vsel %vm198, %v367, %v369
    %v373 = vsel %vm198, %v369, %v371
    %v376 = vadd.f32 %v356, %v372
    %v377 = vadd.f32 %v357, %v373
    %s378 = sld [smem:[#allocation2 + $0x86]]
    %v379 = vstv %s378
    %v380 = vmul.f32 %v379, %v93
    %v381 = vmul.f32 %v379, %v94
    %v382 = vmul.f32 %v379, %v95
    %386 = vrot.lane.b32.xlu0 %v380, 96
    %v387 = vpop.permute.xlu0 %386
    %388 = vrot.lane.b32.xlu0 %v381, 96
    %v389 = vpop.permute.xlu0 %388
    %390 = vrot.lane.b32.xlu0 %v382, 96
    %v391 = vpop.permute.xlu0 %390
    %v392 = vsel %vm219, %v387, %v389
    %v393 = vsel %vm219, %v389, %v391
    %v396 = vadd.f32 %v376, %v392
    %v397 = vadd.f32 %v377, %v393
    %s398 = sld [smem:[#allocation2 + $0x87]]
    %v399 = vstv %s398
    %v400 = vmul.f32 %v399, %v93
    %v401 = vmul.f32 %v399, %v94
    %v402 = vmul.f32 %v399, %v95
    %406 = vrot.lane.b32.xlu0 %v400, 95
    %v407 = vpop.permute.xlu0 %406
    %408 = vrot.lane.b32.xlu0 %v401, 95
    %v409 = vpop.permute.xlu0 %408
    %410 = vrot.lane.b32.xlu0 %v402, 95
    %v411 = vpop.permute.xlu0 %410
    %v412 = vsel %vm240, %v407, %v409
    %v413 = vsel %vm240, %v409, %v411
    %v416 = vadd.f32 %v396, %v412
    %v417 = vadd.f32 %v397, %v413
    %s418 = sld [smem:[#allocation2 + $0x88]]
    %v419 = vstv %s418
    %v420 = vmul.f32 %v419, %v93
    %v421 = vmul.f32 %v419, %v94
    %v422 = vmul.f32 %v419, %v95
    %426 = vrot.lane.b32.xlu0 %v420, 94
    %v427 = vpop.permute.xlu0 %426
    %428 = vrot.lane.b32.xlu0 %v421, 94
    %v429 = vpop.permute.xlu0 %428
    %430 = vrot.lane.b32.xlu0 %v422, 94
    %v431 = vpop.permute.xlu0 %430
    %v432 = vsel %vm261, %v427, %v429
    %v433 = vsel %vm261, %v429, %v431
    %v436 = vadd.f32 %v416, %v432
    %v437 = vadd.f32 %v417, %v433
    %s438 = sld [smem:[#allocation5 + $0x1]]
    %v439 = vstv %s438
    %v440 = vadd.f32 %v436, %v439
    %v441 = vadd.f32 %v437, %v439
    %v442 = vmax.f32 %v440, 0.0
    %v443 = vmax.f32 %v441, 0.0
    %s444 = sld [smem:[#allocation2 + $0x100]]
    %v445 = vstv %s444
    %v446 = vmul.f32 %v445, %v93
    %v447 = vmul.f32 %v445, %v94
    %s448 = sld [smem:[#allocation2 + $0x101]]
    %v449 = vstv %s448
    %v450 = vmul.f32 %v449, %v93
    %v451 = vmul.f32 %v449, %v94
    %v452 = vmul.f32 %v449, %v95
    %456 = vrot.lane.b32.xlu0 %v450, 127
    %v457 = vpop.permute.xlu0 %456
    %458 = vrot.lane.b32.xlu0 %v451, 127
    %v459 = vpop.permute.xlu0 %458
    %460 = vrot.lane.b32.xlu0 %v452, 127
    %v461 = vpop.permute.xlu0 %460
    %v462 = vsel %vm114, %v457, %v459
    %v463 = vsel %vm114, %v459, %v461
    %v466 = vadd.f32 %v446, %v462
    %v467 = vadd.f32 %v447, %v463
    %s468 = sld [smem:[#allocation2 + $0x102]]
    %v469 = vstv %s468
    %v470 = vmul.f32 %v469, %v93
    %v471 = vmul.f32 %v469, %v94
    %v472 = vmul.f32 %v469, %v95
    %476 = vrot.lane.b32.xlu0 %v470, 126
    %v477 = vpop.permute.xlu0 %476
    %478 = vrot.lane.b32.xlu0 %v471, 126
    %v479 = vpop.permute.xlu0 %478
    %480 = vrot.lane.b32.xlu0 %v472, 126
    %v481 = vpop.permute.xlu0 %480
    %v482 = vsel %vm135, %v477, %v479
    %v483 = vsel %vm135, %v479, %v481
    %v486 = vadd.f32 %v466, %v482
    %v487 = vadd.f32 %v467, %v483
    %s488 = sld [smem:[#allocation2 + $0x103]]
    %v489 = vstv %s488
    %v490 = vmul.f32 %v489, %v93
    %v491 = vmul.f32 %v489, %v94
    %v492 = vmul.f32 %v489, %v95
    %496 = vrot.lane.b32.xlu0 %v490, 112
    %v497 = vpop.permute.xlu0 %496
    %498 = vrot.lane.b32.xlu0 %v491, 112
    %v499 = vpop.permute.xlu0 %498
    %500 = vrot.lane.b32.xlu0 %v492, 112
    %v501 = vpop.permute.xlu0 %500
    %v502 = vsel %vm156, %v497, %v499
    %v503 = vsel %vm156, %v499, %v501
    %v506 = vadd.f32 %v486, %v502
    %v507 = vadd.f32 %v487, %v503
    %s508 = sld [smem:[#allocation2 + $0x104]]
    %v509 = vstv %s508
    %v510 = vmul.f32 %v509, %v93
    %v511 = vmul.f32 %v509, %v94
    %v512 = vmul.f32 %v509, %v95
    %516 = vrot.lane.b32.xlu0 %v510, 111
    %v517 = vpop.permute.xlu0 %516
    %518 = vrot.lane.b32.xlu0 %v511, 111
    %v519 = vpop.permute.xlu0 %518
    %520 = vrot.lane.b32.xlu0 %v512, 111
    %v521 = vpop.permute.xlu0 %520
    %v522 = vsel %vm177, %v517, %v519
    %v523 = vsel %vm177, %v519, %v521
    %v526 = vadd.f32 %v506, %v522
    %v527 = vadd.f32 %v507, %v523
    %s528 = sld [smem:[#allocation2 + $0x105]]
    %v529 = vstv %s528
    %v530 = vmul.f32 %v529, %v93
    %v531 = vmul.f32 %v529, %v94
    %v532 = vmul.f32 %v529, %v95
    %536 = vrot.lane.b32.xlu0 %v530, 110
    %v537 = vpop.permute.xlu0 %536
    %538 = vrot.lane.b32.xlu0 %v531, 110
    %v539 = vpop.permute.xlu0 %538
    %540 = vrot.lane.b32.xlu0 %v532, 110
    %v541 = vpop.permute.xlu0 %540
    %v542 = vsel %vm198, %v537, %v539
    %v543 = vsel %vm198, %v539, %v541
    %v546 = vadd.f32 %v526, %v542
    %v547 = vadd.f32 %v527, %v543
    %s548 = sld [smem:[#allocation2 + $0x106]]
    %v549 = vstv %s548
    %v550 = vmul.f32 %v549, %v93
    %v551 = vmul.f32 %v549, %v94
    %v552 = vmul.f32 %v549, %v95
    %556 = vrot.lane.b32.xlu0 %v550, 96
    %v557 = vpop.permute.xlu0 %556
    %558 = vrot.lane.b32.xlu0 %v551, 96
    %v559 = vpop.permute.xlu0 %558
    %560 = vrot.lane.b32.xlu0 %v552, 96
    %v561 = vpop.permute.xlu0 %560
    %v562 = vsel %vm219, %v557, %v559
    %v563 = vsel %vm219, %v559, %v561
    %v566 = vadd.f32 %v546, %v562
    %v567 = vadd.f32 %v547, %v563
    %s568 = sld [smem:[#allocation2 + $0x107]]
    %v569 = vstv %s568
    %v570 = vmul.f32 %v569, %v93
    %v571 = vmul.f32 %v569, %v94
    %v572 = vmul.f32 %v569, %v95
    %576 = vrot.lane.b32.xlu0 %v570, 95
    %v577 = vpop.permute.xlu0 %576
    %578 = vrot.lane.b32.xlu0 %v571, 95
    %v579 = vpop.permute.xlu0 %578
    %580 = vrot.lane.b32.xlu0 %v572, 95
    %v581 = vpop.permute.xlu0 %580
    %v582 = vsel %vm240, %v577, %v579
    %v583 = vsel %vm240, %v579, %v581
    %v586 = vadd.f32 %v566, %v582
    %v587 = vadd.f32 %v567, %v583
    %s588 = sld [smem:[#allocation2 + $0x108]]
    %v589 = vstv %s588
    %v590 = vmul.f32 %v589, %v93
    %v591 = vmul.f32 %v589, %v94
    %v592 = vmul.f32 %v589, %v95
    %596 = vrot.lane.b32.xlu0 %v590, 94
    %v597 = vpop.permute.xlu0 %596
    %598 = vrot.lane.b32.xlu0 %v591, 94
    %v599 = vpop.permute.xlu0 %598
    %600 = vrot.lane.b32.xlu0 %v592, 94
    %v601 = vpop.permute.xlu0 %600
    %v602 = vsel %vm261, %v597, %v599
    %v603 = vsel %vm261, %v599, %v601
    %v606 = vadd.f32 %v586, %v602
    %v607 = vadd.f32 %v587, %v603
    %s608 = sld [smem:[#allocation5 + $0x2]]
    %v609 = vstv %s608
    %v610 = vadd.f32 %v606, %v609
    %v611 = vadd.f32 %v607, %v609
    %v612 = vmax.f32 %v610, 0.0
    %v613 = vmax.f32 %v611, 0.0
    %s614 = sld [smem:[#allocation2 + $0x180]]
    %v615 = vstv %s614
    %v616 = vmul.f32 %v615, %v93
    %v617 = vmul.f32 %v615, %v94
    %s618 = sld [smem:[#allocation2 + $0x181]]
    %v619 = vstv %s618
    %v620 = vmul.f32 %v619, %v93
    %v621 = vmul.f32 %v619, %v94
    %v622 = vmul.f32 %v619, %v95
    %626 = vrot.lane.b32.xlu0 %v620, 127
    %v627 = vpop.permute.xlu0 %626
    %628 = vrot.lane.b32.xlu0 %v621, 127
    %v629 = vpop.permute.xlu0 %628
    %630 = vrot.lane.b32.xlu0 %v622, 127
    %v631 = vpop.permute.xlu0 %630
    %v632 = vsel %vm114, %v627, %v629
    %v633 = vsel %vm114, %v629, %v631
    %v636 = vadd.f32 %v616, %v632
    %v637 = vadd.f32 %v617, %v633
    %s638 = sld [smem:[#allocation2 + $0x182]]
    %v639 = vstv %s638
    %v640 = vmul.f32 %v639, %v93
    %v641 = vmul.f32 %v639, %v94
    %v642 = vmul.f32 %v639, %v95
    %646 = vrot.lane.b32.xlu0 %v640, 126
    %v647 = vpop.permute.xlu0 %646
    %648 = vrot.lane.b32.xlu0 %v641, 126
    %v649 = vpop.permute.xlu0 %648
    %650 = vrot.lane.b32.xlu0 %v642, 126
    %v651 = vpop.permute.xlu0 %650
    %v652 = vsel %vm135, %v647, %v649
    %v653 = vsel %vm135, %v649, %v651
    %v656 = vadd.f32 %v636, %v652
    %v657 = vadd.f32 %v637, %v653
    %s658 = sld [smem:[#allocation2 + $0x183]]
    %v659 = vstv %s658
    %v660 = vmul.f32 %v659, %v93
    %v661 = vmul.f32 %v659, %v94
    %v662 = vmul.f32 %v659, %v95
    %666 = vrot.lane.b32.xlu0 %v660, 112
    %v667 = vpop.permute.xlu0 %666
    %668 = vrot.lane.b32.xlu0 %v661, 112
    %v669 = vpop.permute.xlu0 %668
    %670 = vrot.lane.b32.xlu0 %v662, 112
    %v671 = vpop.permute.xlu0 %670
    %v672 = vsel %vm156, %v667, %v669
    %v673 = vsel %vm156, %v669, %v671
    %v676 = vadd.f32 %v656, %v672
    %v677 = vadd.f32 %v657, %v673
    %s678 = sld [smem:[#allocation2 + $0x184]]
    %v679 = vstv %s678
    %v680 = vmul.f32 %v679, %v93
    %v681 = vmul.f32 %v679, %v94
    %v682 = vmul.f32 %v679, %v95
    %686 = vrot.lane.b32.xlu0 %v680, 111
    %v687 = vpop.permute.xlu0 %686
    %688 = vrot.lane.b32.xlu0 %v681, 111
    %v689 = vpop.permute.xlu0 %688
    %690 = vrot.lane.b32.xlu0 %v682, 111
    %v691 = vpop.permute.xlu0 %690
    %v692 = vsel %vm177, %v687, %v689
    %v693 = vsel %vm177, %v689, %v691
    %v696 = vadd.f32 %v676, %v692
    %v697 = vadd.f32 %v677, %v693
    %s698 = sld [smem:[#allocation2 + $0x185]]
    %v699 = vstv %s698
    %v700 = vmul.f32 %v699, %v93
    %v701 = vmul.f32 %v699, %v94
    %v702 = vmul.f32 %v699, %v95
    %706 = vrot.lane.b32.xlu0 %v700, 110
    %v707 = vpop.permute.xlu0 %706
    %708 = vrot.lane.b32.xlu0 %v701, 110
    %v709 = vpop.permute.xlu0 %708
    %710 = vrot.lane.b32.xlu0 %v702, 110
    %v711 = vpop.permute.xlu0 %710
    %v712 = vsel %vm198, %v707, %v709
    %v713 = vsel %vm198, %v709, %v711
    %v716 = vadd.f32 %v696, %v712
    %v717 = vadd.f32 %v697, %v713
    %s718 = sld [smem:[#allocation2 + $0x186]]
    %v719 = vstv %s718
    %v720 = vmul.f32 %v719, %v93
    %v721 = vmul.f32 %v719, %v94
    %v722 = vmul.f32 %v719, %v95
    %726 = vrot.lane.b32.xlu0 %v720, 96
    %v727 = vpop.permute.xlu0 %726
    %728 = vrot.lane.b32.xlu0 %v721, 96
    %v729 = vpop.permute.xlu0 %728
    %730 = vrot.lane.b32.xlu0 %v722, 96
    %v731 = vpop.permute.xlu0 %730
    %v732 = vsel %vm219, %v727, %v729
    %v733 = vsel %vm219, %v729, %v731
    %v736 = vadd.f32 %v716, %v732
    %v737 = vadd.f32 %v717, %v733
    %s738 = sld [smem:[#allocation2 + $0x187]]
    %v739 = vstv %s738
    %v740 = vmul.f32 %v739, %v93
    %v741 = vmul.f32 %v739, %v94
    %v742 = vmul.f32 %v739, %v95
    %746 = vrot.lane.b32.xlu0 %v740, 95
    %v747 = vpop.permute.xlu0 %746
    %748 = vrot.lane.b32.xlu0 %v741, 95
    %v749 = vpop.permute.xlu0 %748
    %750 = vrot.lane.b32.xlu0 %v742, 95
    %v751 = vpop.permute.xlu0 %750
    %v752 = vsel %vm240, %v747, %v749
    %v753 = vsel %vm240, %v749, %v751
    %v756 = vadd.f32 %v736, %v752
    %v757 = vadd.f32 %v737, %v753
    %s758 = sld [smem:[#allocation2 + $0x188]]
    %v759 = vstv %s758
    %v760 = vmul.f32 %v759, %v93
    %v761 = vmul.f32 %v759, %v94
    %v762 = vmul.f32 %v759, %v95
    %766 = vrot.lane.b32.xlu0 %v760, 94
    %v767 = vpop.permute.xlu0 %766
    %768 = vrot.lane.b32.xlu0 %v761, 94
    %v769 = vpop.permute.xlu0 %768
    %770 = vrot.lane.b32.xlu0 %v762, 94
    %v771 = vpop.permute.xlu0 %770
    %v772 = vsel %vm261, %v767, %v769
    %v773 = vsel %vm261, %v769, %v771
    %v776 = vadd.f32 %v756, %v772
    %v777 = vadd.f32 %v757, %v773
    %s778 = sld [smem:[#allocation5 + $0x3]]
    %v779 = vstv %s778
    %v780 = vadd.f32 %v776, %v779
    %v781 = vadd.f32 %v777, %v779
    %v782 = vmax.f32 %v780, 0.0
    %v783 = vmax.f32 %v781, 0.0
    %s784 = sld [smem:[#allocation2 + $0x200]]
    %v785 = vstv %s784
    %v786 = vmul.f32 %v785, %v93
    %v787 = vmul.f32 %v785, %v94
    %s788 = sld [smem:[#allocation2 + $0x201]]
    %v789 = vstv %s788
    %v790 = vmul.f32 %v789, %v93
    %v791 = vmul.f32 %v789, %v94
    %v792 = vmul.f32 %v789, %v95
    %796 = vrot.lane.b32.xlu0 %v790, 127
    %v797 = vpop.permute.xlu0 %796
    %798 = vrot.lane.b32.xlu0 %v791, 127
    %v799 = vpop.permute.xlu0 %798
    %800 = vrot.lane.b32.xlu0 %v792, 127
    %v801 = vpop.permute.xlu0 %800
    %v802 = vsel %vm114, %v797, %v799
    %v803 = vsel %vm114, %v799, %v801
    %v806 = vadd.f32 %v786, %v802
    %v807 = vadd.f32 %v787, %v803
    %s808 = sld [smem:[#allocation2 + $0x202]]
    %v809 = vstv %s808
    %v810 = vmul.f32 %v809, %v93
    %v811 = vmul.f32 %v809, %v94
    %v812 = vmul.f32 %v809, %v95
    %816 = vrot.lane.b32.xlu0 %v810, 126
    %v817 = vpop.permute.xlu0 %816
    %818 = vrot.lane.b32.xlu0 %v811, 126
    %v819 = vpop.permute.xlu0 %818
    %820 = vrot.lane.b32.xlu0 %v812, 126
    %v821 = vpop.permute.xlu0 %820
    %v822 = vsel %vm135, %v817, %v819
    %v823 = vsel %vm135, %v819, %v821
    %v826 = vadd.f32 %v806, %v822
    %v827 = vadd.f32 %v807, %v823
    %s828 = sld [smem:[#allocation2 + $0x203]]
    %v829 = vstv %s828
    %v830 = vmul.f32 %v829, %v93
    %v831 = vmul.f32 %v829, %v94
    %v832 = vmul.f32 %v829, %v95
    %836 = vrot.lane.b32.xlu0 %v830, 112
    %v837 = vpop.permute.xlu0 %836
    %838 = vrot.lane.b32.xlu0 %v831, 112
    %v839 = vpop.permute.xlu0 %838
    %840 = vrot.lane.b32.xlu0 %v832, 112
    %v841 = vpop.permute.xlu0 %840
    %v842 = vsel %vm156, %v837, %v839
    %v843 = vsel %vm156, %v839, %v841
    %v846 = vadd.f32 %v826, %v842
    %v847 = vadd.f32 %v827, %v843
    %s848 = sld [smem:[#allocation2 + $0x204]]
    %v849 = vstv %s848
    %v850 = vmul.f32 %v849, %v93
    %v851 = vmul.f32 %v849, %v94
    %v852 = vmul.f32 %v849, %v95
    %856 = vrot.lane.b32.xlu0 %v850, 111
    %v857 = vpop.permute.xlu0 %856
    %858 = vrot.lane.b32.xlu0 %v851, 111
    %v859 = vpop.permute.xlu0 %858
    %860 = vrot.lane.b32.xlu0 %v852, 111
    %v861 = vpop.permute.xlu0 %860
    %v862 = vsel %vm177, %v857, %v859
    %v863 = vsel %vm177, %v859, %v861
    %v866 = vadd.f32 %v846, %v862
    %v867 = vadd.f32 %v847, %v863
    %s868 = sld [smem:[#allocation2 + $0x205]]
    %v869 = vstv %s868
    %v870 = vmul.f32 %v869, %v93
    %v871 = vmul.f32 %v869, %v94
    %v872 = vmul.f32 %v869, %v95
    %876 = vrot.lane.b32.xlu0 %v870, 110
    %v877 = vpop.permute.xlu0 %876
    %878 = vrot.lane.b32.xlu0 %v871, 110
    %v879 = vpop.permute.xlu0 %878
    %880 = vrot.lane.b32.xlu0 %v872, 110
    %v881 = vpop.permute.xlu0 %880
    %v882 = vsel %vm198, %v877, %v879
    %v883 = vsel %vm198, %v879, %v881
    %v886 = vadd.f32 %v866, %v882
    %v887 = vadd.f32 %v867, %v883
    %s888 = sld [smem:[#allocation2 + $0x206]]
    %v889 = vstv %s888
    %v890 = vmul.f32 %v889, %v93
    %v891 = vmul.f32 %v889, %v94
    %v892 = vmul.f32 %v889, %v95
    %896 = vrot.lane.b32.xlu0 %v890, 96
    %v897 = vpop.permute.xlu0 %896
    %898 = vrot.lane.b32.xlu0 %v891, 96
    %v899 = vpop.permute.xlu0 %898
    %900 = vrot.lane.b32.xlu0 %v892, 96
    %v901 = vpop.permute.xlu0 %900
    %v902 = vsel %vm219, %v897, %v899
    %v903 = vsel %vm219, %v899, %v901
    %v906 = vadd.f32 %v886, %v902
    %v907 = vadd.f32 %v887, %v903
    %s908 = sld [smem:[#allocation2 + $0x207]]
    %v909 = vstv %s908
    %v910 = vmul.f32 %v909, %v93
    %v911 = vmul.f32 %v909, %v94
    %v912 = vmul.f32 %v909, %v95
    %916 = vrot.lane.b32.xlu0 %v910, 95
    %v917 = vpop.permute.xlu0 %916
    %918 = vrot.lane.b32.xlu0 %v911, 95
    %v919 = vpop.permute.xlu0 %918
    %920 = vrot.lane.b32.xlu0 %v912, 95
    %v921 = vpop.permute.xlu0 %920
    %v922 = vsel %vm240, %v917, %v919
    %v923 = vsel %vm240, %v919, %v921
    %v926 = vadd.f32 %v906, %v922
    %v927 = vadd.f32 %v907, %v923
    %s928 = sld [smem:[#allocation2 + $0x208]]
    %v929 = vstv %s928
    %v930 = vmul.f32 %v929, %v93
    %v931 = vmul.f32 %v929, %v94
    %v932 = vmul.f32 %v929, %v95
    %936 = vrot.lane.b32.xlu0 %v930, 94
    %v937 = vpop.permute.xlu0 %936
    %938 = vrot.lane.b32.xlu0 %v931, 94
    %v939 = vpop.permute.xlu0 %938
    %940 = vrot.lane.b32.xlu0 %v932, 94
    %v941 = vpop.permute.xlu0 %940
    %v942 = vsel %vm261, %v937, %v939
    %v943 = vsel %vm261, %v939, %v941
    %v946 = vadd.f32 %v926, %v942
    %v947 = vadd.f32 %v927, %v943
    %s948 = sld [smem:[#allocation5 + $0x4]]
    %v949 = vstv %s948
    %v950 = vadd.f32 %v946, %v949
    %v951 = vadd.f32 %v947, %v949
    %v952 = vmax.f32 %v950, 0.0
    %v953 = vmax.f32 %v951, 0.0
    %s954 = sld [smem:[#allocation2 + $0x280]]
    %v955 = vstv %s954
    %v956 = vmul.f32 %v955, %v93
    %v957 = vmul.f32 %v955, %v94
    %s958 = sld [smem:[#allocation2 + $0x281]]
    %v959 = vstv %s958
    %v960 = vmul.f32 %v959, %v93
    %v961 = vmul.f32 %v959, %v94
    %v962 = vmul.f32 %v959, %v95
    %966 = vrot.lane.b32.xlu0 %v960, 127
    %v967 = vpop.permute.xlu0 %966
    %968 = vrot.lane.b32.xlu0 %v961, 127
    %v969 = vpop.permute.xlu0 %968
    %970 = vrot.lane.b32.xlu0 %v962, 127
    %v971 = vpop.permute.xlu0 %970
    %v972 = vsel %vm114, %v967, %v969
    %v973 = vsel %vm114, %v969, %v971
    %v976 = vadd.f32 %v956, %v972
    %v977 = vadd.f32 %v957, %v973
    %s978 = sld [smem:[#allocation2 + $0x282]]
    %v979 = vstv %s978
    %v980 = vmul.f32 %v979, %v93
    %v981 = vmul.f32 %v979, %v94
    %v982 = vmul.f32 %v979, %v95
    %986 = vrot.lane.b32.xlu0 %v980, 126
    %v987 = vpop.permute.xlu0 %986
    %988 = vrot.lane.b32.xlu0 %v981, 126
    %v989 = vpop.permute.xlu0 %988
    %990 = vrot.lane.b32.xlu0 %v982, 126
    %v991 = vpop.permute.xlu0 %990
    %v992 = vsel %vm135, %v987, %v989
    %v993 = vsel %vm135, %v989, %v991
    %v996 = vadd.f32 %v976, %v992
    %v997 = vadd.f32 %v977, %v993
    %s998 = sld [smem:[#allocation2 + $0x283]]
    %v999 = vstv %s998
    %v1000 = vmul.f32 %v999, %v93
    %v1001 = vmul.f32 %v999, %v94
    %v1002 = vmul.f32 %v999, %v95
    %1006 = vrot.lane.b32.xlu0 %v1000, 112
    %v1007 = vpop.permute.xlu0 %1006
    %1008 = vrot.lane.b32.xlu0 %v1001, 112
    %v1009 = vpop.permute.xlu0 %1008
    %1010 = vrot.lane.b32.xlu0 %v1002, 112
    %v1011 = vpop.permute.xlu0 %1010
    %v1012 = vsel %vm156, %v1007, %v1009
    %v1013 = vsel %vm156, %v1009, %v1011
    %v1016 = vadd.f32 %v996, %v1012
    %v1017 = vadd.f32 %v997, %v1013
    %s1018 = sld [smem:[#allocation2 + $0x284]]
    %v1019 = vstv %s1018
    %v1020 = vmul.f32 %v1019, %v93
    %v1021 = vmul.f32 %v1019, %v94
    %v1022 = vmul.f32 %v1019, %v95
    %1026 = vrot.lane.b32.xlu0 %v1020, 111
    %v1027 = vpop.permute.xlu0 %1026
    %1028 = vrot.lane.b32.xlu0 %v1021, 111
    %v1029 = vpop.permute.xlu0 %1028
    %1030 = vrot.lane.b32.xlu0 %v1022, 111
    %v1031 = vpop.permute.xlu0 %1030
    %v1032 = vsel %vm177, %v1027, %v1029
    %v1033 = vsel %vm177, %v1029, %v1031
    %v1036 = vadd.f32 %v1016, %v1032
    %v1037 = vadd.f32 %v1017, %v1033
    %s1038 = sld [smem:[#allocation2 + $0x285]]
    %v1039 = vstv %s1038
    %v1040 = vmul.f32 %v1039, %v93
    %v1041 = vmul.f32 %v1039, %v94
    %v1042 = vmul.f32 %v1039, %v95
    %1046 = vrot.lane.b32.xlu0 %v1040, 110
    %v1047 = vpop.permute.xlu0 %1046
    %1048 = vrot.lane.b32.xlu0 %v1041, 110
    %v1049 = vpop.permute.xlu0 %1048
    %1050 = vrot.lane.b32.xlu0 %v1042, 110
    %v1051 = vpop.permute.xlu0 %1050
    %v1052 = vsel %vm198, %v1047, %v1049
    %v1053 = vsel %vm198, %v1049, %v1051
    %v1056 = vadd.f32 %v1036, %v1052
    %v1057 = vadd.f32 %v1037, %v1053
    %s1058 = sld [smem:[#allocation2 + $0x286]]
    %v1059 = vstv %s1058
    %v1060 = vmul.f32 %v1059, %v93
    %v1061 = vmul.f32 %v1059, %v94
    %v1062 = vmul.f32 %v1059, %v95
    %1066 = vrot.lane.b32.xlu0 %v1060, 96
    %v1067 = vpop.permute.xlu0 %1066
    %1068 = vrot.lane.b32.xlu0 %v1061, 96
    %v1069 = vpop.permute.xlu0 %1068
    %1070 = vrot.lane.b32.xlu0 %v1062, 96
    %v1071 = vpop.permute.xlu0 %1070
    %v1072 = vsel %vm219, %v1067, %v1069
    %v1073 = vsel %vm219, %v1069, %v1071
    %v1076 = vadd.f32 %v1056, %v1072
    %v1077 = vadd.f32 %v1057, %v1073
    %s1078 = sld [smem:[#allocation2 + $0x287]]
    %v1079 = vstv %s1078
    %v1080 = vmul.f32 %v1079, %v93
    %v1081 = vmul.f32 %v1079, %v94
    %v1082 = vmul.f32 %v1079, %v95
    %1086 = vrot.lane.b32.xlu0 %v1080, 95
    %v1087 = vpop.permute.xlu0 %1086
    %1088 = vrot.lane.b32.xlu0 %v1081, 95
    %v1089 = vpop.permute.xlu0 %1088
    %1090 = vrot.lane.b32.xlu0 %v1082, 95
    %v1091 = vpop.permute.xlu0 %1090
    %v1092 = vsel %vm240, %v1087, %v1089
    %v1093 = vsel %vm240, %v1089, %v1091
    %v1096 = vadd.f32 %v1076, %v1092
    %v1097 = vadd.f32 %v1077, %v1093
    %s1098 = sld [smem:[#allocation2 + $0x288]]
    %v1099 = vstv %s1098
    %v1100 = vmul.f32 %v1099, %v93
    %v1101 = vmul.f32 %v1099, %v94
    %v1102 = vmul.f32 %v1099, %v95
    %1106 = vrot.lane.b32.xlu0 %v1100, 94
    %v1107 = vpop.permute.xlu0 %1106
    %1108 = vrot.lane.b32.xlu0 %v1101, 94
    %v1109 = vpop.permute.xlu0 %1108
    %1110 = vrot.lane.b32.xlu0 %v1102, 94
    %v1111 = vpop.permute.xlu0 %1110
    %v1112 = vsel %vm261, %v1107, %v1109
    %v1113 = vsel %vm261, %v1109, %v1111
    %v1116 = vadd.f32 %v1096, %v1112
    %v1117 = vadd.f32 %v1097, %v1113
    %s1118 = sld [smem:[#allocation5 + $0x5]]
    %v1119 = vstv %s1118
    %v1120 = vadd.f32 %v1116, %v1119
    %v1121 = vadd.f32 %v1117, %v1119
    %v1122 = vmax.f32 %v1120, 0.0
    %v1123 = vmax.f32 %v1121, 0.0
    %s1124 = sld [smem:[#allocation2 + $0x300]]
    %v1125 = vstv %s1124
    %v1126 = vmul.f32 %v1125, %v93
    %v1127 = vmul.f32 %v1125, %v94
    %s1128 = sld [smem:[#allocation2 + $0x301]]
    %v1129 = vstv %s1128
    %v1130 = vmul.f32 %v1129, %v93
    %v1131 = vmul.f32 %v1129, %v94
    %v1132 = vmul.f32 %v1129, %v95
    %1136 = vrot.lane.b32.xlu0 %v1130, 127
    %v1137 = vpop.permute.xlu0 %1136
    %1138 = vrot.lane.b32.xlu0 %v1131, 127
    %v1139 = vpop.permute.xlu0 %1138
    %1140 = vrot.lane.b32.xlu0 %v1132, 127
    %v1141 = vpop.permute.xlu0 %1140
    %v1142 = vsel %vm114, %v1137, %v1139
    %v1143 = vsel %vm114, %v1139, %v1141
    %v1146 = vadd.f32 %v1126, %v1142
    %v1147 = vadd.f32 %v1127, %v1143
    %s1148 = sld [smem:[#allocation2 + $0x302]]
    %v1149 = vstv %s1148
    %v1150 = vmul.f32 %v1149, %v93
    %v1151 = vmul.f32 %v1149, %v94
    %v1152 = vmul.f32 %v1149, %v95
    %1156 = vrot.lane.b32.xlu0 %v1150, 126
    %v1157 = vpop.permute.xlu0 %1156
    %1158 = vrot.lane.b32.xlu0 %v1151, 126
    %v1159 = vpop.permute.xlu0 %1158
    %1160 = vrot.lane.b32.xlu0 %v1152, 126
    %v1161 = vpop.permute.xlu0 %1160
    %v1162 = vsel %vm135, %v1157, %v1159
    %v1163 = vsel %vm135, %v1159, %v1161
    %v1166 = vadd.f32 %v1146, %v1162
    %v1167 = vadd.f32 %v1147, %v1163
    %s1168 = sld [smem:[#allocation2 + $0x303]]
    %v1169 = vstv %s1168
    %v1170 = vmul.f32 %v1169, %v93
    %v1171 = vmul.f32 %v1169, %v94
    %v1172 = vmul.f32 %v1169, %v95
    %1176 = vrot.lane.b32.xlu0 %v1170, 112
    %v1177 = vpop.permute.xlu0 %1176
    %1178 = vrot.lane.b32.xlu0 %v1171, 112
    %v1179 = vpop.permute.xlu0 %1178
    %1180 = vrot.lane.b32.xlu0 %v1172, 112
    %v1181 = vpop.permute.xlu0 %1180
    %v1182 = vsel %vm156, %v1177, %v1179
    %v1183 = vsel %vm156, %v1179, %v1181
    %v1186 = vadd.f32 %v1166, %v1182
    %v1187 = vadd.f32 %v1167, %v1183
    %s1188 = sld [smem:[#allocation2 + $0x304]]
    %v1189 = vstv %s1188
    %v1190 = vmul.f32 %v1189, %v93
    %v1191 = vmul.f32 %v1189, %v94
    %v1192 = vmul.f32 %v1189, %v95
    %1196 = vrot.lane.b32.xlu0 %v1190, 111
    %v1197 = vpop.permute.xlu0 %1196
    %1198 = vrot.lane.b32.xlu0 %v1191, 111
    %v1199 = vpop.permute.xlu0 %1198
    %1200 = vrot.lane.b32.xlu0 %v1192, 111
    %v1201 = vpop.permute.xlu0 %1200
    %v1202 = vsel %vm177, %v1197, %v1199
    %v1203 = vsel %vm177, %v1199, %v1201
    %v1206 = vadd.f32 %v1186, %v1202
    %v1207 = vadd.f32 %v1187, %v1203
    %s1208 = sld [smem:[#allocation2 + $0x305]]
    %v1209 = vstv %s1208
    %v1210 = vmul.f32 %v1209, %v93
    %v1211 = vmul.f32 %v1209, %v94
    %v1212 = vmul.f32 %v1209, %v95
    %1216 = vrot.lane.b32.xlu0 %v1210, 110
    %v1217 = vpop.permute.xlu0 %1216
    %1218 = vrot.lane.b32.xlu0 %v1211, 110
    %v1219 = vpop.permute.xlu0 %1218
    %1220 = vrot.lane.b32.xlu0 %v1212, 110
    %v1221 = vpop.permute.xlu0 %1220
    %v1222 = vsel %vm198, %v1217, %v1219
    %v1223 = vsel %vm198, %v1219, %v1221
    %v1226 = vadd.f32 %v1206, %v1222
    %v1227 = vadd.f32 %v1207, %v1223
    %s1228 = sld [smem:[#allocation2 + $0x306]]
    %v1229 = vstv %s1228
    %v1230 = vmul.f32 %v1229, %v93
    %v1231 = vmul.f32 %v1229, %v94
    %v1232 = vmul.f32 %v1229, %v95
    %1236 = vrot.lane.b32.xlu0 %v1230, 96
    %v1237 = vpop.permute.xlu0 %1236
    %1238 = vrot.lane.b32.xlu0 %v1231, 96
    %v1239 = vpop.permute.xlu0 %1238
    %1240 = vrot.lane.b32.xlu0 %v1232, 96
    %v1241 = vpop.permute.xlu0 %1240
    %v1242 = vsel %vm219, %v1237, %v1239
    %v1243 = vsel %vm219, %v1239, %v1241
    %v1246 = vadd.f32 %v1226, %v1242
    %v1247 = vadd.f32 %v1227, %v1243
    %s1248 = sld [smem:[#allocation2 + $0x307]]
    %v1249 = vstv %s1248
    %v1250 = vmul.f32 %v1249, %v93
    %v1251 = vmul.f32 %v1249, %v94
    %v1252 = vmul.f32 %v1249, %v95
    %1256 = vrot.lane.b32.xlu0 %v1250, 95
    %v1257 = vpop.permute.xlu0 %1256
    %1258 = vrot.lane.b32.xlu0 %v1251, 95
    %v1259 = vpop.permute.xlu0 %1258
    %1260 = vrot.lane.b32.xlu0 %v1252, 95
    %v1261 = vpop.permute.xlu0 %1260
    %v1262 = vsel %vm240, %v1257, %v1259
    %v1263 = vsel %vm240, %v1259, %v1261
    %v1266 = vadd.f32 %v1246, %v1262
    %v1267 = vadd.f32 %v1247, %v1263
    %s1268 = sld [smem:[#allocation2 + $0x308]]
    %v1269 = vstv %s1268
    %v1270 = vmul.f32 %v1269, %v93
    %v1271 = vmul.f32 %v1269, %v94
    %v1272 = vmul.f32 %v1269, %v95
    %1276 = vrot.lane.b32.xlu0 %v1270, 94
    %v1277 = vpop.permute.xlu0 %1276
    %1278 = vrot.lane.b32.xlu0 %v1271, 94
    %v1279 = vpop.permute.xlu0 %1278
    %1280 = vrot.lane.b32.xlu0 %v1272, 94
    %v1281 = vpop.permute.xlu0 %1280
    %v1282 = vsel %vm261, %v1277, %v1279
    %v1283 = vsel %vm261, %v1279, %v1281
    %v1286 = vadd.f32 %v1266, %v1282
    %v1287 = vadd.f32 %v1267, %v1283
    %s1288 = sld [smem:[#allocation5 + $0x6]]
    %v1289 = vstv %s1288
    %v1290 = vadd.f32 %v1286, %v1289
    %v1291 = vadd.f32 %v1287, %v1289
    %v1292 = vmax.f32 %v1290, 0.0
    %v1293 = vmax.f32 %v1291, 0.0
    %s1294 = sld [smem:[#allocation2 + $0x380]]
    %v1295 = vstv %s1294
    %v1296 = vmul.f32 %v1295, %v93
    %v1297 = vmul.f32 %v1295, %v94
    %s1298 = sld [smem:[#allocation2 + $0x381]]
    %v1299 = vstv %s1298
    %v1300 = vmul.f32 %v1299, %v93
    %v1301 = vmul.f32 %v1299, %v94
    %v1302 = vmul.f32 %v1299, %v95
    %1306 = vrot.lane.b32.xlu0 %v1300, 127
    %v1307 = vpop.permute.xlu0 %1306
    %1308 = vrot.lane.b32.xlu0 %v1301, 127
    %v1309 = vpop.permute.xlu0 %1308
    %1310 = vrot.lane.b32.xlu0 %v1302, 127
    %v1311 = vpop.permute.xlu0 %1310
    %v1312 = vsel %vm114, %v1307, %v1309
    %v1313 = vsel %vm114, %v1309, %v1311
    %v1316 = vadd.f32 %v1296, %v1312
    %v1317 = vadd.f32 %v1297, %v1313
    %s1318 = sld [smem:[#allocation2 + $0x382]]
    %v1319 = vstv %s1318
    %v1320 = vmul.f32 %v1319, %v93
    %v1321 = vmul.f32 %v1319, %v94
    %v1322 = vmul.f32 %v1319, %v95
    %1326 = vrot.lane.b32.xlu0 %v1320, 126
    %v1327 = vpop.permute.xlu0 %1326
    %1328 = vrot.lane.b32.xlu0 %v1321, 126
    %v1329 = vpop.permute.xlu0 %1328
    %1330 = vrot.lane.b32.xlu0 %v1322, 126
    %v1331 = vpop.permute.xlu0 %1330
    %v1332 = vsel %vm135, %v1327, %v1329
    %v1333 = vsel %vm135, %v1329, %v1331
    %v1336 = vadd.f32 %v1316, %v1332
    %v1337 = vadd.f32 %v1317, %v1333
    %s1338 = sld [smem:[#allocation2 + $0x383]]
    %v1339 = vstv %s1338
    %v1340 = vmul.f32 %v1339, %v93
    %v1341 = vmul.f32 %v1339, %v94
    %v1342 = vmul.f32 %v1339, %v95
    %1346 = vrot.lane.b32.xlu0 %v1340, 112
    %v1347 = vpop.permute.xlu0 %1346
    %1348 = vrot.lane.b32.xlu0 %v1341, 112
    %v1349 = vpop.permute.xlu0 %1348
    %1350 = vrot.lane.b32.xlu0 %v1342, 112
    %v1351 = vpop.permute.xlu0 %1350
    %v1352 = vsel %vm156, %v1347, %v1349
    %v1353 = vsel %vm156, %v1349, %v1351
    %v1356 = vadd.f32 %v1336, %v1352
    %v1357 = vadd.f32 %v1337, %v1353
    %s1358 = sld [smem:[#allocation2 + $0x384]]
    %v1359 = vstv %s1358
    %v1360 = vmul.f32 %v1359, %v93
    %v1361 = vmul.f32 %v1359, %v94
    %v1362 = vmul.f32 %v1359, %v95
    %1366 = vrot.lane.b32.xlu0 %v1360, 111
    %v1367 = vpop.permute.xlu0 %1366
    %1368 = vrot.lane.b32.xlu0 %v1361, 111
    %v1369 = vpop.permute.xlu0 %1368
    %1370 = vrot.lane.b32.xlu0 %v1362, 111
    %v1371 = vpop.permute.xlu0 %1370
    %v1372 = vsel %vm177, %v1367, %v1369
    %v1373 = vsel %vm177, %v1369, %v1371
    %v1376 = vadd.f32 %v1356, %v1372
    %v1377 = vadd.f32 %v1357, %v1373
    %s1378 = sld [smem:[#allocation2 + $0x385]]
    %v1379 = vstv %s1378
    %v1380 = vmul.f32 %v1379, %v93
    %v1381 = vmul.f32 %v1379, %v94
    %v1382 = vmul.f32 %v1379, %v95
    %1386 = vrot.lane.b32.xlu0 %v1380, 110
    %v1387 = vpop.permute.xlu0 %1386
    %1388 = vrot.lane.b32.xlu0 %v1381, 110
    %v1389 = vpop.permute.xlu0 %1388
    %1390 = vrot.lane.b32.xlu0 %v1382, 110
    %v1391 = vpop.permute.xlu0 %1390
    %v1392 = vsel %vm198, %v1387, %v1389
    %v1393 = vsel %vm198, %v1389, %v1391
    %v1396 = vadd.f32 %v1376, %v1392
    %v1397 = vadd.f32 %v1377, %v1393
    %s1398 = sld [smem:[#allocation2 + $0x386]]
    %v1399 = vstv %s1398
    %v1400 = vmul.f32 %v1399, %v93
    %v1401 = vmul.f32 %v1399, %v94
    %v1402 = vmul.f32 %v1399, %v95
    %1406 = vrot.lane.b32.xlu0 %v1400, 96
    %v1407 = vpop.permute.xlu0 %1406
    %1408 = vrot.lane.b32.xlu0 %v1401, 96
    %v1409 = vpop.permute.xlu0 %1408
    %1410 = vrot.lane.b32.xlu0 %v1402, 96
    %v1411 = vpop.permute.xlu0 %1410
    %v1412 = vsel %vm219, %v1407, %v1409
    %v1413 = vsel %vm219, %v1409, %v1411
    %v1416 = vadd.f32 %v1396, %v1412
    %v1417 = vadd.f32 %v1397, %v1413
    %s1418 = sld [smem:[#allocation2 + $0x387]]
    %v1419 = vstv %s1418
    %v1420 = vmul.f32 %v1419, %v93
    %v1421 = vmul.f32 %v1419, %v94
    %v1422 = vmul.f32 %v1419, %v95
    %1426 = vrot.lane.b32.xlu0 %v1420, 95
    %v1427 = vpop.permute.xlu0 %1426
    %1428 = vrot.lane.b32.xlu0 %v1421, 95
    %v1429 = vpop.permute.xlu0 %1428
    %1430 = vrot.lane.b32.xlu0 %v1422, 95
    %v1431 = vpop.permute.xlu0 %1430
    %v1432 = vsel %vm240, %v1427, %v1429
    %v1433 = vsel %vm240, %v1429, %v1431
    %v1436 = vadd.f32 %v1416, %v1432
    %v1437 = vadd.f32 %v1417, %v1433
    %s1438 = sld [smem:[#allocation2 + $0x388]]
    %v1439 = vstv %s1438
    %v1440 = vmul.f32 %v1439, %v93
    %v1441 = vmul.f32 %v1439, %v94
    %v1442 = vmul.f32 %v1439, %v95
    %1446 = vrot.lane.b32.xlu0 %v1440, 94
    %v1447 = vpop.permute.xlu0 %1446
    %1448 = vrot.lane.b32.xlu0 %v1441, 94
    %v1449 = vpop.permute.xlu0 %1448
    %1450 = vrot.lane.b32.xlu0 %v1442, 94
    %v1451 = vpop.permute.xlu0 %1450
    %v1452 = vsel %vm261, %v1447, %v1449
    %v1453 = vsel %vm261, %v1449, %v1451
    %v1456 = vadd.f32 %v1436, %v1452
    %v1457 = vadd.f32 %v1437, %v1453
    %s1458 = sld [smem:[#allocation5 + $0x7]]
    %v1459 = vstv %s1458
    %v1460 = vadd.f32 %v1456, %v1459
    %v1461 = vadd.f32 %v1457, %v1459
    %v1462 = vmax.f32 %v1460, 0.0
    %v1463 = vmax.f32 %v1461, 0.0
    loop: start=0, step=1, limit=16
    $region50: #{image_classifier_forward.1} parent=1 // loop_pre_header
      _
    $region51: #{image_classifier_forward.1} parent=1 // loop_header
      %s1465 = sphi 0, %s1469
      %p1466 = scmp.ge.s32.totalorder %s1465, 16
      %v1470 = vphi 0.0, %v2700
    $region52: #{image_classifier_forward.1} parent=1 // loop_header_branch
      %1468 = sbr.rel (%p1466) target = $region56
    $region53: #{image_classifier_forward.1} parent=1 // loop_body
      %s1471 = smul.u32 %s1465, 128
      %s1472 = sld [smem:[#allocation7 + %s1471]]
      %v1473 = vstv %s1472
      %v1474 = vmul.f32 %v1473, %v272
      %v1475 = vmul.f32 %v1473, %v273
      %s1476 = sadd.s32 %s1471, 1
      %s1477 = sld [smem:[#allocation7 + %s1476]]
      %v1478 = vstv %s1477
      %v1479 = vmul.f32 %v1478, %v272
      %v1480 = vmul.f32 %v1478, %v273
      %1483 = vrot.lane.b32.xlu0 %v1479, 127
      %v1484 = vpop.permute.xlu0 %1483
      %1485 = vrot.lane.b32.xlu0 %v1480, 127
      %v1486 = vpop.permute.xlu0 %1485
      %v1487 = vsel %vm114, %v1484, %v1486
      %v1490 = vadd.f32 %v1474, %v1487
      %v1491 = vadd.f32 %v1475, %v1486
      %s1492 = sadd.s32 %s1471, 2
      %s1493 = sld [smem:[#allocation7 + %s1492]]
      %v1494 = vstv %s1493
      %v1495 = vmul.f32 %v1494, %v272
      %v1496 = vmul.f32 %v1494, %v273
      %1499 = vrot.lane.b32.xlu0 %v1495, 126
      %v1500 = vpop.permute.xlu0 %1499
      %1501 = vrot.lane.b32.xlu0 %v1496, 126
      %v1502 = vpop.permute.xlu0 %1501
      %v1503 = vsel %vm135, %v1500, %v1502
      %v1506 = vadd.f32 %v1490, %v1503
      %v1507 = vadd.f32 %v1491, %v1502
      %s1508 = sadd.s32 %s1471, 3
      %s1509 = sld [smem:[#allocation7 + %s1508]]
      %v1510 = vstv %s1509
      %v1511 = vmul.f32 %v1510, %v272
      %v1512 = vmul.f32 %v1510, %v273
      %1515 = vrot.lane.b32.xlu0 %v1511, 112
      %v1516 = vpop.permute.xlu0 %1515
      %1517 = vrot.lane.b32.xlu0 %v1512, 112
      %v1518 = vpop.permute.xlu0 %1517
      %v1519 = vsel %vm156, %v1516, %v1518
      %v1522 = vadd.f32 %v1506, %v1519
      %v1523 = vadd.f32 %v1507, %v1518
      %s1524 = sadd.s32 %s1471, 4
      %s1525 = sld [smem:[#allocation7 + %s1524]]
      %v1526 = vstv %s1525
      %v1527 = vmul.f32 %v1526, %v272
      %v1528 = vmul.f32 %v1526, %v273
      %1531 = vrot.lane.b32.xlu0 %v1527, 111
      %v1532 = vpop.permute.xlu0 %1531
      %1533 = vrot.lane.b32.xlu0 %v1528, 111
      %v1534 = vpop.permute.xlu0 %1533
      %v1535 = vsel %vm177, %v1532, %v1534
      %v1538 = vadd.f32 %v1522, %v1535
      %v1539 = vadd.f32 %v1523, %v1534
      %s1540 = sadd.s32 %s1471, 5
      %s1541 = sld [smem:[#allocation7 + %s1540]]
      %v1542 = vstv %s1541
      %v1543 = vmul.f32 %v1542, %v272
      %v1544 = vmul.f32 %v1542, %v273
      %1547 = vrot.lane.b32.xlu0 %v1543, 110
      %v1548 = vpop.permute.xlu0 %1547
      %1549 = vrot.lane.b32.xlu0 %v1544, 110
      %v1550 = vpop.permute.xlu0 %1549
      %v1551 = vsel %vm198, %v1548, %v1550
      %v1554 = vadd.f32 %v1538, %v1551
      %v1555 = vadd.f32 %v1539, %v1550
      %s1556 = sadd.s32 %s1471, 6
      %s1557 = sld [smem:[#allocation7 + %s1556]]
      %v1558 = vstv %s1557
      %v1559 = vmul.f32 %v1558, %v272
      %v1560 = vmul.f32 %v1558, %v273
      %1563 = vrot.lane.b32.xlu0 %v1559, 96
      %v1564 = vpop.permute.xlu0 %1563
      %1565 = vrot.lane.b32.xlu0 %v1560, 96
      %v1566 = vpop.permute.xlu0 %1565
      %v1567 = vsel %vm219, %v1564, %v1566
      %v1570 = vadd.f32 %v1554, %v1567
      %v1571 = vadd.f32 %v1555, %v1566
      %s1572 = sadd.s32 %s1471, 7
      %s1573 = sld [smem:[#allocation7 + %s1572]]
      %v1574 = vstv %s1573
      %v1575 = vmul.f32 %v1574, %v272
      %v1576 = vmul.f32 %v1574, %v273
      %1579 = vrot.lane.b32.xlu0 %v1575, 95
      %v1580 = vpop.permute.xlu0 %1579
      %1581 = vrot.lane.b32.xlu0 %v1576, 95
      %v1582 = vpop.permute.xlu0 %1581
      %v1583 = vsel %vm240, %v1580, %v1582
      %v1586 = vadd.f32 %v1570, %v1583
      %v1587 = vadd.f32 %v1571, %v1582
      %s1588 = sadd.s32 %s1471, 8
      %s1589 = sld [smem:[#allocation7 + %s1588]]
      %v1590 = vstv %s1589
      %v1591 = vmul.f32 %v1590, %v272
      %v1592 = vmul.f32 %v1590, %v273
      %1595 = vrot.lane.b32.xlu0 %v1591, 94
      %v1596 = vpop.permute.xlu0 %1595
      %1597 = vrot.lane.b32.xlu0 %v1592, 94
      %v1598 = vpop.permute.xlu0 %1597
      %v1599 = vsel %vm261, %v1596, %v1598
      %v1602 = vadd.f32 %v1586, %v1599
      %v1603 = vadd.f32 %v1587, %v1598
      %s1604 = sadd.s32 %s1471, 9
      %s1605 = sld [smem:[#allocation7 + %s1604]]
      %v1606 = vstv %s1605
      %v1607 = vmul.f32 %v1606, %v442
      %v1608 = vmul.f32 %v1606, %v443
      %v1609 = vadd.f32 %v1602, %v1607
      %v1610 = vadd.f32 %v1603, %v1608
      %s1611 = sadd.s32 %s1471, 10
      %s1612 = sld [smem:[#allocation7 + %s1611]]
      %v1613 = vstv %s1612
      %v1614 = vmul.f32 %v1613, %v442
      %v1615 = vmul.f32 %v1613, %v443
      %1618 = vrot.lane.b32.xlu0 %v1614, 127
      %v1619 = vpop.permute.xlu0 %1618
      %1620 = vrot.lane.b32.xlu0 %v1615, 127
      %v1621 = vpop.permute.xlu0 %1620
      %v1622 = vsel %vm114, %v1619, %v1621
      %v1625 = vadd.f32 %v1609, %v1622
      %v1626 = vadd.f32 %v1610, %v1621
      %s1627 = sadd.s32 %s1471, 11
      %s1628 = sld [smem:[#allocation7 + %s1627]]
      %v1629 = vstv %s1628
      %v1630 = vmul.f32 %v1629, %v442
      %v1631 = vmul.f32 %v1629, %v443
      %1634 = vrot.lane.b32.xlu0 %v1630, 126
      %v1635 = vpop.permute.xlu0 %1634
      %1636 = vrot.lane.b32.xlu0 %v1631, 126
      %v1637 = vpop.permute.xlu0 %1636
      %v1638 = vsel %vm135, %v1635, %v1637
      %v1641 = vadd.f32 %v1625, %v1638
      %v1642 = vadd.f32 %v1626, %v1637
      %s1643 = sadd.s32 %s1471, 12
      %s1644 = sld [smem:[#allocation7 + %s1643]]
      %v1645 = vstv %s1644
      %v1646 = vmul.f32 %v1645, %v442
      %v1647 = vmul.f32 %v1645, %v443
      %1650 = vrot.lane.b32.xlu0 %v1646, 112
      %v1651 = vpop.permute.xlu0 %1650
      %1652 = vrot.lane.b32.xlu0 %v1647, 112
      %v1653 = vpop.permute.xlu0 %1652
      %v1654 = vsel %vm156, %v1651, %v1653
      %v1657 = vadd.f32 %v1641, %v1654
      %v1658 = vadd.f32 %v1642, %v1653
      %s1659 = sadd.s32 %s1471, 13
      %s1660 = sld [smem:[#allocation7 + %s1659]]
      %v1661 = vstv %s1660
      %v1662 = vmul.f32 %v1661, %v442
      %v1663 = vmul.f32 %v1661, %v443
      %1666 = vrot.lane.b32.xlu0 %v1662, 111
      %v1667 = vpop.permute.xlu0 %1666
      %1668 = vrot.lane.b32.xlu0 %v1663, 111
      %v1669 = vpop.permute.xlu0 %1668
      %v1670 = vsel %vm177, %v1667, %v1669
      %v1673 = vadd.f32 %v1657, %v1670
      %v1674 = vadd.f32 %v1658, %v1669
      %s1675 = sadd.s32 %s1471, 14
      %s1676 = sld [smem:[#allocation7 + %s1675]]
      %v1677 = vstv %s1676
      %v1678 = vmul.f32 %v1677, %v442
      %v1679 = vmul.f32 %v1677, %v443
      %1682 = vrot.lane.b32.xlu0 %v1678, 110
      %v1683 = vpop.permute.xlu0 %1682
      %1684 = vrot.lane.b32.xlu0 %v1679, 110
      %v1685 = vpop.permute.xlu0 %1684
      %v1686 = vsel %vm198, %v1683, %v1685
      %v1689 = vadd.f32 %v1673, %v1686
      %v1690 = vadd.f32 %v1674, %v1685
      %s1691 = sadd.s32 %s1471, 15
      %s1692 = sld [smem:[#allocation7 + %s1691]]
      %v1693 = vstv %s1692
      %v1694 = vmul.f32 %v1693, %v442
      %v1695 = vmul.f32 %v1693, %v443
      %1698 = vrot.lane.b32.xlu0 %v1694, 96
      %v1699 = vpop.permute.xlu0 %1698
      %1700 = vrot.lane.b32.xlu0 %v1695, 96
      %v1701 = vpop.permute.xlu0 %1700
      %v1702 = vsel %vm219, %v1699, %v1701
      %v1705 = vadd.f32 %v1689, %v1702
      %v1706 = vadd.f32 %v1690, %v1701
      %s1707 = sadd.s32 %s1471, 16
      %s1708 = sld [smem:[#allocation7 + %s1707]]
      %v1709 = vstv %s1708
      %v1710 = vmul.f32 %v1709, %v442
      %v1711 = vmul.f32 %v1709, %v443
      %1714 = vrot.lane.b32.xlu0 %v1710, 95
      %v1715 = vpop.permute.xlu0 %1714
      %1716 = vrot.lane.b32.xlu0 %v1711, 95
      %v1717 = vpop.permute.xlu0 %1716
      %v1718 = vsel %vm240, %v1715, %v1717
      %v1721 = vadd.f32 %v1705, %v1718
      %v1722 = vadd.f32 %v1706, %v1717
      %s1723 = sadd.s32 %s1471, 17
      %s1724 = sld [smem:[#allocation7 + %s1723]]
      %v1725 = vstv %s1724
      %v1726 = vmul.f32 %v1725, %v442
      %v1727 = vmul.f32 %v1725, %v443
      %1730 = vrot.lane.b32.xlu0 %v1726, 94
      %v1731 = vpop.permute.xlu0 %1730
      %1732 = vrot.lane.b32.xlu0 %v1727, 94
      %v1733 = vpop.permute.xlu0 %1732
      %v1734 = vsel %vm261, %v1731, %v1733
      %v1737 = vadd.f32 %v1721, %v1734
      %v1738 = vadd.f32 %v1722, %v1733
      %s1739 = sadd.s32 %s1471, 18
      %s1740 = sld [smem:[#allocation7 + %s1739]]
      %v1741 = vstv %s1740
      %v1742 = vmul.f32 %v1741, %v612
      %v1743 = vmul.f32 %v1741, %v613
      %v1744 = vadd.f32 %v1737, %v1742
      %v1745 = vadd.f32 %v1738, %v1743
      %s1746 = sadd.s32 %s1471, 19
      %s1747 = sld [smem:[#allocation7 + %s1746]]
      %v1748 = vstv %s1747
      %v1749 = vmul.f32 %v1748, %v612
      %v1750 = vmul.f32 %v1748, %v613
      %1753 = vrot.lane.b32.xlu0 %v1749, 127
      %v1754 = vpop.permute.xlu0 %1753
      %1755 = vrot.lane.b32.xlu0 %v1750, 127
      %v1756 = vpop.permute.xlu0 %1755
      %v1757 = vsel %vm114, %v1754, %v1756
      %v1760 = vadd.f32 %v1744, %v1757
      %v1761 = vadd.f32 %v1745, %v1756
      %s1762 = sadd.s32 %s1471, 20
      %s1763 = sld [smem:[#allocation7 + %s1762]]
      %v1764 = vstv %s1763
      %v1765 = vmul.f32 %v1764, %v612
      %v1766 = vmul.f32 %v1764, %v613
      %1769 = vrot.lane.b32.xlu0 %v1765, 126
      %v1770 = vpop.permute.xlu0 %1769
      %1771 = vrot.lane.b32.xlu0 %v1766, 126
      %v1772 = vpop.permute.xlu0 %1771
      %v1773 = vsel %vm135, %v1770, %v1772
      %v1776 = vadd.f32 %v1760, %v1773
      %v1777 = vadd.f32 %v1761, %v1772
      %s1778 = sadd.s32 %s1471, 21
      %s1779 = sld [smem:[#allocation7 + %s1778]]
      %v1780 = vstv %s1779
      %v1781 = vmul.f32 %v1780, %v612
      %v1782 = vmul.f32 %v1780, %v613
      %1785 = vrot.lane.b32.xlu0 %v1781, 112
      %v1786 = vpop.permute.xlu0 %1785
      %1787 = vrot.lane.b32.xlu0 %v1782, 112
      %v1788 = vpop.permute.xlu0 %1787
      %v1789 = vsel %vm156, %v1786, %v1788
      %v1792 = vadd.f32 %v1776, %v1789
      %v1793 = vadd.f32 %v1777, %v1788
      %s1794 = sadd.s32 %s1471, 22
      %s1795 = sld [smem:[#allocation7 + %s1794]]
      %v1796 = vstv %s1795
      %v1797 = vmul.f32 %v1796, %v612
      %v1798 = vmul.f32 %v1796, %v613
      %1801 = vrot.lane.b32.xlu0 %v1797, 111
      %v1802 = vpop.permute.xlu0 %1801
      %1803 = vrot.lane.b32.xlu0 %v1798, 111
      %v1804 = vpop.permute.xlu0 %1803
      %v1805 = vsel %vm177, %v1802, %v1804
      %v1808 = vadd.f32 %v1792, %v1805
      %v1809 = vadd.f32 %v1793, %v1804
      %s1810 = sadd.s32 %s1471, 23
      %s1811 = sld [smem:[#allocation7 + %s1810]]
      %v1812 = vstv %s1811
      %v1813 = vmul.f32 %v1812, %v612
      %v1814 = vmul.f32 %v1812, %v613
      %1817 = vrot.lane.b32.xlu0 %v1813, 110
      %v1818 = vpop.permute.xlu0 %1817
      %1819 = vrot.lane.b32.xlu0 %v1814, 110
      %v1820 = vpop.permute.xlu0 %1819
      %v1821 = vsel %vm198, %v1818, %v1820
      %v1824 = vadd.f32 %v1808, %v1821
      %v1825 = vadd.f32 %v1809, %v1820
      %s1826 = sadd.s32 %s1471, 24
      %s1827 = sld [smem:[#allocation7 + %s1826]]
      %v1828 = vstv %s1827
      %v1829 = vmul.f32 %v1828, %v612
      %v1830 = vmul.f32 %v1828, %v613
      %1833 = vrot.lane.b32.xlu0 %v1829, 96
      %v1834 = vpop.permute.xlu0 %1833
      %1835 = vrot.lane.b32.xlu0 %v1830, 96
      %v1836 = vpop.permute.xlu0 %1835
      %v1837 = vsel %vm219, %v1834, %v1836
      %v1840 = vadd.f32 %v1824, %v1837
      %v1841 = vadd.f32 %v1825, %v1836
      %s1842 = sadd.s32 %s1471, 25
      %s1843 = sld [smem:[#allocation7 + %s1842]]
      %v1844 = vstv %s1843
      %v1845 = vmul.f32 %v1844, %v612
      %v1846 = vmul.f32 %v1844, %v613
      %1849 = vrot.lane.b32.xlu0 %v1845, 95
      %v1850 = vpop.permute.xlu0 %1849
      %1851 = vrot.lane.b32.xlu0 %v1846, 95
      %v1852 = vpop.permute.xlu0 %1851
      %v1853 = vsel %vm240, %v1850, %v1852
      %v1856 = vadd.f32 %v1840, %v1853
      %v1857 = vadd.f32 %v1841, %v1852
      %s1858 = sadd.s32 %s1471, 26
      %s1859 = sld [smem:[#allocation7 + %s1858]]
      %v1860 = vstv %s1859
      %v1861 = vmul.f32 %v1860, %v612
      %v1862 = vmul.f32 %v1860, %v613
      %1865 = vrot.lane.b32.xlu0 %v1861, 94
      %v1866 = vpop.permute.xlu0 %1865
      %1867 = vrot.lane.b32.xlu0 %v1862, 94
      %v1868 = vpop.permute.xlu0 %1867
      %v1869 = vsel %vm261, %v1866, %v1868
      %v1872 = vadd.f32 %v1856, %v1869
      %v1873 = vadd.f32 %v1857, %v1868
      %s1874 = sadd.s32 %s1471, 27
      %s1875 = sld [smem:[#allocation7 + %s1874]]
      %v1876 = vstv %s1875
      %v1877 = vmul.f32 %v1876, %v782
      %v1878 = vmul.f32 %v1876, %v783
      %v1879 = vadd.f32 %v1872, %v1877
      %v1880 = vadd.f32 %v1873, %v1878
      %s1881 = sadd.s32 %s1471, 28
      %s1882 = sld [smem:[#allocation7 + %s1881]]
      %v1883 = vstv %s1882
      %v1884 = vmul.f32 %v1883, %v782
      %v1885 = vmul.f32 %v1883, %v783
      %1888 = vrot.lane.b32.xlu0 %v1884, 127
      %v1889 = vpop.permute.xlu0 %1888
      %1890 = vrot.lane.b32.xlu0 %v1885, 127
      %v1891 = vpop.permute.xlu0 %1890
      %v1892 = vsel %vm114, %v1889, %v1891
      %v1895 = vadd.f32 %v1879, %v1892
      %v1896 = vadd.f32 %v1880, %v1891
      %s1897 = sadd.s32 %s1471, 29
      %s1898 = sld [smem:[#allocation7 + %s1897]]
      %v1899 = vstv %s1898
      %v1900 = vmul.f32 %v1899, %v782
      %v1901 = vmul.f32 %v1899, %v783
      %1904 = vrot.lane.b32.xlu0 %v1900, 126
      %v1905 = vpop.permute.xlu0 %1904
      %1906 = vrot.lane.b32.xlu0 %v1901, 126
      %v1907 = vpop.permute.xlu0 %1906
      %v1908 = vsel %vm135, %v1905, %v1907
      %v1911 = vadd.f32 %v1895, %v1908
      %v1912 = vadd.f32 %v1896, %v1907
      %s1913 = sadd.s32 %s1471, 30
      %s1914 = sld [smem:[#allocation7 + %s1913]]
      %v1915 = vstv %s1914
      %v1916 = vmul.f32 %v1915, %v782
      %v1917 = vmul.f32 %v1915, %v783
      %1920 = vrot.lane.b32.xlu0 %v1916, 112
      %v1921 = vpop.permute.xlu0 %1920
      %1922 = vrot.lane.b32.xlu0 %v1917, 112
      %v1923 = vpop.permute.xlu0 %1922
      %v1924 = vsel %vm156, %v1921, %v1923
      %v1927 = vadd.f32 %v1911, %v1924
      %v1928 = vadd.f32 %v1912, %v1923
      %s1929 = sadd.s32 %s1471, 31
      %s1930 = sld [smem:[#allocation7 + %s1929]]
      %v1931 = vstv %s1930
      %v1932 = vmul.f32 %v1931, %v782
      %v1933 = vmul.f32 %v1931, %v783
      %1936 = vrot.lane.b32.xlu0 %v1932, 111
      %v1937 = vpop.permute.xlu0 %1936
      %1938 = vrot.lane.b32.xlu0 %v1933, 111
      %v1939 = vpop.permute.xlu0 %1938
      %v1940 = vsel %vm177, %v1937, %v1939
      %v1943 = vadd.f32 %v1927, %v1940
      %v1944 = vadd.f32 %v1928, %v1939
      %s1945 = sadd.s32 %s1471, 32
      %s1946 = sld [smem:[#allocation7 + %s1945]]
      %v1947 = vstv %s1946
      %v1948 = vmul.f32 %v1947, %v782
      %v1949 = vmul.f32 %v1947, %v783
      %1952 = vrot.lane.b32.xlu0 %v1948, 110
      %v1953 = vpop.permute.xlu0 %1952
      %1954 = vrot.lane.b32.xlu0 %v1949, 110
      %v1955 = vpop.permute.xlu0 %1954
      %v1956 = vsel %vm198, %v1953, %v1955
      %v1959 = vadd.f32 %v1943, %v1956
      %v1960 = vadd.f32 %v1944, %v1955
      %s1961 = sadd.s32 %s1471, 33
      %s1962 = sld [smem:[#allocation7 + %s1961]]
      %v1963 = vstv %s1962
      %v1964 = vmul.f32 %v1963, %v782
      %v1965 = vmul.f32 %v1963, %v783
      %1968 = vrot.lane.b32.xlu0 %v1964, 96
      %v1969 = vpop.permute.xlu0 %1968
      %1970 = vrot.lane.b32.xlu0 %v1965, 96
      %v1971 = vpop.permute.xlu0 %1970
      %v1972 = vsel %vm219, %v1969, %v1971
      %v1975 = vadd.f32 %v1959, %v1972
      %v1976 = vadd.f32 %v1960, %v1971
      %s1977 = sadd.s32 %s1471, 34
      %s1978 = sld [smem:[#allocation7 + %s1977]]
      %v1979 = vstv %s1978
      %v1980 = vmul.f32 %v1979, %v782
      %v1981 = vmul.f32 %v1979, %v783
      %1984 = vrot.lane.b32.xlu0 %v1980, 95
      %v1985 = vpop.permute.xlu0 %1984
      %1986 = vrot.lane.b32.xlu0 %v1981, 95
      %v1987 = vpop.permute.xlu0 %1986
      %v1988 = vsel %vm240, %v1985, %v1987
      %v1991 = vadd.f32 %v1975, %v1988
      %v1992 = vadd.f32 %v1976, %v1987
      %s1993 = sadd.s32 %s1471, 35
      %s1994 = sld [smem:[#allocation7 + %s1993]]
      %v1995 = vstv %s1994
      %v1996 = vmul.f32 %v1995, %v782
      %v1997 = vmul.f32 %v1995, %v783
      %2000 = vrot.lane.b32.xlu0 %v1996, 94
      %v2001 = vpop.permute.xlu0 %2000
      %2002 = vrot.lane.b32.xlu0 %v1997, 94
      %v2003 = vpop.permute.xlu0 %2002
      %v2004 = vsel %vm261, %v2001, %v2003
      %v2007 = vadd.f32 %v1991, %v2004
      %v2008 = vadd.f32 %v1992, %v2003
      %s2009 = sadd.s32 %s1471, 36
      %s2010 = sld [smem:[#allocation7 + %s2009]]
      %v2011 = vstv %s2010
      %v2012 = vmul.f32 %v2011, %v952
      %v2013 = vmul.f32 %v2011, %v953
      %v2014 = vadd.f32 %v2007, %v2012
      %v2015 = vadd.f32 %v2008, %v2013
      %s2016 = sadd.s32 %s1471, 37
      %s2017 = sld [smem:[#allocation7 + %s2016]]
      %v2018 = vstv %s2017
      %v2019 = vmul.f32 %v2018, %v952
      %v2020 = vmul.f32 %v2018, %v953
      %2023 = vrot.lane.b32.xlu0 %v2019, 127
      %v2024 = vpop.permute.xlu0 %2023
      %2025 = vrot.lane.b32.xlu0 %v2020, 127
      %v2026 = vpop.permute.xlu0 %2025
      %v2027 = vsel %vm114, %v2024, %v2026
      %v2030 = vadd.f32 %v2014, %v2027
      %v2031 = vadd.f32 %v2015, %v2026
      %s2032 = sadd.s32 %s1471, 38
      %s2033 = sld [smem:[#allocation7 + %s2032]]
      %v2034 = vstv %s2033
      %v2035 = vmul.f32 %v2034, %v952
      %v2036 = vmul.f32 %v2034, %v953
      %2039 = vrot.lane.b32.xlu0 %v2035, 126
      %v2040 = vpop.permute.xlu0 %2039
      %2041 = vrot.lane.b32.xlu0 %v2036, 126
      %v2042 = vpop.permute.xlu0 %2041
      %v2043 = vsel %vm135, %v2040, %v2042
      %v2046 = vadd.f32 %v2030, %v2043
      %v2047 = vadd.f32 %v2031, %v2042
      %s2048 = sadd.s32 %s1471, 39
      %s2049 = sld [smem:[#allocation7 + %s2048]]
      %v2050 = vstv %s2049
      %v2051 = vmul.f32 %v2050, %v952
      %v2052 = vmul.f32 %v2050, %v953
      %2055 = vrot.lane.b32.xlu0 %v2051, 112
      %v2056 = vpop.permute.xlu0 %2055
      %2057 = vrot.lane.b32.xlu0 %v2052, 112
      %v2058 = vpop.permute.xlu0 %2057
      %v2059 = vsel %vm156, %v2056, %v2058
      %v2062 = vadd.f32 %v2046, %v2059
      %v2063 = vadd.f32 %v2047, %v2058
      %s2064 = sadd.s32 %s1471, 40
      %s2065 = sld [smem:[#allocation7 + %s2064]]
      %v2066 = vstv %s2065
      %v2067 = vmul.f32 %v2066, %v952
      %v2068 = vmul.f32 %v2066, %v953
      %2071 = vrot.lane.b32.xlu0 %v2067, 111
      %v2072 = vpop.permute.xlu0 %2071
      %2073 = vrot.lane.b32.xlu0 %v2068, 111
      %v2074 = vpop.permute.xlu0 %2073
      %v2075 = vsel %vm177, %v2072, %v2074
      %v2078 = vadd.f32 %v2062, %v2075
      %v2079 = vadd.f32 %v2063, %v2074
      %s2080 = sadd.s32 %s1471, 41
      %s2081 = sld [smem:[#allocation7 + %s2080]]
      %v2082 = vstv %s2081
      %v2083 = vmul.f32 %v2082, %v952
      %v2084 = vmul.f32 %v2082, %v953
      %2087 = vrot.lane.b32.xlu0 %v2083, 110
      %v2088 = vpop.permute.xlu0 %2087
      %2089 = vrot.lane.b32.xlu0 %v2084, 110
      %v2090 = vpop.permute.xlu0 %2089
      %v2091 = vsel %vm198, %v2088, %v2090
      %v2094 = vadd.f32 %v2078, %v2091
      %v2095 = vadd.f32 %v2079, %v2090
      %s2096 = sadd.s32 %s1471, 42
      %s2097 = sld [smem:[#allocation7 + %s2096]]
      %v2098 = vstv %s2097
      %v2099 = vmul.f32 %v2098, %v952
      %v2100 = vmul.f32 %v2098, %v953
      %2103 = vrot.lane.b32.xlu0 %v2099, 96
      %v2104 = vpop.permute.xlu0 %2103
      %2105 = vrot.lane.b32.xlu0 %v2100, 96
      %v2106 = vpop.permute.xlu0 %2105
      %v2107 = vsel %vm219, %v2104, %v2106
      %v2110 = vadd.f32 %v2094, %v2107
      %v2111 = vadd.f32 %v2095, %v2106
      %s2112 = sadd.s32 %s1471, 43
      %s2113 = sld [smem:[#allocation7 + %s2112]]
      %v2114 = vstv %s2113
      %v2115 = vmul.f32 %v2114, %v952
      %v2116 = vmul.f32 %v2114, %v953
      %2119 = vrot.lane.b32.xlu0 %v2115, 95
      %v2120 = vpop.permute.xlu0 %2119
      %2121 = vrot.lane.b32.xlu0 %v2116, 95
      %v2122 = vpop.permute.xlu0 %2121
      %v2123 = vsel %vm240, %v2120, %v2122
      %v2126 = vadd.f32 %v2110, %v2123
      %v2127 = vadd.f32 %v2111, %v2122
      %s2128 = sadd.s32 %s1471, 44
      %s2129 = sld [smem:[#allocation7 + %s2128]]
      %v2130 = vstv %s2129
      %v2131 = vmul.f32 %v2130, %v952
      %v2132 = vmul.f32 %v2130, %v953
      %2135 = vrot.lane.b32.xlu0 %v2131, 94
      %v2136 = vpop.permute.xlu0 %2135
      %2137 = vrot.lane.b32.xlu0 %v2132, 94
      %v2138 = vpop.permute.xlu0 %2137
      %v2139 = vsel %vm261, %v2136, %v2138
      %v2142 = vadd.f32 %v2126, %v2139
      %v2143 = vadd.f32 %v2127, %v2138
      %s2144 = sadd.s32 %s1471, 45
      %s2145 = sld [smem:[#allocation7 + %s2144]]
      %v2146 = vstv %s2145
      %v2147 = vmul.f32 %v2146, %v1122
      %v2148 = vmul.f32 %v2146, %v1123
      %v2149 = vadd.f32 %v2142, %v2147
      %v2150 = vadd.f32 %v2143, %v2148
      %s2151 = sadd.s32 %s1471, 46
      %s2152 = sld [smem:[#allocation7 + %s2151]]
      %v2153 = vstv %s2152
      %v2154 = vmul.f32 %v2153, %v1122
      %v2155 = vmul.f32 %v2153, %v1123
      %2158 = vrot.lane.b32.xlu0 %v2154, 127
      %v2159 = vpop.permute.xlu0 %2158
      %2160 = vrot.lane.b32.xlu0 %v2155, 127
      %v2161 = vpop.permute.xlu0 %2160
      %v2162 = vsel %vm114, %v2159, %v2161
      %v2165 = vadd.f32 %v2149, %v2162
      %v2166 = vadd.f32 %v2150, %v2161
      %s2167 = sadd.s32 %s1471, 47
      %s2168 = sld [smem:[#allocation7 + %s2167]]
      %v2169 = vstv %s2168
      %v2170 = vmul.f32 %v2169, %v1122
      %v2171 = vmul.f32 %v2169, %v1123
      %2174 = vrot.lane.b32.xlu0 %v2170, 126
      %v2175 = vpop.permute.xlu0 %2174
      %2176 = vrot.lane.b32.xlu0 %v2171, 126
      %v2177 = vpop.permute.xlu0 %2176
      %v2178 = vsel %vm135, %v2175, %v2177
      %v2181 = vadd.f32 %v2165, %v2178
      %v2182 = vadd.f32 %v2166, %v2177
      %s2183 = sadd.s32 %s1471, 48
      %s2184 = sld [smem:[#allocation7 + %s2183]]
      %v2185 = vstv %s2184
      %v2186 = vmul.f32 %v2185, %v1122
      %v2187 = vmul.f32 %v2185, %v1123
      %2190 = vrot.lane.b32.xlu0 %v2186, 112
      %v2191 = vpop.permute.xlu0 %2190
      %2192 = vrot.lane.b32.xlu0 %v2187, 112
      %v2193 = vpop.permute.xlu0 %2192
      %v2194 = vsel %vm156, %v2191, %v2193
      %v2197 = vadd.f32 %v2181, %v2194
      %v2198 = vadd.f32 %v2182, %v2193
      %s2199 = sadd.s32 %s1471, 49
      %s2200 = sld [smem:[#allocation7 + %s2199]]
      %v2201 = vstv %s2200
      %v2202 = vmul.f32 %v2201, %v1122
      %v2203 = vmul.f32 %v2201, %v1123
      %2206 = vrot.lane.b32.xlu0 %v2202, 111
      %v2207 = vpop.permute.xlu0 %2206
      %2208 = vrot.lane.b32.xlu0 %v2203, 111
      %v2209 = vpop.permute.xlu0 %2208
      %v2210 = vsel %vm177, %v2207, %v2209
      %v2213 = vadd.f32 %v2197, %v2210
      %v2214 = vadd.f32 %v2198, %v2209
      %s2215 = sadd.s32 %s1471, 50
      %s2216 = sld [smem:[#allocation7 + %s2215]]
      %v2217 = vstv %s2216
      %v2218 = vmul.f32 %v2217, %v1122
      %v2219 = vmul.f32 %v2217, %v1123
      %2222 = vrot.lane.b32.xlu0 %v2218, 110
      %v2223 = vpop.permute.xlu0 %2222
      %2224 = vrot.lane.b32.xlu0 %v2219, 110
      %v2225 = vpop.permute.xlu0 %2224
      %v2226 = vsel %vm198, %v2223, %v2225
      %v2229 = vadd.f32 %v2213, %v2226
      %v2230 = vadd.f32 %v2214, %v2225
      %s2231 = sadd.s32 %s1471, 51
      %s2232 = sld [smem:[#allocation7 + %s2231]]
      %v2233 = vstv %s2232
      %v2234 = vmul.f32 %v2233, %v1122
      %v2235 = vmul.f32 %v2233, %v1123
      %2238 = vrot.lane.b32.xlu0 %v2234, 96
      %v2239 = vpop.permute.xlu0 %2238
      %2240 = vrot.lane.b32.xlu0 %v2235, 96
      %v2241 = vpop.permute.xlu0 %2240
      %v2242 = vsel %vm219, %v2239, %v2241
      %v2245 = vadd.f32 %v2229, %v2242
      %v2246 = vadd.f32 %v2230, %v2241
      %s2247 = sadd.s32 %s1471, 52
      %s2248 = sld [smem:[#allocation7 + %s2247]]
      %v2249 = vstv %s2248
      %v2250 = vmul.f32 %v2249, %v1122
      %v2251 = vmul.f32 %v2249, %v1123
      %2254 = vrot.lane.b32.xlu0 %v2250, 95
      %v2255 = vpop.permute.xlu0 %2254
      %2256 = vrot.lane.b32.xlu0 %v2251, 95
      %v2257 = vpop.permute.xlu0 %2256
      %v2258 = vsel %vm240, %v2255, %v2257
      %v2261 = vadd.f32 %v2245, %v2258
      %v2262 = vadd.f32 %v2246, %v2257
      %s2263 = sadd.s32 %s1471, 53
      %s2264 = sld [smem:[#allocation7 + %s2263]]
      %v2265 = vstv %s2264
      %v2266 = vmul.f32 %v2265, %v1122
      %v2267 = vmul.f32 %v2265, %v1123
      %2270 = vrot.lane.b32.xlu0 %v2266, 94
      %v2271 = vpop.permute.xlu0 %2270
      %2272 = vrot.lane.b32.xlu0 %v2267, 94
      %v2273 = vpop.permute.xlu0 %2272
      %v2274 = vsel %vm261, %v2271, %v2273
      %v2277 = vadd.f32 %v2261, %v2274
      %v2278 = vadd.f32 %v2262, %v2273
      %s2279 = sadd.s32 %s1471, 54
      %s2280 = sld [smem:[#allocation7 + %s2279]]
      %v2281 = vstv %s2280
      %v2282 = vmul.f32 %v2281, %v1292
      %v2283 = vmul.f32 %v2281, %v1293
      %v2284 = vadd.f32 %v2277, %v2282
      %v2285 = vadd.f32 %v2278, %v2283
      %s2286 = sadd.s32 %s1471, 55
      %s2287 = sld [smem:[#allocation7 + %s2286]]
      %v2288 = vstv %s2287
      %v2289 = vmul.f32 %v2288, %v1292
      %v2290 = vmul.f32 %v2288, %v1293
      %2293 = vrot.lane.b32.xlu0 %v2289, 127
      %v2294 = vpop.permute.xlu0 %2293
      %2295 = vrot.lane.b32.xlu0 %v2290, 127
      %v2296 = vpop.permute.xlu0 %2295
      %v2297 = vsel %vm114, %v2294, %v2296
      %v2300 = vadd.f32 %v2284, %v2297
      %v2301 = vadd.f32 %v2285, %v2296
      %s2302 = sadd.s32 %s1471, 56
      %s2303 = sld [smem:[#allocation7 + %s2302]]
      %v2304 = vstv %s2303
      %v2305 = vmul.f32 %v2304, %v1292
      %v2306 = vmul.f32 %v2304, %v1293
      %2309 = vrot.lane.b32.xlu0 %v2305, 126
      %v2310 = vpop.permute.xlu0 %2309
      %2311 = vrot.lane.b32.xlu0 %v2306, 126
      %v2312 = vpop.permute.xlu0 %2311
      %v2313 = vsel %vm135, %v2310, %v2312
      %v2316 = vadd.f32 %v2300, %v2313
      %v2317 = vadd.f32 %v2301, %v2312
      %s2318 = sadd.s32 %s1471, 57
      %s2319 = sld [smem:[#allocation7 + %s2318]]
      %v2320 = vstv %s2319
      %v2321 = vmul.f32 %v2320, %v1292
      %v2322 = vmul.f32 %v2320, %v1293
      %2325 = vrot.lane.b32.xlu0 %v2321, 112
      %v2326 = vpop.permute.xlu0 %2325
      %2327 = vrot.lane.b32.xlu0 %v2322, 112
      %v2328 = vpop.permute.xlu0 %2327
      %v2329 = vsel %vm156, %v2326, %v2328
      %v2332 = vadd.f32 %v2316, %v2329
      %v2333 = vadd.f32 %v2317, %v2328
      %s2334 = sadd.s32 %s1471, 58
      %s2335 = sld [smem:[#allocation7 + %s2334]]
      %v2336 = vstv %s2335
      %v2337 = vmul.f32 %v2336, %v1292
      %v2338 = vmul.f32 %v2336, %v1293
      %2341 = vrot.lane.b32.xlu0 %v2337, 111
      %v2342 = vpop.permute.xlu0 %2341
      %2343 = vrot.lane.b32.xlu0 %v2338, 111
      %v2344 = vpop.permute.xlu0 %2343
      %v2345 = vsel %vm177, %v2342, %v2344
      %v2348 = vadd.f32 %v2332, %v2345
      %v2349 = vadd.f32 %v2333, %v2344
      %s2350 = sadd.s32 %s1471, 59
      %s2351 = sld [smem:[#allocation7 + %s2350]]
      %v2352 = vstv %s2351
      %v2353 = vmul.f32 %v2352, %v1292
      %v2354 = vmul.f32 %v2352, %v1293
      %2357 = vrot.lane.b32.xlu0 %v2353, 110
      %v2358 = vpop.permute.xlu0 %2357
      %2359 = vrot.lane.b32.xlu0 %v2354, 110
      %v2360 = vpop.permute.xlu0 %2359
      %v2361 = vsel %vm198, %v2358, %v2360
      %v2364 = vadd.f32 %v2348, %v2361
      %v2365 = vadd.f32 %v2349, %v2360
      %s2366 = sadd.s32 %s1471, 60
      %s2367 = sld [smem:[#allocation7 + %s2366]]
      %v2368 = vstv %s2367
      %v2369 = vmul.f32 %v2368, %v1292
      %v2370 = vmul.f32 %v2368, %v1293
      %2373 = vrot.lane.b32.xlu0 %v2369, 96
      %v2374 = vpop.permute.xlu0 %2373
      %2375 = vrot.lane.b32.xlu0 %v2370, 96
      %v2376 = vpop.permute.xlu0 %2375
      %v2377 = vsel %vm219, %v2374, %v2376
      %v2380 = vadd.f32 %v2364, %v2377
      %v2381 = vadd.f32 %v2365, %v2376
      %s2382 = sadd.s32 %s1471, 61
      %s2383 = sld [smem:[#allocation7 + %s2382]]
      %v2384 = vstv %s2383
      %v2385 = vmul.f32 %v2384, %v1292
      %v2386 = vmul.f32 %v2384, %v1293
      %2389 = vrot.lane.b32.xlu0 %v2385, 95
      %v2390 = vpop.permute.xlu0 %2389
      %2391 = vrot.lane.b32.xlu0 %v2386, 95
      %v2392 = vpop.permute.xlu0 %2391
      %v2393 = vsel %vm240, %v2390, %v2392
      %v2396 = vadd.f32 %v2380, %v2393
      %v2397 = vadd.f32 %v2381, %v2392
      %s2398 = sadd.s32 %s1471, 62
      %s2399 = sld [smem:[#allocation7 + %s2398]]
      %v2400 = vstv %s2399
      %v2401 = vmul.f32 %v2400, %v1292
      %v2402 = vmul.f32 %v2400, %v1293
      %2405 = vrot.lane.b32.xlu0 %v2401, 94
      %v2406 = vpop.permute.xlu0 %2405
      %2407 = vrot.lane.b32.xlu0 %v2402, 94
      %v2408 = vpop.permute.xlu0 %2407
      %v2409 = vsel %vm261, %v2406, %v2408
      %v2412 = vadd.f32 %v2396, %v2409
      %v2413 = vadd.f32 %v2397, %v2408
      %s2414 = sadd.s32 %s1471, 63
      %s2415 = sld [smem:[#allocation7 + %s2414]]
      %v2416 = vstv %s2415
      %v2417 = vmul.f32 %v2416, %v1462
      %v2418 = vmul.f32 %v2416, %v1463
      %v2419 = vadd.f32 %v2412, %v2417
      %v2420 = vadd.f32 %v2413, %v2418
      %s2421 = sadd.s32 %s1471, 64
      %s2422 = sld [smem:[#allocation7 + %s2421]]
      %v2423 = vstv %s2422
      %v2424 = vmul.f32 %v2423, %v1462
      %v2425 = vmul.f32 %v2423, %v1463
      %2428 = vrot.lane.b32.xlu0 %v2424, 127
      %v2429 = vpop.permute.xlu0 %2428
      %2430 = vrot.lane.b32.xlu0 %v2425, 127
      %v2431 = vpop.permute.xlu0 %2430
      %v2432 = vsel %vm114, %v2429, %v2431
      %v2435 = vadd.f32 %v2419, %v2432
      %v2436 = vadd.f32 %v2420, %v2431
      %s2437 = sadd.s32 %s1471, 65
      %s2438 = sld [smem:[#allocation7 + %s2437]]
      %v2439 = vstv %s2438
      %v2440 = vmul.f32 %v2439, %v1462
      %v2441 = vmul.f32 %v2439, %v1463
      %2444 = vrot.lane.b32.xlu0 %v2440, 126
      %v2445 = vpop.permute.xlu0 %2444
      %2446 = vrot.lane.b32.xlu0 %v2441, 126
      %v2447 = vpop.permute.xlu0 %2446
      %v2448 = vsel %vm135, %v2445, %v2447
      %v2451 = vadd.f32 %v2435, %v2448
      %v2452 = vadd.f32 %v2436, %v2447
      %s2453 = sadd.s32 %s1471, 66
      %s2454 = sld [smem:[#allocation7 + %s2453]]
      %v2455 = vstv %s2454
      %v2456 = vmul.f32 %v2455, %v1462
      %v2457 = vmul.f32 %v2455, %v1463
      %2460 = vrot.lane.b32.xlu0 %v2456, 112
      %v2461 = vpop.permute.xlu0 %2460
      %2462 = vrot.lane.b32.xlu0 %v2457, 112
      %v2463 = vpop.permute.xlu0 %2462
      %v2464 = vsel %vm156, %v2461, %v2463
      %v2467 = vadd.f32 %v2451, %v2464
      %v2468 = vadd.f32 %v2452, %v2463
      %s2469 = sadd.s32 %s1471, 67
      %s2470 = sld [smem:[#allocation7 + %s2469]]
      %v2471 = vstv %s2470
      %v2472 = vmul.f32 %v2471, %v1462
      %v2473 = vmul.f32 %v2471, %v1463
      %2476 = vrot.lane.b32.xlu0 %v2472, 111
      %v2477 = vpop.permute.xlu0 %2476
      %2478 = vrot.lane.b32.xlu0 %v2473, 111
      %v2479 = vpop.permute.xlu0 %2478
      %v2480 = vsel %vm177, %v2477, %v2479
      %v2483 = vadd.f32 %v2467, %v2480
      %v2484 = vadd.f32 %v2468, %v2479
      %s2485 = sadd.s32 %s1471, 68
      %s2486 = sld [smem:[#allocation7 + %s2485]]
      %v2487 = vstv %s2486
      %v2488 = vmul.f32 %v2487, %v1462
      %v2489 = vmul.f32 %v2487, %v1463
      %2492 = vrot.lane.b32.xlu0 %v2488, 110
      %v2493 = vpop.permute.xlu0 %2492
      %2494 = vrot.lane.b32.xlu0 %v2489, 110
      %v2495 = vpop.permute.xlu0 %2494
      %v2496 = vsel %vm198, %v2493, %v2495
      %v2499 = vadd.f32 %v2483, %v2496
      %v2500 = vadd.f32 %v2484, %v2495
      %s2501 = sadd.s32 %s1471, 69
      %s2502 = sld [smem:[#allocation7 + %s2501]]
      %v2503 = vstv %s2502
      %v2504 = vmul.f32 %v2503, %v1462
      %v2505 = vmul.f32 %v2503, %v1463
      %2508 = vrot.lane.b32.xlu0 %v2504, 96
      %v2509 = vpop.permute.xlu0 %2508
      %2510 = vrot.lane.b32.xlu0 %v2505, 96
      %v2511 = vpop.permute.xlu0 %2510
      %v2512 = vsel %vm219, %v2509, %v2511
      %v2515 = vadd.f32 %v2499, %v2512
      %v2516 = vadd.f32 %v2500, %v2511
      %s2517 = sadd.s32 %s1471, 70
      %s2518 = sld [smem:[#allocation7 + %s2517]]
      %v2519 = vstv %s2518
      %v2520 = vmul.f32 %v2519, %v1462
      %v2521 = vmul.f32 %v2519, %v1463
      %2524 = vrot.lane.b32.xlu0 %v2520, 95
      %v2525 = vpop.permute.xlu0 %2524
      %2526 = vrot.lane.b32.xlu0 %v2521, 95
      %v2527 = vpop.permute.xlu0 %2526
      %v2528 = vsel %vm240, %v2525, %v2527
      %v2531 = vadd.f32 %v2515, %v2528
      %v2532 = vadd.f32 %v2516, %v2527
      %s2533 = sadd.s32 %s1471, 71
      %s2534 = sld [smem:[#allocation7 + %s2533]]
      %v2535 = vstv %s2534
      %v2536 = vmul.f32 %v2535, %v1462
      %v2537 = vmul.f32 %v2535, %v1463
      %2540 = vrot.lane.b32.xlu0 %v2536, 94
      %v2541 = vpop.permute.xlu0 %2540
      %2542 = vrot.lane.b32.xlu0 %v2537, 94
      %v2543 = vpop.permute.xlu0 %2542
      %v2544 = vsel %vm261, %v2541, %v2543
      %v2547 = vadd.f32 %v2531, %v2544
      %v2548 = vadd.f32 %v2532, %v2543
      %s2549 = sld [smem:[#allocation8 + %s1465]]
      %v2550 = vstv %s2549
      %v2551 = vadd.f32 %v2547, %v2550
      %v2552 = vadd.f32 %v2548, %v2550
      %v2553 = vmax.f32 %v2551, 0.0
      %v2554 = vmax.f32 %v2552, 0.0
      %v2555 = vpack.c.bf16 %v2553, %v2553
      %v2556 = vpack.c.bf16 %v2554, %v2554
      %s2557 = smul.u32 %s1465, 24
      %s2558 = smul.addr %s2557, 4
      %s2559 = scalar_lea.vmem [#allocation10], %s2558
      %v2560 = vld [vmem:[%s2559] sm:$0xf]
      %v2561 = vld [vmem:[%s2559 + $0x4] sm:$0xf]
      %v2562 = vld [vmem:[%s2559 + $0x8] sm:$0xf]
      %v2563 = vld [vmem:[%s2559 + $0xc] sm:$0xf]
      %v2564 = vld [vmem:[%s2559 + $0x10] sm:$0xf]
      %v2565 = vld [vmem:[%s2559 + $0x14] sm:$0xf]
      %v2566 = vld [vmem:[%s2559 + $0x18] sm:$0xf]
      %v2567 = vld [vmem:[%s2559 + $0x1c] sm:$0xf]
      %v2568 = vld [vmem:[%s2559 + $0x20] sm:$0xf]
      %v2569 = vld [vmem:[%s2559 + $0x24] sm:$0xf]
      %v2570 = vld [vmem:[%s2559 + $0x28] sm:$0xf]
      %v2571 = vld [vmem:[%s2559 + $0x2c] sm:$0xf]
      %v2572 = vld [vmem:[%s2559 + $0x30] sm:$0xf]
      %v2573 = vld [vmem:[%s2559 + $0x34] sm:$0xf]
      %v2574 = vld [vmem:[%s2559 + $0x38] sm:$0xf]
      %v2575 = vld [vmem:[%s2559 + $0x3c] sm:$0xf]
      %v2576 = vld [vmem:[%s2559 + $0x40] sm:$0xf]
      %v2577 = vld [vmem:[%s2559 + $0x44] sm:$0xf]
      %v2578 = vld [vmem:[%s2559 + $0x48] sm:$0xf]
      %v2579 = vld [vmem:[%s2559 + $0x4c] sm:$0xf]
      %v2580 = vld [vmem:[%s2559 + $0x50] sm:$0xf]
      %v2581 = vld [vmem:[%s2559 + $0x54] sm:$0xf]
      %v2582 = vld [vmem:[%s2559 + $0x58] sm:$0xf]
      %v2583 = vld [vmem:[%s2559 + $0x5c] sm:$0xf]
      %v2608 = vunpack.c.l.b16 %v2560
      %v2609 = vunpack.c.l.b16 %v2561
      %v2610 = vunpack.c.l.b16 %v2562
      %v2611 = vunpack.c.l.b16 %v2563
      %v2612 = vunpack.c.l.b16 %v2564
      %v2613 = vunpack.c.l.b16 %v2565
      %v2614 = vunpack.c.l.b16 %v2566
      %v2615 = vunpack.c.l.b16 %v2567
      %v2616 = vunpack.c.l.b16 %v2568
      %v2617 = vunpack.c.l.b16 %v2569
      %v2618 = vunpack.c.l.b16 %v2570
      %v2619 = vunpack.c.l.b16 %v2571
      %v2620 = vunpack.c.l.b16 %v2572
      %v2621 = vunpack.c.l.b16 %v2573
      %v2622 = vunpack.c.l.b16 %v2574
      %v2623 = vunpack.c.l.b16 %v2575
      %v2624 = vunpack.c.l.b16 %v2576
      %v2625 = vunpack.c.l.b16 %v2577
      %v2626 = vunpack.c.l.b16 %v2578
      %v2627 = vunpack.c.l.b16 %v2579
      %v2628 = vunpack.c.l.b16 %v2580
      %v2629 = vunpack.c.l.b16 %v2581
      %v2630 = vunpack.c.l.b16 %v2582
      %v2631 = vunpack.c.l.b16 %v2583
      %v2632 = vpack.c.b16 %v2609, %v2608
      %v2633 = vpack.c.b16 %v2611, %v2610
      %v2634 = vpack.c.b16 %v2613, %v2612
      %v2635 = vpack.c.b16 %v2615, %v2614
      %v2636 = vpack.c.b16 %v2617, %v2616
      %v2637 = vpack.c.b16 %v2619, %v2618
      %v2638 = vpack.c.b16 %v2621, %v2620
      %v2639 = vpack.c.b16 %v2623, %v2622
      %v2640 = vpack.c.b16 %v2625, %v2624
      %v2641 = vpack.c.b16 %v2627, %v2626
      %v2642 = vpack.c.b16 %v2629, %v2628
      %v2643 = vpack.c.b16 %v2631, %v2630
      %vm2656 = vcmask 523264
      %v2658 = vsel %vm2656, %v2556, 0
      %2660 = vmatprep.subr.bf16.mxu0 0
      %2661 = vmatpush1.bf16.msra.mxu0 %v2632
      %2662 = vmatprep.subr.bf16.mxu0 0
      %2663 = vmatpush1.bf16.msra.mxu0 %v2633
      %2664 = vmatprep.subr.bf16.mxu0 0
      %2665 = vmatpush1.bf16.msra.mxu0 %v2634
      %2666 = vmatprep.subr.bf16.mxu0 0
      %2667 = vmatpush1.bf16.msra.mxu0 %v2635
      %2668 = vmatprep.subr.bf16.mxu0 0
      %2669 = vmatpush1.bf16.msra.mxu0 %v2636
      %2670 = vmatprep.subr.bf16.mxu0 0
      %2671 = vmatpush1.bf16.msra.mxu0 %v2637
      %2672 = vmatprep.subr.bf16.mxu0 0
      %2673 = vmatpush1.bf16.msra.mxu0 %v2638
      %2674 = vmatprep.subr.bf16.mxu0 0
      %2675 = vmatpush1.bf16.msra.mxu0 %v2639
      %2676 = vmatprep.subr.bf16.mxu0 0
      %2677 = vmatpush1.bf16.msra.mxu0 %v2640
      %2678 = vmatprep.subr.bf16.mxu0 0
      %2679 = vmatpush1.bf16.msra.mxu0 %v2641
      %2680 = vmatprep.subr.bf16.mxu0 0
      %2681 = vmatpush1.bf16.msra.mxu0 %v2642
      %2682 = vmatprep.subr.bf16.mxu0 0
      %2683 = vmatpush1.bf16.msra.mxu0 %v2643
      %2684 = vmatprep.subr.bf16.mxu0 0
      %2685 = vmatpush1.bf16.msra.mxu0 0
      %2686 = vmatprep.subr.bf16.mxu0 0
      %2687 = vmatpush1.bf16.msra.mxu0 0
      %2688 = vmatprep.subr.bf16.mxu0 0
      %2689 = vmatpush1.bf16.msra.mxu0 0
      %2690 = vmatprep.subr.bf16.mxu0 0
      %2691 = vmatpush1.bf16.msra.mxu0 0
      %2692 = vmatprep.mubr.bf16.mxu0 %v2658
      %2693 = vmatmul.mubr.bf16.gmra.mrb[0].mxu0 %v2555
      %v2694 = vpop.f32.mrb[0].mxu0
      %v2695 = vadd.f32 0.0, %v2694
      %v2696 = vpop.f32.mrb[0].mxu0
      %v2697 = vpop.f32.mrb[0].mxu0
      %v2698 = vpop.f32.mrb[0].mxu0
      %2699 = vdwg.mxu0
      %v2700 = vadd.f32 %v1470, %v2695
    $region54: #{image_classifier_forward.1} parent=1 // loop_footer
      %s1469 = sadd.s32 1, %s1465
    $region55: #{image_classifier_forward.1} parent=1 // loop_footer_branch
      %1464 = sbr.rel target = $region51
    $region56: #{image_classifier_forward.1} parent=1 // loop_exit
      _
    %v2701 = vld [vmem:[%s6] sm:$0x1]
    %v2703 = vlaneseq
    %v2704 = vshrl.u32 %v2703, 7
    %v2705 = vsub.s32 0, %v2704
    %v2706 = vrot.slane %v2701, %v2705
    %v2708 = vadd.f32 %v1470, %v2706
    %2709 = vst [vmem:[%s7] sm:$0xff] %v2708
    // Predicated region
    $region57: #{image_classifier_forward.1} parent=1 // pred_check
      _
    $region58: #{image_classifier_forward.1} parent=1 // pred_check_branch
      %2711 = sbr.rel (0) target = $region60
    $region59: #{image_classifier_forward.1} parent=1 // pred_region
      _
    $region60: #{image_classifier_forward.1} parent=1 // pred_fallthru
      _
    // Predicated region
    $region61: #{image_classifier_forward.1} parent=1 // pred_check
      _
    $region62: #{image_classifier_forward.1} parent=1 // pred_check_branch
      %2713 = sbr.rel (0) target = $region64
    $region63: #{image_classifier_forward.1} parent=1 // pred_region
      _
    $region64: #{image_classifier_forward.1} parent=1 // pred_fallthru
      _
    %2714 = vsyncpa [#allocation3], 1
    %2715 = vsyncpa [#allocation4], 1
    %2716 = vsyncpa [#allocation6], 1
    %2717 = vsyncpa [#allocation9], 1

</llo_original>
